<compile_context>
chip_gen: v6e
topology: v6e:2x2x1
jax: 0.10.0
libtpu: 0.0.40
codegen_flags: <defaults>
</compile_context>

<pallas_src>
import math

import jax
import jax.numpy as jnp
from jax.experimental import pallas as pl
from jax.experimental.pallas import tpu as pltpu


# ----------------------------------------------------------------------------
# Static configuration (mirrors ConvNeuralNetwork.__init__)
# ----------------------------------------------------------------------------

def calculate_conv(grid_size, kernel, stride, padding=0):
    return math.floor((grid_size + 2 * padding - kernel) / stride + 1)


def calculate_pool(grid_size, kernel):
    return math.floor(grid_size / kernel)


def make_config(grid_size, index, batch):
    kernel1, stride1, pool1 = 3, 1, 2
    if index >= 1:
        kernel1 = 5
    if index >= 2:
        kernel1 = 7
    if index >= 3:
        kernel1 = 9
        pool1 = 3
    if index >= 4:
        kernel1 = 11

    S = grid_size * 2 + 1
    H1 = calculate_conv(S, kernel1, stride1)      # conv1 output spatial
    P1 = calculate_pool(H1, pool1)                # pool1 output spatial
    H2 = calculate_conv(P1, 3, 1)                 # conv2 output spatial
    P2 = calculate_pool(H2, 2)                    # pool2 output spatial
    feat = P2 * P2 * 16
    return dict(B=batch, S=S, C0=4, C1=6, C2=16,
                k1=kernel1, pool1=pool1, H1=H1, P1=P1,
                k2=3, pool2=2, H2=H2, P2=P2,
                feat=feat, F1=int(feat * 0.5), F2=int(feat * 0.25))


# ----------------------------------------------------------------------------
# The single fused Pallas kernel
# ----------------------------------------------------------------------------

def _make_fused_kernel(cfg):
    B, S = cfg["B"], cfg["S"]
    C0, C1, C2 = cfg["C0"], cfg["C1"], cfg["C2"]
    k1, pk1, P1 = cfg["k1"], cfg["pool1"], cfg["P1"]
    k2, pk2, P2 = cfg["k2"], cfg["pool2"], cfg["P2"]
    F1, F2, feat = cfg["F1"], cfg["F2"], cfg["feat"]
    N1 = B * S * S            # conv1 output rows (row = b*S*S + h*S + w, junk at borders)
    N2 = B * P1 * P1          # conv2 output rows (row = b*P1*P1 + h*P1 + w, junk at borders)
    tail1 = (k2 - 1) * (P1 + 1)   # extra pool1 rows read only by junk conv2 rows
    Kc1 = k1 * k1 * C0
    CHUNK = 160               # 8-aligned conv1 row chunk; lhs+result stay well under 64 vregs

    def kernel(x_ref, point_ref, w1_ref, w2_ref, fc1_w_ref, fc2_w_ref, misc_ref,
               o_ref, act1_ref, pool1_ref, act2_ref, pool2_ref):
        f32 = jnp.float32

        # ---- conv1 + folded BatchNorm + ReLU: ONE K=36 matmul per row chunk ----
        w1 = w1_ref[...]                          # (Kc1, C1)
        shift1 = misc_ref[0:1, 0:C1]              # (1, C1)
        for r0 in range(0, N1, CHUNK):
            r1 = min(r0 + CHUNK, N1)
            lhs = x_ref[r0:r1, :]                 # (chunk, Kc1) im2col rows
            y = jnp.dot(lhs, w1, preferred_element_type=f32)
            act1_ref[r0:r1, :] = jnp.maximum(y + shift1, 0.0)

        # ---- maxpool1 (floor mode): strided sublane reads + VPU max ----
        for b in range(B):
            for i in range(P1):
                m = None
                for di in range(pk1):
                    for dj in range(pk1):
                        start = b * S * S + (pk1 * i + di) * S + dj
                        v = act1_ref[pl.ds(start, P1, stride=pk1), :]   # (P1, C1)
                        m = v if m is None else jnp.maximum(m, v)
                row = b * P1 * P1 + i * P1
                pool1_ref[row:row + P1, :] = m
        # tail rows are only read by junk conv2 rows; keep them finite.
        pool1_ref[N2:, :] = jnp.zeros((tail1, C1), f32)

        # ---- conv2 + folded BatchNorm + ReLU (acc ~9 vregs, no spill risk) ----
        shift2 = misc_ref[1:2, 0:C2]              # (1, C2)
        acc = None
        for dy in range(k2):
            for dx in range(k2):
                idx = dy * k2 + dx
                off = dy * P1 + dx
                lhs = pool1_ref[off:off + N2, :]                  # (N2, C1)
                rhs = w2_ref[idx * C1:(idx + 1) * C1, :]          # (C1, C2)
                term = jnp.dot(lhs, rhs, preferred_element_type=f32)
                acc = term if acc is None else acc + term
        act2_ref[...] = jnp.maximum(acc + shift2, 0.0)

        # ---- maxpool2 fused with lane-dense flatten into the fc1 input scratch ----
        # pool2_ref[b, (i*P2+j)*C2 + c] = pooled feature; lane `feat` holds `point`.
        for b in range(B):
            for i in range(P2):
                for j in range(P2):
                    r0 = b * P1 * P1 + pk2 * i * P1 + pk2 * j
                    m = None
                    for di in range(pk2):
                        v = act2_ref[r0 + di * P1: r0 + di * P1 + pk2, :]  # (pk2, C2)
                        m = v if m is None else jnp.maximum(m, v)
                    pooled = jnp.max(m, axis=0, keepdims=True)             # (1, C2)
                    col = (i * P2 + j) * C2
                    pool2_ref[b:b + 1, col:col + C2] = pooled
        pool2_ref[:, feat:feat + 1] = point_ref[...]

        # ---- fully connected stack (fc1 is one lane-dense matmul incl. point) ----
        fc1_b = misc_ref[2:3, 0:F1]
        fc2_b = misc_ref[3:4, 0:F2]
        fc3_wt = misc_ref[4:5, 0:F2]
        fc3_b = misc_ref[5:6, 0:1]
        h1 = jnp.maximum(jnp.dot(pool2_ref[...], fc1_w_ref[...],
                                 preferred_element_type=f32) + fc1_b, 0.0)
        h2 = jnp.maximum(jnp.dot(h1, fc2_w_ref[...],
                                 preferred_element_type=f32) + fc2_b, 0.0)
        # fc3 (N=1): VPU multiply + lane-sum instead of a 1-wide MXU matmul.
        logit = jnp.sum(h2 * fc3_wt, axis=-1, keepdims=True) + fc3_b
        # numerically stable sigmoid
        z = jnp.exp(-jnp.abs(logit))
        o_ref[...] = jnp.where(logit >= 0.0, 1.0 / (1.0 + z), z / (1.0 + z))

    return kernel


def make_forward_fn(cfg):
    B, S, C0, k1 = cfg["B"], cfg["S"], cfg["C0"], cfg["k1"]
    C1, C2 = cfg["C1"], cfg["C2"]
    P1, P2 = cfg["P1"], cfg["P2"]
    F1, F2, feat = cfg["F1"], cfg["F2"], cfg["feat"]
    N1, N2 = B * S * S, B * P1 * P1
    tail1 = (cfg["k2"] - 1) * (P1 + 1)
    Kc1 = k1 * k1 * C0

    kernel = _make_fused_kernel(cfg)

    def vmem():
        return pl.BlockSpec(memory_space=pltpu.MemorySpace.VMEM)

    flops = 2 * (N1 * Kc1 * C1
                 + N2 * cfg["k2"] * cfg["k2"] * C1 * C2
                 + B * (feat + 1) * F1
                 + B * F1 * F2
                 + B * F2)
    bytes_accessed = 4 * (N1 * Kc1 + B
                          + Kc1 * C1
                          + cfg["k2"] * cfg["k2"] * C1 * C2
                          + (feat + 1) * F1
                          + F1 * F2
                          + 8 * 128
                          + B)
    cost = pl.CostEstimate(flops=flops, transcendentals=B,
                           bytes_accessed=bytes_accessed)

    call = pl.pallas_call(
        kernel,
        out_shape=jax.ShapeDtypeStruct((B, 1), jnp.float32),
        in_specs=[vmem() for _ in range(7)],
        out_specs=vmem(),
        scratch_shapes=[
            pltpu.VMEM((N1, C1), jnp.float32),             # conv1 activations
            pltpu.VMEM((N2 + tail1, C1), jnp.float32),     # pool1 (+ zero tail)
            pltpu.VMEM((N2, C2), jnp.float32),             # conv2 activations
            pltpu.VMEM((B, feat + 1), jnp.float32),        # lane-dense fc1 input
        ],
        cost_estimate=cost,
    )

    @jax.jit
    def forward(kparams, point, grid_nchw):
        # Fused preprocessing: NCHW -> NHWC, zero-pad, and im2col with K = k1*k1*C0.
        # Rows are (b, h, w); junk rows (windows straddling borders) are computed
        # in the kernel but never read.
        x = jnp.transpose(grid_nchw, (0, 2, 3, 1))                      # (B,S,S,C0)
        xp = jnp.pad(x, ((0, 0), (0, k1 - 1), (0, k1 - 1), (0, 0)))
        taps = [xp[:, dy:dy + S, dx:dx + S, :]
                for dy in range(k1) for dx in range(k1)]
        x2d = jnp.concatenate(taps, axis=-1).reshape(N1, Kc1)           # (N1, 36)
        return call(x2d, point, *kparams)

    return forward


# ----------------------------------------------------------------------------
# Parameters (torch layouts) + folding / re-layout for the kernel
# ----------------------------------------------------------------------------

def init_raw_params(key, cfg):
    C0, C1, C2, k1 = cfg["C0"], cfg["C1"], cfg["C2"], cfg["k1"]
    feat, F1, F2 = cfg["feat"], cfg["F1"], cfg["F2"]
    ks = jax.random.split(key, 18)

    def nrm(k, shape, scale=0.1):
        return scale * jax.random.normal(k, shape, jnp.float32)

    return dict(
        conv1_w=nrm(ks[0], (C1, C0, k1, k1)),       # OIHW (torch layout)
        conv1_b=nrm(ks[1], (C1,)),
        bn1_g=1.0 + nrm(ks[2], (C1,)),
        bn1_b=nrm(ks[3], (C1,)),
        bn1_mu=nrm(ks[4], (C1,)),
        bn1_var=1.0 + 0.1 * jnp.abs(jax.random.normal(ks[5], (C1,))),
        conv2_w=nrm(ks[6], (C2, C1, 3, 3)),
        conv2_b=nrm(ks[7], (C2,)),
        bn2_g=1.0 + nrm(ks[8], (C2,)),
        bn2_b=nrm(ks[9], (C2,)),
        bn2_mu=nrm(ks[10], (C2,)),
        bn2_var=1.0 + 0.1 * jnp.abs(jax.random.normal(ks[11], (C2,))),
        fc1_w=nrm(ks[12], (feat + 1, F1)),          # (in, out); row 0 = point weight
        fc1_b=nrm(ks[13], (F1,)),
        fc2_w=nrm(ks[14], (F1, F2)),
        fc2_b=nrm(ks[15], (F2,)),
        fc3_w=nrm(ks[16], (F2, 1)),
        fc3_b=nrm(ks[17], (1,)),
    )


def prepare_kernel_params(raw, cfg):
    eps = 1e-5
    C0, C1, C2, k1 = cfg["C0"], cfg["C1"], cfg["C2"], cfg["k1"]
    P2, F1, F2 = cfg["P2"], cfg["F1"], cfg["F2"]

    # Fold eval-mode BatchNorm into conv weights / shift.
    scale1 = raw["bn1_g"] / jnp.sqrt(raw["bn1_var"] + eps)
    shift1 = (raw["conv1_b"] - raw["bn1_mu"]) * scale1 + raw["bn1_b"]
    w1 = (jnp.transpose(raw["conv1_w"], (2, 3, 1, 0)).reshape(k1 * k1 * C0, C1)
          * scale1[None, :])

    scale2 = raw["bn2_g"] / jnp.sqrt(raw["bn2_var"] + eps)
    shift2 = (raw["conv2_b"] - raw["bn2_mu"]) * scale2 + raw["bn2_b"]
    w2 = (jnp.transpose(raw["conv2_w"], (2, 3, 1, 0)).reshape(9 * C1, C2)
          * scale2[None, :])

    # Re-order fc1 rows from torch flatten order (c, h, w) to the kernel's
    # lane-dense order (spatial r, channel c), with the point row appended last.
    fc1_raw = raw["fc1_w"]                                   # (feat+1, F1)
    w_perm = jnp.transpose(fc1_raw[1:, :].reshape(C2, P2 * P2, F1),
                           (1, 0, 2)).reshape(P2 * P2 * C2, F1)
    fc1_w = jnp.concatenate([w_perm, fc1_raw[0:1, :]], axis=0)   # (feat+1, F1)

    # Coalesce the tiny vector parameters into one 128-lane buffer (one DMA).
    misc = jnp.zeros((8, 128), jnp.float32)
    misc = misc.at[0, :C1].set(shift1)
    misc = misc.at[1, :C2].set(shift2)
    misc = misc.at[2, :F1].set(raw["fc1_b"])
    misc = misc.at[3, :F2].set(raw["fc2_b"])
    misc = misc.at[4, :F2].set(raw["fc3_w"][:, 0])
    misc = misc.at[5, 0].set(raw["fc3_b"][0])

    return (w1, w2, fc1_w, raw["fc2_w"], misc)


# ----------------------------------------------------------------------------
# Pure-JAX reference (eval-mode BN), for a correctness check
# ----------------------------------------------------------------------------

def reference_forward(raw, cfg, point, grid):
    eps = 1e-5
    hp = jax.lax.Precision.HIGHEST

    def conv_block(x, w, b, g, beta, mu, var, pool):
        y = jax.lax.conv_general_dilated(
            x, w, window_strides=(1, 1), padding="VALID",
            dimension_numbers=("NCHW", "OIHW", "NCHW"), precision=hp)
        y = y + b[None, :, None, None]
        y = ((y - mu[None, :, None, None])
             / jnp.sqrt(var[None, :, None, None] + eps)
             * g[None, :, None, None] + beta[None, :, None, None])
        y = jnp.maximum(y, 0.0)
        Bn, Cc, H, W = y.shape
        Ho, Wo = H // pool, W // pool
        y = y[:, :, :Ho * pool, :Wo * pool].reshape(Bn, Cc, Ho, pool, Wo, pool)
        return y.max(axis=(3, 5))

    y = conv_block(grid, raw["conv1_w"], raw["conv1_b"], raw["bn1_g"],
                   raw["bn1_b"], raw["bn1_mu"], raw["bn1_var"], cfg["pool1"])
    y = conv_block(y, raw["conv2_w"], raw["conv2_b"], raw["bn2_g"],
                   raw["bn2_b"], raw["bn2_mu"], raw["bn2_var"], cfg["pool2"])
    flat = y.reshape(y.shape[0], -1)                      # NCHW flatten order
    x = jnp.concatenate([point, flat], axis=1)
    h = jnp.maximum(jnp.dot(x, raw["fc1_w"], precision=hp) + raw["fc1_b"], 0.0)
    h = jnp.maximum(jnp.dot(h, raw["fc2_w"], precision=hp) + raw["fc2_b"], 0.0)
    return jax.nn.sigmoid(jnp.dot(h, raw["fc3_w"], precision=hp) + raw["fc3_b"])


# ----------------------------------------------------------------------------
# Demo
# ----------------------------------------------------------------------------

if __name__ == "__main__":
    grid_size = 7          # spatial input = grid_size*2+1 = 15
    index = 0              # kernel1=3, pool1=2
    batch = 2

    cfg = make_config(grid_size, index, batch)

    key = jax.random.PRNGKey(0)
    k_params, k_grid, k_point = jax.random.split(key, 3)

    raw = init_raw_params(k_params, cfg)
    kparams = prepare_kernel_params(raw, cfg)
    forward = make_forward_fn(cfg)

    S = cfg["S"]
    grid_in = jax.random.normal(k_grid, (batch, cfg["C0"], S, S), jnp.float32)  # NCHW
    point = jax.random.normal(k_point, (batch, 1), jnp.float32)

    out = jax.block_until_ready(forward(kparams, point, grid_in))

    assert out.shape == (batch, 1), out.shape
    assert bool(jnp.all(jnp.isfinite(out)))
    assert bool(jnp.all((out >= 0.0) & (out <= 1.0)))

    ref = reference_forward(raw, cfg, point, grid_in)
    assert bool(jnp.allclose(out, ref, atol=2e-3, rtol=2e-3)), (out, ref)

    print("KERNEL_OK")
</pallas_src>

<mosaic_0001>
module attributes {stable_mosaic.version = 11 : i64} {
  func.func @kernel(%arg0: memref<450x36xf32, #tpu.memory_space<vmem>>, %arg1: memref<2x1xf32, #tpu.memory_space<vmem>>, %arg2: memref<36x6xf32, #tpu.memory_space<vmem>>, %arg3: memref<54x16xf32, #tpu.memory_space<vmem>>, %arg4: memref<65x32xf32, #tpu.memory_space<vmem>>, %arg5: memref<32x16xf32, #tpu.memory_space<vmem>>, %arg6: memref<8x128xf32, #tpu.memory_space<vmem>>, %arg7: memref<2x1xf32, #tpu.memory_space<vmem>>, %arg8: memref<450x6xf32, #tpu.memory_space<vmem>>, %arg9: memref<86x6xf32, #tpu.memory_space<vmem>>, %arg10: memref<72x16xf32, #tpu.memory_space<vmem>>, %arg11: memref<2x65xf32, #tpu.memory_space<vmem>>) attributes {dimension_semantics = [], scalar_prefetch = 0 : i64, scratch_operands = 4 : i64, tpu.core_type = #tpu.core_type<tc>} {
    %c0 = arith.constant 0 : index
    %c0_0 = arith.constant 0 : index
    %0 = vector.load %arg2[%c0, %c0_0] : memref<36x6xf32, #tpu.memory_space<vmem>>, vector<36x6xf32>
    %c0_1 = arith.constant 0 : index
    %c0_2 = arith.constant 0 : index
    %1 = vector.load %arg6[%c0_1, %c0_2] : memref<8x128xf32, #tpu.memory_space<vmem>>, vector<1x6xf32>
    %c0_3 = arith.constant 0 : index
    %c0_4 = arith.constant 0 : index
    %2 = vector.load %arg0[%c0_3, %c0_4] : memref<450x36xf32, #tpu.memory_space<vmem>>, vector<160x36xf32>
    %cst = arith.constant dense<0.000000e+00> : vector<160x6xf32>
    %3 = tpu.matmul %2, %0, %cst {dimension_numbers = #tpu.dot_dimension_numbers<[1], [0], [0], [1], [0, 0, 1, 1], [], []>} : vector<160x36xf32>, vector<36x6xf32>, vector<160x6xf32> -> vector<160x6xf32>
    %4 = vector.broadcast %1 : vector<1x6xf32> to vector<160x6xf32>
    %5 = arith.addf %3, %4 : vector<160x6xf32>
    %cst_5 = arith.constant 0.000000e+00 : f32
    %6 = vector.broadcast %cst_5 : f32 to vector<160x6xf32>
    %7 = arith.maximumf %5, %6 : vector<160x6xf32>
    %c0_6 = arith.constant 0 : index
    %c0_7 = arith.constant 0 : index
    %8 = vector.load %arg8[%c0_6, %c0_7] : memref<450x6xf32, #tpu.memory_space<vmem>>, vector<160x6xf32>
    tpu.vector_store %arg8[%c0_6, %c0_7], %7 {strides = array<i32>} : memref<450x6xf32, #tpu.memory_space<vmem>>, vector<160x6xf32>,
    %c160 = arith.constant 160 : index
    %c0_8 = arith.constant 0 : index
    %9 = vector.load %arg0[%c160, %c0_8] : memref<450x36xf32, #tpu.memory_space<vmem>>, vector<160x36xf32>
    %cst_9 = arith.constant dense<0.000000e+00> : vector<160x6xf32>
    %10 = tpu.matmul %9, %0, %cst_9 {dimension_numbers = #tpu.dot_dimension_numbers<[1], [0], [0], [1], [0, 0, 1, 1], [], []>} : vector<160x36xf32>, vector<36x6xf32>, vector<160x6xf32> -> vector<160x6xf32>
    %11 = vector.broadcast %1 : vector<1x6xf32> to vector<160x6xf32>
    %12 = arith.addf %10, %11 : vector<160x6xf32>
    %cst_10 = arith.constant 0.000000e+00 : f32
    %13 = vector.broadcast %cst_10 : f32 to vector<160x6xf32>
    %14 = arith.maximumf %12, %13 : vector<160x6xf32>
    %c160_11 = arith.constant 160 : index
    %c0_12 = arith.constant 0 : index
    %15 = vector.load %arg8[%c160_11, %c0_12] : memref<450x6xf32, #tpu.memory_space<vmem>>, vector<160x6xf32>
    tpu.vector_store %arg8[%c160_11, %c0_12], %14 {strides = array<i32>} : memref<450x6xf32, #tpu.memory_space<vmem>>, vector<160x6xf32>,
    %c320 = arith.constant 320 : index
    %c0_13 = arith.constant 0 : index
    %16 = vector.load %arg0[%c320, %c0_13] : memref<450x36xf32, #tpu.memory_space<vmem>>, vector<130x36xf32>
    %cst_14 = arith.constant dense<0.000000e+00> : vector<130x6xf32>
    %17 = tpu.matmul %16, %0, %cst_14 {dimension_numbers = #tpu.dot_dimension_numbers<[1], [0], [0], [1], [0, 0, 1, 1], [], []>} : vector<130x36xf32>, vector<36x6xf32>, vector<130x6xf32> -> vector<130x6xf32>
    %18 = vector.broadcast %1 : vector<1x6xf32> to vector<130x6xf32>
    %19 = arith.addf %17, %18 : vector<130x6xf32>
    %cst_15 = arith.constant 0.000000e+00 : f32
    %20 = vector.broadcast %cst_15 : f32 to vector<130x6xf32>
    %21 = arith.maximumf %19, %20 : vector<130x6xf32>
    %c320_16 = arith.constant 320 : index
    %c0_17 = arith.constant 0 : index
    %22 = vector.load %arg8[%c320_16, %c0_17] : memref<450x6xf32, #tpu.memory_space<vmem>>, vector<130x6xf32>
    tpu.vector_store %arg8[%c320_16, %c0_17], %21 {strides = array<i32>} : memref<450x6xf32, #tpu.memory_space<vmem>>, vector<130x6xf32>,
    %c0_18 = arith.constant 0 : index
    %c0_19 = arith.constant 0 : index
    %23 = tpu.strided_load %arg8[%c0_18, %c0_19] {strides = array<i32: 2, 1>} : memref<450x6xf32, #tpu.memory_space<vmem>>, vector<6x6xf32>
    %c1 = arith.constant 1 : index
    %c0_20 = arith.constant 0 : index
    %24 = tpu.strided_load %arg8[%c1, %c0_20] {strides = array<i32: 2, 1>} : memref<450x6xf32, #tpu.memory_space<vmem>>, vector<6x6xf32>
    %25 = arith.maximumf %23, %24 : vector<6x6xf32>
    %c15 = arith.constant 15 : index
    %c0_21 = arith.constant 0 : index
    %26 = tpu.strided_load %arg8[%c15, %c0_21] {strides = array<i32: 2, 1>} : memref<450x6xf32, #tpu.memory_space<vmem>>, vector<6x6xf32>
    %27 = arith.maximumf %25, %26 : vector<6x6xf32>
    %c16 = arith.constant 16 : index
    %c0_22 = arith.constant 0 : index
    %28 = tpu.strided_load %arg8[%c16, %c0_22] {strides = array<i32: 2, 1>} : memref<450x6xf32, #tpu.memory_space<vmem>>, vector<6x6xf32>
    %29 = arith.maximumf %27, %28 : vector<6x6xf32>
    %c0_23 = arith.constant 0 : index
    %c0_24 = arith.constant 0 : index
    %30 = vector.load %arg9[%c0_23, %c0_24] : memref<86x6xf32, #tpu.memory_space<vmem>>, vector<6x6xf32>
    tpu.vector_store %arg9[%c0_23, %c0_24], %29 {strides = array<i32>} : memref<86x6xf32, #tpu.memory_space<vmem>>, vector<6x6xf32>,
    %c30 = arith.constant 30 : index
    %c0_25 = arith.constant 0 : index
    %31 = tpu.strided_load %arg8[%c30, %c0_25] {strides = array<i32: 2, 1>} : memref<450x6xf32, #tpu.memory_space<vmem>>, vector<6x6xf32>
    %c31 = arith.constant 31 : index
    %c0_26 = arith.constant 0 : index
    %32 = tpu.strided_load %arg8[%c31, %c0_26] {strides = array<i32: 2, 1>} : memref<450x6xf32, #tpu.memory_space<vmem>>, vector<6x6xf32>
    %33 = arith.maximumf %31, %32 : vector<6x6xf32>
    %c45 = arith.constant 45 : index
    %c0_27 = arith.constant 0 : index
    %34 = tpu.strided_load %arg8[%c45, %c0_27] {strides = array<i32: 2, 1>} : memref<450x6xf32, #tpu.memory_space<vmem>>, vector<6x6xf32>
    %35 = arith.maximumf %33, %34 : vector<6x6xf32>
    %c46 = arith.constant 46 : index
    %c0_28 = arith.constant 0 : index
    %36 = tpu.strided_load %arg8[%c46, %c0_28] {strides = array<i32: 2, 1>} : memref<450x6xf32, #tpu.memory_space<vmem>>, vector<6x6xf32>
    %37 = arith.maximumf %35, %36 : vector<6x6xf32>
    %c6 = arith.constant 6 : index
    %c0_29 = arith.constant 0 : index
    %38 = vector.load %arg9[%c6, %c0_29] : memref<86x6xf32, #tpu.memory_space<vmem>>, vector<6x6xf32>
    tpu.vector_store %arg9[%c6, %c0_29], %37 {strides = array<i32>} : memref<86x6xf32, #tpu.memory_space<vmem>>, vector<6x6xf32>,
    %c60 = arith.constant 60 : index
    %c0_30 = arith.constant 0 : index
    %39 = tpu.strided_load %arg8[%c60, %c0_30] {strides = array<i32: 2, 1>} : memref<450x6xf32, #tpu.memory_space<vmem>>, vector<6x6xf32>
    %c61 = arith.constant 61 : index
    %c0_31 = arith.constant 0 : index
    %40 = tpu.strided_load %arg8[%c61, %c0_31] {strides = array<i32: 2, 1>} : memref<450x6xf32, #tpu.memory_space<vmem>>, vector<6x6xf32>
    %41 = arith.maximumf %39, %40 : vector<6x6xf32>
    %c75 = arith.constant 75 : index
    %c0_32 = arith.constant 0 : index
    %42 = tpu.strided_load %arg8[%c75, %c0_32] {strides = array<i32: 2, 1>} : memref<450x6xf32, #tpu.memory_space<vmem>>, vector<6x6xf32>
    %43 = arith.maximumf %41, %42 : vector<6x6xf32>
    %c76 = arith.constant 76 : index
    %c0_33 = arith.constant 0 : index
    %44 = tpu.strided_load %arg8[%c76, %c0_33] {strides = array<i32: 2, 1>} : memref<450x6xf32, #tpu.memory_space<vmem>>, vector<6x6xf32>
    %45 = arith.maximumf %43, %44 : vector<6x6xf32>
    %c12 = arith.constant 12 : index
    %c0_34 = arith.constant 0 : index
    %46 = vector.load %arg9[%c12, %c0_34] : memref<86x6xf32, #tpu.memory_space<vmem>>, vector<6x6xf32>
    tpu.vector_store %arg9[%c12, %c0_34], %45 {strides = array<i32>} : memref<86x6xf32, #tpu.memory_space<vmem>>, vector<6x6xf32>,
    %c90 = arith.constant 90 : index
    %c0_35 = arith.constant 0 : index
    %47 = tpu.strided_load %arg8[%c90, %c0_35] {strides = array<i32: 2, 1>} : memref<450x6xf32, #tpu.memory_space<vmem>>, vector<6x6xf32>
    %c91 = arith.constant 91 : index
    %c0_36 = arith.constant 0 : index
    %48 = tpu.strided_load %arg8[%c91, %c0_36] {strides = array<i32: 2, 1>} : memref<450x6xf32, #tpu.memory_space<vmem>>, vector<6x6xf32>
    %49 = arith.maximumf %47, %48 : vector<6x6xf32>
    %c105 = arith.constant 105 : index
    %c0_37 = arith.constant 0 : index
    %50 = tpu.strided_load %arg8[%c105, %c0_37] {strides = array<i32: 2, 1>} : memref<450x6xf32, #tpu.memory_space<vmem>>, vector<6x6xf32>
    %51 = arith.maximumf %49, %50 : vector<6x6xf32>
    %c106 = arith.constant 106 : index
    %c0_38 = arith.constant 0 : index
    %52 = tpu.strided_load %arg8[%c106, %c0_38] {strides = array<i32: 2, 1>} : memref<450x6xf32, #tpu.memory_space<vmem>>, vector<6x6xf32>
    %53 = arith.maximumf %51, %52 : vector<6x6xf32>
    %c18 = arith.constant 18 : index
    %c0_39 = arith.constant 0 : index
    %54 = vector.load %arg9[%c18, %c0_39] : memref<86x6xf32, #tpu.memory_space<vmem>>, vector<6x6xf32>
    tpu.vector_store %arg9[%c18, %c0_39], %53 {strides = array<i32>} : memref<86x6xf32, #tpu.memory_space<vmem>>, vector<6x6xf32>,
    %c120 = arith.constant 120 : index
    %c0_40 = arith.constant 0 : index
    %55 = tpu.strided_load %arg8[%c120, %c0_40] {strides = array<i32: 2, 1>} : memref<450x6xf32, #tpu.memory_space<vmem>>, vector<6x6xf32>
    %c121 = arith.constant 121 : index
    %c0_41 = arith.constant 0 : index
    %56 = tpu.strided_load %arg8[%c121, %c0_41] {strides = array<i32: 2, 1>} : memref<450x6xf32, #tpu.memory_space<vmem>>, vector<6x6xf32>
    %57 = arith.maximumf %55, %56 : vector<6x6xf32>
    %c135 = arith.constant 135 : index
    %c0_42 = arith.constant 0 : index
    %58 = tpu.strided_load %arg8[%c135, %c0_42] {strides = array<i32: 2, 1>} : memref<450x6xf32, #tpu.memory_space<vmem>>, vector<6x6xf32>
    %59 = arith.maximumf %57, %58 : vector<6x6xf32>
    %c136 = arith.constant 136 : index
    %c0_43 = arith.constant 0 : index
    %60 = tpu.strided_load %arg8[%c136, %c0_43] {strides = array<i32: 2, 1>} : memref<450x6xf32, #tpu.memory_space<vmem>>, vector<6x6xf32>
    %61 = arith.maximumf %59, %60 : vector<6x6xf32>
    %c24 = arith.constant 24 : index
    %c0_44 = arith.constant 0 : index
    %62 = vector.load %arg9[%c24, %c0_44] : memref<86x6xf32, #tpu.memory_space<vmem>>, vector<6x6xf32>
    tpu.vector_store %arg9[%c24, %c0_44], %61 {strides = array<i32>} : memref<86x6xf32, #tpu.memory_space<vmem>>, vector<6x6xf32>,
    %c150 = arith.constant 150 : index
    %c0_45 = arith.constant 0 : index
    %63 = tpu.strided_load %arg8[%c150, %c0_45] {strides = array<i32: 2, 1>} : memref<450x6xf32, #tpu.memory_space<vmem>>, vector<6x6xf32>
    %c151 = arith.constant 151 : index
    %c0_46 = arith.constant 0 : index
    %64 = tpu.strided_load %arg8[%c151, %c0_46] {strides = array<i32: 2, 1>} : memref<450x6xf32, #tpu.memory_space<vmem>>, vector<6x6xf32>
    %65 = arith.maximumf %63, %64 : vector<6x6xf32>
    %c165 = arith.constant 165 : index
    %c0_47 = arith.constant 0 : index
    %66 = tpu.strided_load %arg8[%c165, %c0_47] {strides = array<i32: 2, 1>} : memref<450x6xf32, #tpu.memory_space<vmem>>, vector<6x6xf32>
    %67 = arith.maximumf %65, %66 : vector<6x6xf32>
    %c166 = arith.constant 166 : index
    %c0_48 = arith.constant 0 : index
    %68 = tpu.strided_load %arg8[%c166, %c0_48] {strides = array<i32: 2, 1>} : memref<450x6xf32, #tpu.memory_space<vmem>>, vector<6x6xf32>
    %69 = arith.maximumf %67, %68 : vector<6x6xf32>
    %c30_49 = arith.constant 30 : index
    %c0_50 = arith.constant 0 : index
    %70 = vector.load %arg9[%c30_49, %c0_50] : memref<86x6xf32, #tpu.memory_space<vmem>>, vector<6x6xf32>
    tpu.vector_store %arg9[%c30_49, %c0_50], %69 {strides = array<i32>} : memref<86x6xf32, #tpu.memory_space<vmem>>, vector<6x6xf32>,
    %c225 = arith.constant 225 : index
    %c0_51 = arith.constant 0 : index
    %71 = tpu.strided_load %arg8[%c225, %c0_51] {strides = array<i32: 2, 1>} : memref<450x6xf32, #tpu.memory_space<vmem>>, vector<6x6xf32>
    %c226 = arith.constant 226 : index
    %c0_52 = arith.constant 0 : index
    %72 = tpu.strided_load %arg8[%c226, %c0_52] {strides = array<i32: 2, 1>} : memref<450x6xf32, #tpu.memory_space<vmem>>, vector<6x6xf32>
    %73 = arith.maximumf %71, %72 : vector<6x6xf32>
    %c240 = arith.constant 240 : index
    %c0_53 = arith.constant 0 : index
    %74 = tpu.strided_load %arg8[%c240, %c0_53] {strides = array<i32: 2, 1>} : memref<450x6xf32, #tpu.memory_space<vmem>>, vector<6x6xf32>
    %75 = arith.maximumf %73, %74 : vector<6x6xf32>
    %c241 = arith.constant 241 : index
    %c0_54 = arith.constant 0 : index
    %76 = tpu.strided_load %arg8[%c241, %c0_54] {strides = array<i32: 2, 1>} : memref<450x6xf32, #tpu.memory_space<vmem>>, vector<6x6xf32>
    %77 = arith.maximumf %75, %76 : vector<6x6xf32>
    %c36 = arith.constant 36 : index
    %c0_55 = arith.constant 0 : index
    %78 = vector.load %arg9[%c36, %c0_55] : memref<86x6xf32, #tpu.memory_space<vmem>>, vector<6x6xf32>
    tpu.vector_store %arg9[%c36, %c0_55], %77 {strides = array<i32>} : memref<86x6xf32, #tpu.memory_space<vmem>>, vector<6x6xf32>,
    %c255 = arith.constant 255 : index
    %c0_56 = arith.constant 0 : index
    %79 = tpu.strided_load %arg8[%c255, %c0_56] {strides = array<i32: 2, 1>} : memref<450x6xf32, #tpu.memory_space<vmem>>, vector<6x6xf32>
    %c256 = arith.constant 256 : index
    %c0_57 = arith.constant 0 : index
    %80 = tpu.strided_load %arg8[%c256, %c0_57] {strides = array<i32: 2, 1>} : memref<450x6xf32, #tpu.memory_space<vmem>>, vector<6x6xf32>
    %81 = arith.maximumf %79, %80 : vector<6x6xf32>
    %c270 = arith.constant 270 : index
    %c0_58 = arith.constant 0 : index
    %82 = tpu.strided_load %arg8[%c270, %c0_58] {strides = array<i32: 2, 1>} : memref<450x6xf32, #tpu.memory_space<vmem>>, vector<6x6xf32>
    %83 = arith.maximumf %81, %82 : vector<6x6xf32>
    %c271 = arith.constant 271 : index
    %c0_59 = arith.constant 0 : index
    %84 = tpu.strided_load %arg8[%c271, %c0_59] {strides = array<i32: 2, 1>} : memref<450x6xf32, #tpu.memory_space<vmem>>, vector<6x6xf32>
    %85 = arith.maximumf %83, %84 : vector<6x6xf32>
    %c42 = arith.constant 42 : index
    %c0_60 = arith.constant 0 : index
    %86 = vector.load %arg9[%c42, %c0_60] : memref<86x6xf32, #tpu.memory_space<vmem>>, vector<6x6xf32>
    tpu.vector_store %arg9[%c42, %c0_60], %85 {strides = array<i32>} : memref<86x6xf32, #tpu.memory_space<vmem>>, vector<6x6xf32>,
    %c285 = arith.constant 285 : index
    %c0_61 = arith.constant 0 : index
    %87 = tpu.strided_load %arg8[%c285, %c0_61] {strides = array<i32: 2, 1>} : memref<450x6xf32, #tpu.memory_space<vmem>>, vector<6x6xf32>
    %c286 = arith.constant 286 : index
    %c0_62 = arith.constant 0 : index
    %88 = tpu.strided_load %arg8[%c286, %c0_62] {strides = array<i32: 2, 1>} : memref<450x6xf32, #tpu.memory_space<vmem>>, vector<6x6xf32>
    %89 = arith.maximumf %87, %88 : vector<6x6xf32>
    %c300 = arith.constant 300 : index
    %c0_63 = arith.constant 0 : index
    %90 = tpu.strided_load %arg8[%c300, %c0_63] {strides = array<i32: 2, 1>} : memref<450x6xf32, #tpu.memory_space<vmem>>, vector<6x6xf32>
    %91 = arith.maximumf %89, %90 : vector<6x6xf32>
    %c301 = arith.constant 301 : index
    %c0_64 = arith.constant 0 : index
    %92 = tpu.strided_load %arg8[%c301, %c0_64] {strides = array<i32: 2, 1>} : memref<450x6xf32, #tpu.memory_space<vmem>>, vector<6x6xf32>
    %93 = arith.maximumf %91, %92 : vector<6x6xf32>
    %c48 = arith.constant 48 : index
    %c0_65 = arith.constant 0 : index
    %94 = vector.load %arg9[%c48, %c0_65] : memref<86x6xf32, #tpu.memory_space<vmem>>, vector<6x6xf32>
    tpu.vector_store %arg9[%c48, %c0_65], %93 {strides = array<i32>} : memref<86x6xf32, #tpu.memory_space<vmem>>, vector<6x6xf32>,
    %c315 = arith.constant 315 : index
    %c0_66 = arith.constant 0 : index
    %95 = tpu.strided_load %arg8[%c315, %c0_66] {strides = array<i32: 2, 1>} : memref<450x6xf32, #tpu.memory_space<vmem>>, vector<6x6xf32>
    %c316 = arith.constant 316 : index
    %c0_67 = arith.constant 0 : index
    %96 = tpu.strided_load %arg8[%c316, %c0_67] {strides = array<i32: 2, 1>} : memref<450x6xf32, #tpu.memory_space<vmem>>, vector<6x6xf32>
    %97 = arith.maximumf %95, %96 : vector<6x6xf32>
    %c330 = arith.constant 330 : index
    %c0_68 = arith.constant 0 : index
    %98 = tpu.strided_load %arg8[%c330, %c0_68] {strides = array<i32: 2, 1>} : memref<450x6xf32, #tpu.memory_space<vmem>>, vector<6x6xf32>
    %99 = arith.maximumf %97, %98 : vector<6x6xf32>
    %c331 = arith.constant 331 : index
    %c0_69 = arith.constant 0 : index
    %100 = tpu.strided_load %arg8[%c331, %c0_69] {strides = array<i32: 2, 1>} : memref<450x6xf32, #tpu.memory_space<vmem>>, vector<6x6xf32>
    %101 = arith.maximumf %99, %100 : vector<6x6xf32>
    %c54 = arith.constant 54 : index
    %c0_70 = arith.constant 0 : index
    %102 = vector.load %arg9[%c54, %c0_70] : memref<86x6xf32, #tpu.memory_space<vmem>>, vector<6x6xf32>
    tpu.vector_store %arg9[%c54, %c0_70], %101 {strides = array<i32>} : memref<86x6xf32, #tpu.memory_space<vmem>>, vector<6x6xf32>,
    %c345 = arith.constant 345 : index
    %c0_71 = arith.constant 0 : index
    %103 = tpu.strided_load %arg8[%c345, %c0_71] {strides = array<i32: 2, 1>} : memref<450x6xf32, #tpu.memory_space<vmem>>, vector<6x6xf32>
    %c346 = arith.constant 346 : index
    %c0_72 = arith.constant 0 : index
    %104 = tpu.strided_load %arg8[%c346, %c0_72] {strides = array<i32: 2, 1>} : memref<450x6xf32, #tpu.memory_space<vmem>>, vector<6x6xf32>
    %105 = arith.maximumf %103, %104 : vector<6x6xf32>
    %c360 = arith.constant 360 : index
    %c0_73 = arith.constant 0 : index
    %106 = tpu.strided_load %arg8[%c360, %c0_73] {strides = array<i32: 2, 1>} : memref<450x6xf32, #tpu.memory_space<vmem>>, vector<6x6xf32>
    %107 = arith.maximumf %105, %106 : vector<6x6xf32>
    %c361 = arith.constant 361 : index
    %c0_74 = arith.constant 0 : index
    %108 = tpu.strided_load %arg8[%c361, %c0_74] {strides = array<i32: 2, 1>} : memref<450x6xf32, #tpu.memory_space<vmem>>, vector<6x6xf32>
    %109 = arith.maximumf %107, %108 : vector<6x6xf32>
    %c60_75 = arith.constant 60 : index
    %c0_76 = arith.constant 0 : index
    %110 = vector.load %arg9[%c60_75, %c0_76] : memref<86x6xf32, #tpu.memory_space<vmem>>, vector<6x6xf32>
    tpu.vector_store %arg9[%c60_75, %c0_76], %109 {strides = array<i32>} : memref<86x6xf32, #tpu.memory_space<vmem>>, vector<6x6xf32>,
    %c375 = arith.constant 375 : index
    %c0_77 = arith.constant 0 : index
    %111 = tpu.strided_load %arg8[%c375, %c0_77] {strides = array<i32: 2, 1>} : memref<450x6xf32, #tpu.memory_space<vmem>>, vector<6x6xf32>
    %c376 = arith.constant 376 : index
    %c0_78 = arith.constant 0 : index
    %112 = tpu.strided_load %arg8[%c376, %c0_78] {strides = array<i32: 2, 1>} : memref<450x6xf32, #tpu.memory_space<vmem>>, vector<6x6xf32>
    %113 = arith.maximumf %111, %112 : vector<6x6xf32>
    %c390 = arith.constant 390 : index
    %c0_79 = arith.constant 0 : index
    %114 = tpu.strided_load %arg8[%c390, %c0_79] {strides = array<i32: 2, 1>} : memref<450x6xf32, #tpu.memory_space<vmem>>, vector<6x6xf32>
    %115 = arith.maximumf %113, %114 : vector<6x6xf32>
    %c391 = arith.constant 391 : index
    %c0_80 = arith.constant 0 : index
    %116 = tpu.strided_load %arg8[%c391, %c0_80] {strides = array<i32: 2, 1>} : memref<450x6xf32, #tpu.memory_space<vmem>>, vector<6x6xf32>
    %117 = arith.maximumf %115, %116 : vector<6x6xf32>
    %c66 = arith.constant 66 : index
    %c0_81 = arith.constant 0 : index
    %118 = vector.load %arg9[%c66, %c0_81] : memref<86x6xf32, #tpu.memory_space<vmem>>, vector<6x6xf32>
    tpu.vector_store %arg9[%c66, %c0_81], %117 {strides = array<i32>} : memref<86x6xf32, #tpu.memory_space<vmem>>, vector<6x6xf32>,
    %cst_82 = arith.constant 0.000000e+00 : f32
    %119 = vector.broadcast %cst_82 : f32 to vector<14x6xf32>
    %c72 = arith.constant 72 : index
    %c0_83 = arith.constant 0 : index
    %120 = vector.load %arg9[%c72, %c0_83] : memref<86x6xf32, #tpu.memory_space<vmem>>, vector<14x6xf32>
    tpu.vector_store %arg9[%c72, %c0_83], %119 {strides = array<i32>} : memref<86x6xf32, #tpu.memory_space<vmem>>, vector<14x6xf32>,
    %c1_84 = arith.constant 1 : index
    %c0_85 = arith.constant 0 : index
    %121 = vector.load %arg6[%c1_84, %c0_85] : memref<8x128xf32, #tpu.memory_space<vmem>>, vector<1x16xf32>
    %c0_86 = arith.constant 0 : index
    %c0_87 = arith.constant 0 : index
    %122 = vector.load %arg9[%c0_86, %c0_87] : memref<86x6xf32, #tpu.memory_space<vmem>>, vector<72x6xf32>
    %c0_88 = arith.constant 0 : index
    %c0_89 = arith.constant 0 : index
    %123 = vector.load %arg3[%c0_88, %c0_89] : memref<54x16xf32, #tpu.memory_space<vmem>>, vector<6x16xf32>
    %cst_90 = arith.constant dense<0.000000e+00> : vector<72x16xf32>
    %124 = tpu.matmul %122, %123, %cst_90 {dimension_numbers = #tpu.dot_dimension_numbers<[1], [0], [0], [1], [0, 0, 1, 1], [], []>} : vector<72x6xf32>, vector<6x16xf32>, vector<72x16xf32> -> vector<72x16xf32>
    %c1_91 = arith.constant 1 : index
    %c0_92 = arith.constant 0 : index
    %125 = vector.load %arg9[%c1_91, %c0_92] : memref<86x6xf32, #tpu.memory_space<vmem>>, vector<72x6xf32>
    %c6_93 = arith.constant 6 : index
    %c0_94 = arith.constant 0 : index
    %126 = vector.load %arg3[%c6_93, %c0_94] : memref<54x16xf32, #tpu.memory_space<vmem>>, vector<6x16xf32>
    %cst_95 = arith.constant dense<0.000000e+00> : vector<72x16xf32>
    %127 = tpu.matmul %125, %126, %cst_95 {dimension_numbers = #tpu.dot_dimension_numbers<[1], [0], [0], [1], [0, 0, 1, 1], [], []>} : vector<72x6xf32>, vector<6x16xf32>, vector<72x16xf32> -> vector<72x16xf32>
    %128 = arith.addf %124, %127 : vector<72x16xf32>
    %c2 = arith.constant 2 : index
    %c0_96 = arith.constant 0 : index
    %129 = vector.load %arg9[%c2, %c0_96] : memref<86x6xf32, #tpu.memory_space<vmem>>, vector<72x6xf32>
    %c12_97 = arith.constant 12 : index
    %c0_98 = arith.constant 0 : index
    %130 = vector.load %arg3[%c12_97, %c0_98] : memref<54x16xf32, #tpu.memory_space<vmem>>, vector<6x16xf32>
    %cst_99 = arith.constant dense<0.000000e+00> : vector<72x16xf32>
    %131 = tpu.matmul %129, %130, %cst_99 {dimension_numbers = #tpu.dot_dimension_numbers<[1], [0], [0], [1], [0, 0, 1, 1], [], []>} : vector<72x6xf32>, vector<6x16xf32>, vector<72x16xf32> -> vector<72x16xf32>
    %132 = arith.addf %128, %131 : vector<72x16xf32>
    %c6_100 = arith.constant 6 : index
    %c0_101 = arith.constant 0 : index
    %133 = vector.load %arg9[%c6_100, %c0_101] : memref<86x6xf32, #tpu.memory_space<vmem>>, vector<72x6xf32>
    %c18_102 = arith.constant 18 : index
    %c0_103 = arith.constant 0 : index
    %134 = vector.load %arg3[%c18_102, %c0_103] : memref<54x16xf32, #tpu.memory_space<vmem>>, vector<6x16xf32>
    %cst_104 = arith.constant dense<0.000000e+00> : vector<72x16xf32>
    %135 = tpu.matmul %133, %134, %cst_104 {dimension_numbers = #tpu.dot_dimension_numbers<[1], [0], [0], [1], [0, 0, 1, 1], [], []>} : vector<72x6xf32>, vector<6x16xf32>, vector<72x16xf32> -> vector<72x16xf32>
    %136 = arith.addf %132, %135 : vector<72x16xf32>
    %c7 = arith.constant 7 : index
    %c0_105 = arith.constant 0 : index
    %137 = vector.load %arg9[%c7, %c0_105] : memref<86x6xf32, #tpu.memory_space<vmem>>, vector<72x6xf32>
    %c24_106 = arith.constant 24 : index
    %c0_107 = arith.constant 0 : index
    %138 = vector.load %arg3[%c24_106, %c0_107] : memref<54x16xf32, #tpu.memory_space<vmem>>, vector<6x16xf32>
    %cst_108 = arith.constant dense<0.000000e+00> : vector<72x16xf32>
    %139 = tpu.matmul %137, %138, %cst_108 {dimension_numbers = #tpu.dot_dimension_numbers<[1], [0], [0], [1], [0, 0, 1, 1], [], []>} : vector<72x6xf32>, vector<6x16xf32>, vector<72x16xf32> -> vector<72x16xf32>
    %140 = arith.addf %136, %139 : vector<72x16xf32>
    %c8 = arith.constant 8 : index
    %c0_109 = arith.constant 0 : index
    %141 = vector.load %arg9[%c8, %c0_109] : memref<86x6xf32, #tpu.memory_space<vmem>>, vector<72x6xf32>
    %c30_110 = arith.constant 30 : index
    %c0_111 = arith.constant 0 : index
    %142 = vector.load %arg3[%c30_110, %c0_111] : memref<54x16xf32, #tpu.memory_space<vmem>>, vector<6x16xf32>
    %cst_112 = arith.constant dense<0.000000e+00> : vector<72x16xf32>
    %143 = tpu.matmul %141, %142, %cst_112 {dimension_numbers = #tpu.dot_dimension_numbers<[1], [0], [0], [1], [0, 0, 1, 1], [], []>} : vector<72x6xf32>, vector<6x16xf32>, vector<72x16xf32> -> vector<72x16xf32>
    %144 = arith.addf %140, %143 : vector<72x16xf32>
    %c12_113 = arith.constant 12 : index
    %c0_114 = arith.constant 0 : index
    %145 = vector.load %arg9[%c12_113, %c0_114] : memref<86x6xf32, #tpu.memory_space<vmem>>, vector<72x6xf32>
    %c36_115 = arith.constant 36 : index
    %c0_116 = arith.constant 0 : index
    %146 = vector.load %arg3[%c36_115, %c0_116] : memref<54x16xf32, #tpu.memory_space<vmem>>, vector<6x16xf32>
    %cst_117 = arith.constant dense<0.000000e+00> : vector<72x16xf32>
    %147 = tpu.matmul %145, %146, %cst_117 {dimension_numbers = #tpu.dot_dimension_numbers<[1], [0], [0], [1], [0, 0, 1, 1], [], []>} : vector<72x6xf32>, vector<6x16xf32>, vector<72x16xf32> -> vector<72x16xf32>
    %148 = arith.addf %144, %147 : vector<72x16xf32>
    %c13 = arith.constant 13 : index
    %c0_118 = arith.constant 0 : index
    %149 = vector.load %arg9[%c13, %c0_118] : memref<86x6xf32, #tpu.memory_space<vmem>>, vector<72x6xf32>
    %c42_119 = arith.constant 42 : index
    %c0_120 = arith.constant 0 : index
    %150 = vector.load %arg3[%c42_119, %c0_120] : memref<54x16xf32, #tpu.memory_space<vmem>>, vector<6x16xf32>
    %cst_121 = arith.constant dense<0.000000e+00> : vector<72x16xf32>
    %151 = tpu.matmul %149, %150, %cst_121 {dimension_numbers = #tpu.dot_dimension_numbers<[1], [0], [0], [1], [0, 0, 1, 1], [], []>} : vector<72x6xf32>, vector<6x16xf32>, vector<72x16xf32> -> vector<72x16xf32>
    %152 = arith.addf %148, %151 : vector<72x16xf32>
    %c14 = arith.constant 14 : index
    %c0_122 = arith.constant 0 : index
    %153 = vector.load %arg9[%c14, %c0_122] : memref<86x6xf32, #tpu.memory_space<vmem>>, vector<72x6xf32>
    %c48_123 = arith.constant 48 : index
    %c0_124 = arith.constant 0 : index
    %154 = vector.load %arg3[%c48_123, %c0_124] : memref<54x16xf32, #tpu.memory_space<vmem>>, vector<6x16xf32>
    %cst_125 = arith.constant dense<0.000000e+00> : vector<72x16xf32>
    %155 = tpu.matmul %153, %154, %cst_125 {dimension_numbers = #tpu.dot_dimension_numbers<[1], [0], [0], [1], [0, 0, 1, 1], [], []>} : vector<72x6xf32>, vector<6x16xf32>, vector<72x16xf32> -> vector<72x16xf32>
    %156 = arith.addf %152, %155 : vector<72x16xf32>
    %157 = vector.broadcast %121 : vector<1x16xf32> to vector<72x16xf32>
    %158 = arith.addf %156, %157 : vector<72x16xf32>
    %cst_126 = arith.constant 0.000000e+00 : f32
    %159 = vector.broadcast %cst_126 : f32 to vector<72x16xf32>
    %160 = arith.maximumf %158, %159 : vector<72x16xf32>
    %c0_127 = arith.constant 0 : index
    %c0_128 = arith.constant 0 : index
    %161 = vector.load %arg10[%c0_127, %c0_128] : memref<72x16xf32, #tpu.memory_space<vmem>>, vector<72x16xf32>
    tpu.vector_store %arg10[%c0_127, %c0_128], %160 {strides = array<i32>} : memref<72x16xf32, #tpu.memory_space<vmem>>, vector<72x16xf32>,
    %c0_129 = arith.constant 0 : index
    %c0_130 = arith.constant 0 : index
    %162 = vector.load %arg10[%c0_129, %c0_130] : memref<72x16xf32, #tpu.memory_space<vmem>>, vector<2x16xf32>
    %c6_131 = arith.constant 6 : index
    %c0_132 = arith.constant 0 : index
    %163 = vector.load %arg10[%c6_131, %c0_132] : memref<72x16xf32, #tpu.memory_space<vmem>>, vector<2x16xf32>
    %164 = arith.maximumf %162, %163 : vector<2x16xf32>
    %cst_133 = arith.constant dense<0xFF800000> : vector<16xf32>
    %165 = vector.multi_reduction <maximumf>, %164, %cst_133 [0] : vector<2x16xf32> to vector<16xf32>
    %166 = vector.shape_cast %165 : vector<16xf32> to vector<1x16xf32>
    %c0_134 = arith.constant 0 : index
    %c0_135 = arith.constant 0 : index
    %167 = vector.load %arg11[%c0_134, %c0_135] : memref<2x65xf32, #tpu.memory_space<vmem>>, vector<1x16xf32>
    tpu.vector_store %arg11[%c0_134, %c0_135], %166 {strides = array<i32>} : memref<2x65xf32, #tpu.memory_space<vmem>>, vector<1x16xf32>,
    %c2_136 = arith.constant 2 : index
    %c0_137 = arith.constant 0 : index
    %168 = vector.load %arg10[%c2_136, %c0_137] : memref<72x16xf32, #tpu.memory_space<vmem>>, vector<2x16xf32>
    %c8_138 = arith.constant 8 : index
    %c0_139 = arith.constant 0 : index
    %169 = vector.load %arg10[%c8_138, %c0_139] : memref<72x16xf32, #tpu.memory_space<vmem>>, vector<2x16xf32>
    %170 = arith.maximumf %168, %169 : vector<2x16xf32>
    %cst_140 = arith.constant dense<0xFF800000> : vector<16xf32>
    %171 = vector.multi_reduction <maximumf>, %170, %cst_140 [0] : vector<2x16xf32> to vector<16xf32>
    %172 = vector.shape_cast %171 : vector<16xf32> to vector<1x16xf32>
    %c0_141 = arith.constant 0 : index
    %c16_142 = arith.constant 16 : index
    %173 = vector.load %arg11[%c0_141, %c16_142] : memref<2x65xf32, #tpu.memory_space<vmem>>, vector<1x16xf32>
    tpu.vector_store %arg11[%c0_141, %c16_142], %172 {strides = array<i32>} : memref<2x65xf32, #tpu.memory_space<vmem>>, vector<1x16xf32>,
    %c12_143 = arith.constant 12 : index
    %c0_144 = arith.constant 0 : index
    %174 = vector.load %arg10[%c12_143, %c0_144] : memref<72x16xf32, #tpu.memory_space<vmem>>, vector<2x16xf32>
    %c18_145 = arith.constant 18 : index
    %c0_146 = arith.constant 0 : index
    %175 = vector.load %arg10[%c18_145, %c0_146] : memref<72x16xf32, #tpu.memory_space<vmem>>, vector<2x16xf32>
    %176 = arith.maximumf %174, %175 : vector<2x16xf32>
    %cst_147 = arith.constant dense<0xFF800000> : vector<16xf32>
    %177 = vector.multi_reduction <maximumf>, %176, %cst_147 [0] : vector<2x16xf32> to vector<16xf32>
    %178 = vector.shape_cast %177 : vector<16xf32> to vector<1x16xf32>
    %c0_148 = arith.constant 0 : index
    %c32 = arith.constant 32 : index
    %179 = vector.load %arg11[%c0_148, %c32] : memref<2x65xf32, #tpu.memory_space<vmem>>, vector<1x16xf32>
    tpu.vector_store %arg11[%c0_148, %c32], %178 {strides = array<i32>} : memref<2x65xf32, #tpu.memory_space<vmem>>, vector<1x16xf32>,
    %c14_149 = arith.constant 14 : index
    %c0_150 = arith.constant 0 : index
    %180 = vector.load %arg10[%c14_149, %c0_150] : memref<72x16xf32, #tpu.memory_space<vmem>>, vector<2x16xf32>
    %c20 = arith.constant 20 : index
    %c0_151 = arith.constant 0 : index
    %181 = vector.load %arg10[%c20, %c0_151] : memref<72x16xf32, #tpu.memory_space<vmem>>, vector<2x16xf32>
    %182 = arith.maximumf %180, %181 : vector<2x16xf32>
    %cst_152 = arith.constant dense<0xFF800000> : vector<16xf32>
    %183 = vector.multi_reduction <maximumf>, %182, %cst_152 [0] : vector<2x16xf32> to vector<16xf32>
    %184 = vector.shape_cast %183 : vector<16xf32> to vector<1x16xf32>
    %c0_153 = arith.constant 0 : index
    %c48_154 = arith.constant 48 : index
    %185 = vector.load %arg11[%c0_153, %c48_154] : memref<2x65xf32, #tpu.memory_space<vmem>>, vector<1x16xf32>
    tpu.vector_store %arg11[%c0_153, %c48_154], %184 {strides = array<i32>} : memref<2x65xf32, #tpu.memory_space<vmem>>, vector<1x16xf32>,
    %c36_155 = arith.constant 36 : index
    %c0_156 = arith.constant 0 : index
    %186 = vector.load %arg10[%c36_155, %c0_156] : memref<72x16xf32, #tpu.memory_space<vmem>>, vector<2x16xf32>
    %c42_157 = arith.constant 42 : index
    %c0_158 = arith.constant 0 : index
    %187 = vector.load %arg10[%c42_157, %c0_158] : memref<72x16xf32, #tpu.memory_space<vmem>>, vector<2x16xf32>
    %188 = arith.maximumf %186, %187 : vector<2x16xf32>
    %cst_159 = arith.constant dense<0xFF800000> : vector<16xf32>
    %189 = vector.multi_reduction <maximumf>, %188, %cst_159 [0] : vector<2x16xf32> to vector<16xf32>
    %190 = vector.shape_cast %189 : vector<16xf32> to vector<1x16xf32>
    %c1_160 = arith.constant 1 : index
    %c0_161 = arith.constant 0 : index
    %191 = vector.load %arg11[%c1_160, %c0_161] : memref<2x65xf32, #tpu.memory_space<vmem>>, vector<1x16xf32>
    tpu.vector_store %arg11[%c1_160, %c0_161], %190 {strides = array<i32>} : memref<2x65xf32, #tpu.memory_space<vmem>>, vector<1x16xf32>,
    %c38 = arith.constant 38 : index
    %c0_162 = arith.constant 0 : index
    %192 = vector.load %arg10[%c38, %c0_162] : memref<72x16xf32, #tpu.memory_space<vmem>>, vector<2x16xf32>
    %c44 = arith.constant 44 : index
    %c0_163 = arith.constant 0 : index
    %193 = vector.load %arg10[%c44, %c0_163] : memref<72x16xf32, #tpu.memory_space<vmem>>, vector<2x16xf32>
    %194 = arith.maximumf %192, %193 : vector<2x16xf32>
    %cst_164 = arith.constant dense<0xFF800000> : vector<16xf32>
    %195 = vector.multi_reduction <maximumf>, %194, %cst_164 [0] : vector<2x16xf32> to vector<16xf32>
    %196 = vector.shape_cast %195 : vector<16xf32> to vector<1x16xf32>
    %c1_165 = arith.constant 1 : index
    %c16_166 = arith.constant 16 : index
    %197 = vector.load %arg11[%c1_165, %c16_166] : memref<2x65xf32, #tpu.memory_space<vmem>>, vector<1x16xf32>
    tpu.vector_store %arg11[%c1_165, %c16_166], %196 {strides = array<i32>} : memref<2x65xf32, #tpu.memory_space<vmem>>, vector<1x16xf32>,
    %c48_167 = arith.constant 48 : index
    %c0_168 = arith.constant 0 : index
    %198 = vector.load %arg10[%c48_167, %c0_168] : memref<72x16xf32, #tpu.memory_space<vmem>>, vector<2x16xf32>
    %c54_169 = arith.constant 54 : index
    %c0_170 = arith.constant 0 : index
    %199 = vector.load %arg10[%c54_169, %c0_170] : memref<72x16xf32, #tpu.memory_space<vmem>>, vector<2x16xf32>
    %200 = arith.maximumf %198, %199 : vector<2x16xf32>
    %cst_171 = arith.constant dense<0xFF800000> : vector<16xf32>
    %201 = vector.multi_reduction <maximumf>, %200, %cst_171 [0] : vector<2x16xf32> to vector<16xf32>
    %202 = vector.shape_cast %201 : vector<16xf32> to vector<1x16xf32>
    %c1_172 = arith.constant 1 : index
    %c32_173 = arith.constant 32 : index
    %203 = vector.load %arg11[%c1_172, %c32_173] : memref<2x65xf32, #tpu.memory_space<vmem>>, vector<1x16xf32>
    tpu.vector_store %arg11[%c1_172, %c32_173], %202 {strides = array<i32>} : memref<2x65xf32, #tpu.memory_space<vmem>>, vector<1x16xf32>,
    %c50 = arith.constant 50 : index
    %c0_174 = arith.constant 0 : index
    %204 = vector.load %arg10[%c50, %c0_174] : memref<72x16xf32, #tpu.memory_space<vmem>>, vector<2x16xf32>
    %c56 = arith.constant 56 : index
    %c0_175 = arith.constant 0 : index
    %205 = vector.load %arg10[%c56, %c0_175] : memref<72x16xf32, #tpu.memory_space<vmem>>, vector<2x16xf32>
    %206 = arith.maximumf %204, %205 : vector<2x16xf32>
    %cst_176 = arith.constant dense<0xFF800000> : vector<16xf32>
    %207 = vector.multi_reduction <maximumf>, %206, %cst_176 [0] : vector<2x16xf32> to vector<16xf32>
    %208 = vector.shape_cast %207 : vector<16xf32> to vector<1x16xf32>
    %c1_177 = arith.constant 1 : index
    %c48_178 = arith.constant 48 : index
    %209 = vector.load %arg11[%c1_177, %c48_178] : memref<2x65xf32, #tpu.memory_space<vmem>>, vector<1x16xf32>
    tpu.vector_store %arg11[%c1_177, %c48_178], %208 {strides = array<i32>} : memref<2x65xf32, #tpu.memory_space<vmem>>, vector<1x16xf32>,
    %c0_179 = arith.constant 0 : index
    %c0_180 = arith.constant 0 : index
    %210 = vector.load %arg1[%c0_179, %c0_180] : memref<2x1xf32, #tpu.memory_space<vmem>>, vector<2x1xf32>
    %c0_181 = arith.constant 0 : index
    %c64 = arith.constant 64 : index
    %211 = vector.load %arg11[%c0_181, %c64] : memref<2x65xf32, #tpu.memory_space<vmem>>, vector<2x1xf32>
    tpu.vector_store %arg11[%c0_181, %c64], %210 {strides = array<i32>} : memref<2x65xf32, #tpu.memory_space<vmem>>, vector<2x1xf32>,
    %c2_182 = arith.constant 2 : index
    %c0_183 = arith.constant 0 : index
    %212 = vector.load %arg6[%c2_182, %c0_183] : memref<8x128xf32, #tpu.memory_space<vmem>>, vector<1x32xf32>
    %c3 = arith.constant 3 : index
    %c0_184 = arith.constant 0 : index
    %213 = vector.load %arg6[%c3, %c0_184] : memref<8x128xf32, #tpu.memory_space<vmem>>, vector<1x16xf32>
    %c4 = arith.constant 4 : index
    %c0_185 = arith.constant 0 : index
    %214 = vector.load %arg6[%c4, %c0_185] : memref<8x128xf32, #tpu.memory_space<vmem>>, vector<1x16xf32>
    %c5 = arith.constant 5 : index
    %c0_186 = arith.constant 0 : index
    %215 = vector.load %arg6[%c5, %c0_186] : memref<8x128xf32, #tpu.memory_space<vmem>>, vector<1x1xf32>
    %c0_187 = arith.constant 0 : index
    %c0_188 = arith.constant 0 : index
    %216 = vector.load %arg11[%c0_187, %c0_188] : memref<2x65xf32, #tpu.memory_space<vmem>>, vector<2x65xf32>
    %c0_189 = arith.constant 0 : index
    %c0_190 = arith.constant 0 : index
    %217 = vector.load %arg4[%c0_189, %c0_190] : memref<65x32xf32, #tpu.memory_space<vmem>>, vector<65x32xf32>
    %cst_191 = arith.constant dense<0.000000e+00> : vector<2x32xf32>
    %218 = tpu.matmul %216, %217, %cst_191 {dimension_numbers = #tpu.dot_dimension_numbers<[1], [0], [0], [1], [0, 0, 1, 1], [], []>} : vector<2x65xf32>, vector<65x32xf32>, vector<2x32xf32> -> vector<2x32xf32>
    %219 = vector.broadcast %212 : vector<1x32xf32> to vector<2x32xf32>
    %220 = arith.addf %218, %219 : vector<2x32xf32>
    %cst_192 = arith.constant 0.000000e+00 : f32
    %221 = vector.broadcast %cst_192 : f32 to vector<2x32xf32>
    %222 = arith.maximumf %220, %221 : vector<2x32xf32>
    %c0_193 = arith.constant 0 : index
    %c0_194 = arith.constant 0 : index
    %223 = vector.load %arg5[%c0_193, %c0_194] : memref<32x16xf32, #tpu.memory_space<vmem>>, vector<32x16xf32>
    %cst_195 = arith.constant dense<0.000000e+00> : vector<2x16xf32>
    %224 = tpu.matmul %222, %223, %cst_195 {dimension_numbers = #tpu.dot_dimension_numbers<[1], [0], [0], [1], [0, 0, 1, 1], [], []>} : vector<2x32xf32>, vector<32x16xf32>, vector<2x16xf32> -> vector<2x16xf32>
    %225 = vector.broadcast %213 : vector<1x16xf32> to vector<2x16xf32>
    %226 = arith.addf %224, %225 : vector<2x16xf32>
    %cst_196 = arith.constant 0.000000e+00 : f32
    %227 = vector.broadcast %cst_196 : f32 to vector<2x16xf32>
    %228 = arith.maximumf %226, %227 : vector<2x16xf32>
    %229 = vector.broadcast %214 : vector<1x16xf32> to vector<2x16xf32>
    %230 = arith.mulf %228, %229 : vector<2x16xf32>
    %cst_197 = arith.constant dense<0.000000e+00> : vector<2xf32>
    %231 = vector.multi_reduction <add>, %230, %cst_197 [1] : vector<2x16xf32> to vector<2xf32>
    %232 = vector.shape_cast %231 : vector<2xf32> to vector<2x1xf32>
    %233 = vector.broadcast %215 : vector<1x1xf32> to vector<2x1xf32>
    %234 = arith.addf %232, %233 : vector<2x1xf32>
    %235 = math.absf %234 : vector<2x1xf32>
    %cst_198 = arith.constant 0.000000e+00 : f32
    %236 = vector.broadcast %cst_198 : f32 to vector<2x1xf32>
    %237 = arith.subf %236, %235 : vector<2x1xf32>
    %238 = math.exp %237 : vector<2x1xf32>
    %cst_199 = arith.constant 0.000000e+00 : f32
    %239 = vector.broadcast %cst_199 : f32 to vector<2x1xf32>
    %240 = arith.cmpf oge, %234, %239 : vector<2x1xf32>
    %cst_200 = arith.constant 1.000000e+00 : f32
    %241 = vector.broadcast %cst_200 : f32 to vector<2x1xf32>
    %242 = arith.addf %241, %238 : vector<2x1xf32>
    %cst_201 = arith.constant 1.000000e+00 : f32
    %243 = vector.broadcast %cst_201 : f32 to vector<2x1xf32>
    %244 = arith.divf %243, %242 : vector<2x1xf32>
    %cst_202 = arith.constant 1.000000e+00 : f32
    %245 = vector.broadcast %cst_202 : f32 to vector<2x1xf32>
    %246 = arith.addf %245, %238 : vector<2x1xf32>
    %247 = arith.divf %238, %246 : vector<2x1xf32>
    %248 = arith.select %240, %244, %247 : vector<2x1xi1>, vector<2x1xf32>
    %c0_203 = arith.constant 0 : index
    %c0_204 = arith.constant 0 : index
    %249 = vector.load %arg7[%c0_203, %c0_204] : memref<2x1xf32, #tpu.memory_space<vmem>>, vector<2x1xf32>
    tpu.vector_store %arg7[%c0_203, %c0_204], %248 {strides = array<i32>} : memref<2x1xf32, #tpu.memory_space<vmem>>, vector<2x1xf32>,
    return
  }
}

</mosaic_0001>

<llo_original>
// kernel: forward.1
$region0: #{forward.1}
  #allocation0 [shape = 'u32[]', space=smem, size = 0x4, offset = 0x4, fixed_abs, tag = 'smem constant byte address 0x4 - core index']
  #allocation1 [shape = 'u32[144,128]{1,0:T(1,128)}', space=vmem, size = 0x12000, scoped, tag = 'internal scratch']
  #allocation2 [shape = 'f32[450,6]{1,0:T(8,128)}', space=vmem, size = 0x39000, scoped, tag = 'scratch operand']
  #allocation3 [shape = 'f32[86,6]{1,0:T(8,128)}', space=vmem, size = 0xb000, scoped, tag = 'scratch operand']
  #allocation4 [shape = 'f32[72,16]{1,0:T(8,128)}', space=vmem, size = 0x9000, scoped, tag = 'scratch operand']
  #allocation5 [shape = 'f32[2,65]{1,0:T(2,128)}', space=vmem, size = 0x400, scoped, tag = 'scratch operand']
  %s0 = inlined_call_operand.vmem [shape: f32[450,36], index: 0, kind: input, shape index: {}]
  %s1 = inlined_call_operand.vmem [shape: f32[2,1], index: 1, kind: input, shape index: {}]
  %s2 = inlined_call_operand.vmem [shape: f32[36,6], index: 2, kind: input, shape index: {}]
  %s3 = inlined_call_operand.vmem [shape: f32[54,16], index: 3, kind: input, shape index: {}]
  %s4 = inlined_call_operand.vmem [shape: f32[65,32], index: 4, kind: input, shape index: {}]
  %s5 = inlined_call_operand.vmem [shape: f32[32,16], index: 5, kind: input, shape index: {}]
  %s6 = inlined_call_operand.vmem [shape: f32[8,128], index: 6, kind: input, shape index: {}]
  %s7 = inlined_call_operand.vmem [shape: f32[2,1], index: 7, kind: output, shape index: {}]
  %s8 = sld [smem:[#allocation0]]
  $region38: #{forward.1} parent=0
    _
  %s10 = ssub.s32 1, %s8
  %s11 = scalar_select 0, %s10, %s8
  // Predicated region
  $region2: #{forward.1} parent=0 // pred_check
    _
  $region3: #{forward.1} parent=0 // pred_check_branch
    %13 = sbr.rel (0) target = $region5
  $region4: #{forward.1} parent=0 // pred_region
    _
  $region5: #{forward.1} parent=0 // pred_fallthru
    _
  // Predicated region
  $region6: #{forward.1} parent=0 // pred_check
    _
  $region7: #{forward.1} parent=0 // pred_check_branch
    %15 = sbr.rel (0) target = $region9
  $region8: #{forward.1} parent=0 // pred_region
    _
  $region9: #{forward.1} parent=0 // pred_fallthru
    _
  // Predicated region
  $region10: #{forward.1} parent=0 // pred_check
    _
  $region11: #{forward.1} parent=0 // pred_check_branch
    %17 = sbr.rel (0) target = $region13
  $region12: #{forward.1} parent=0 // pred_region
    _
  $region13: #{forward.1} parent=0 // pred_fallthru
    _
  // Predicated region
  $region14: #{forward.1} parent=0 // pred_check
    _
  $region15: #{forward.1} parent=0 // pred_check_branch
    %19 = sbr.rel (0) target = $region17
  $region16: #{forward.1} parent=0 // pred_region
    _
  $region17: #{forward.1} parent=0 // pred_fallthru
    _
  // Predicated region
  $region18: #{forward.1} parent=0 // pred_check
    _
  $region19: #{forward.1} parent=0 // pred_check_branch
    %21 = sbr.rel (0) target = $region21
  $region20: #{forward.1} parent=0 // pred_region
    _
  $region21: #{forward.1} parent=0 // pred_fallthru
    _
  // Predicated region
  $region22: #{forward.1} parent=0 // pred_check
    _
  $region23: #{forward.1} parent=0 // pred_check_branch
    %23 = sbr.rel (0) target = $region25
  $region24: #{forward.1} parent=0 // pred_region
    _
  $region25: #{forward.1} parent=0 // pred_fallthru
    _
  // Predicated region
  $region26: #{forward.1} parent=0 // pred_check
    _
  $region27: #{forward.1} parent=0 // pred_check_branch
    %25 = sbr.rel (0) target = $region29
  $region28: #{forward.1} parent=0 // pred_region
    _
  $region29: #{forward.1} parent=0 // pred_fallthru
    _
  %v26 = vld [vmem:[%s2] sm:$0xff]
  %v27 = vld [vmem:[%s2 + $0x8] sm:$0xff]
  %v28 = vld [vmem:[%s2 + $0x10] sm:$0xff]
  %v29 = vld [vmem:[%s2 + $0x18] sm:$0xff]
  %v30 = vld [vmem:[%s2 + $0x20] sm:$0xf]
  %v31 = vld [vmem:[%s6] sm:$0x1]
  %v32 = vld [vmem:[%s0] sm:$0xff]
  %v33 = vld [vmem:[%s0 + $0x8] sm:$0xff]
  %v34 = vld [vmem:[%s0 + $0x10] sm:$0xff]
  %v35 = vld [vmem:[%s0 + $0x18] sm:$0xff]
  %v36 = vld [vmem:[%s0 + $0x20] sm:$0xff]
  %v37 = vld [vmem:[%s0 + $0x28] sm:$0xff]
  %v38 = vld [vmem:[%s0 + $0x30] sm:$0xff]
  %v39 = vld [vmem:[%s0 + $0x38] sm:$0xff]
  %v40 = vld [vmem:[%s0 + $0x40] sm:$0xff]
  %v41 = vld [vmem:[%s0 + $0x48] sm:$0xff]
  %v42 = vld [vmem:[%s0 + $0x50] sm:$0xff]
  %v43 = vld [vmem:[%s0 + $0x58] sm:$0xff]
  %v44 = vld [vmem:[%s0 + $0x60] sm:$0xff]
  %v45 = vld [vmem:[%s0 + $0x68] sm:$0xff]
  %v46 = vld [vmem:[%s0 + $0x70] sm:$0xff]
  %v47 = vld [vmem:[%s0 + $0x78] sm:$0xff]
  %v48 = vld [vmem:[%s0 + $0x80] sm:$0xff]
  %v49 = vld [vmem:[%s0 + $0x88] sm:$0xff]
  %v50 = vld [vmem:[%s0 + $0x90] sm:$0xff]
  %v51 = vld [vmem:[%s0 + $0x98] sm:$0xff]
  %v52 = vlaneseq
  %v53 = vshrl.u32 %v52, 7
  %v54 = vsub.s32 0, %v53
  %v55 = vrot.slane %v31, %v54
  %vm56 = vcmask 293888
  %v58 = vsel %vm56, %v32, 0
  %v61 = vsel %vm56, %v33, 0
  %v64 = vsel %vm56, %v34, 0
  %v67 = vsel %vm56, %v35, 0
  %v70 = vsel %vm56, %v36, 0
  %v73 = vsel %vm56, %v37, 0
  %v76 = vsel %vm56, %v38, 0
  %v79 = vsel %vm56, %v39, 0
  %v82 = vsel %vm56, %v40, 0
  %v85 = vsel %vm56, %v41, 0
  %v88 = vsel %vm56, %v42, 0
  %v91 = vsel %vm56, %v43, 0
  %v94 = vsel %vm56, %v44, 0
  %v97 = vsel %vm56, %v45, 0
  %v100 = vsel %vm56, %v46, 0
  %v103 = vsel %vm56, %v47, 0
  %v106 = vsel %vm56, %v48, 0
  %v109 = vsel %vm56, %v49, 0
  %v112 = vsel %vm56, %v50, 0
  %v115 = vsel %vm56, %v51, 0
  %vm117 = vcmask 1043456
  %v119 = vsel %vm117, %v30, 0
  %121 = vmatprep.subr.mxu0 0.0
  %122 = vmatpush1.msra.mxu0 0.0
  %123 = vmatprep.subr.mxu0 0.0
  %124 = vmatpush1.msra.mxu0 0.0
  %125 = vmatprep.subr.mxu0 0.0
  %126 = vmatpush1.msra.mxu0 0.0
  %127 = vmatprep.subr.mxu0 0.0
  %128 = vmatpush1.msra.mxu0 0.0
  %129 = vmatprep.subr.mxu0 0.0
  %130 = vmatpush1.msra.mxu0 0.0
  %131 = vmatprep.subr.mxu0 0.0
  %132 = vmatpush1.msra.mxu0 0.0
  %133 = vmatprep.subr.mxu0 0.0
  %134 = vmatpush1.msra.mxu0 0.0
  %135 = vmatprep.subr.mxu0 0.0
  %136 = vmatpush1.msra.mxu0 0.0
  %137 = vmatprep.subr.mxu0 0.0
  %138 = vmatpush1.msra.mxu0 0.0
  %139 = vmatprep.subr.mxu0 0.0
  %140 = vmatpush1.msra.mxu0 0.0
  %141 = vmatprep.subr.mxu0 0.0
  %142 = vmatpush1.msra.mxu0 0.0
  %143 = vmatprep.subr.mxu0 0.0
  %144 = vmatpush1.msra.mxu0 %v119
  %145 = vmatprep.subr.mxu0 0.0
  %146 = vmatpush1.msra.mxu0 %v29
  %147 = vmatprep.subr.mxu0 0.0
  %148 = vmatpush1.msra.mxu0 %v28
  %149 = vmatprep.subr.mxu0 0.0
  %150 = vmatpush1.msra.mxu0 %v27
  %151 = vmatprep.subr.mxu0 0.0
  %152 = vmatpush1.msra.mxu0 %v26
  %153 = vmatprep.subr.mxu0 0.0
  %154 = vmatpush2.msra.mxu0 0.0
  %155 = vmatprep.subr.mxu0 0.0
  %156 = vmatpush2.msra.mxu0 0.0
  %157 = vmatprep.subr.mxu0 0.0
  %158 = vmatpush2.msra.mxu0 0.0
  %159 = vmatprep.subr.mxu0 0.0
  %160 = vmatpush2.msra.mxu0 0.0
  %161 = vmatprep.subr.mxu0 0.0
  %162 = vmatpush2.msra.mxu0 0.0
  %163 = vmatprep.subr.mxu0 0.0
  %164 = vmatpush2.msra.mxu0 0.0
  %165 = vmatprep.subr.mxu0 0.0
  %166 = vmatpush2.msra.mxu0 0.0
  %167 = vmatprep.subr.mxu0 0.0
  %168 = vmatpush2.msra.mxu0 0.0
  %169 = vmatprep.subr.mxu0 0.0
  %170 = vmatpush2.msra.mxu0 0.0
  %171 = vmatprep.subr.mxu0 0.0
  %172 = vmatpush2.msra.mxu0 0.0
  %173 = vmatprep.subr.mxu0 0.0
  %174 = vmatpush2.msra.mxu0 0.0
  %175 = vmatprep.subr.mxu0 0.0
  %176 = vmatpush2.msra.mxu0 0.0
  %177 = vmatprep.subr.mxu0 0.0
  %178 = vmatpush2.msra.mxu0 0.0
  %179 = vmatprep.subr.mxu0 0.0
  %180 = vmatpush2.msra.mxu0 0.0
  %181 = vmatprep.subr.mxu0 0.0
  %182 = vmatpush2.msra.mxu0 0.0
  %183 = vmatprep.subr.mxu0 0.0
  %184 = vmatpush2.msra.mxu0 0.0
  %185 = vmatprep.mubr.f32.mxu0 0.0
  %186 = vmatmul.mubr.f32.gmra.mxu0 %v58
  %v187 = vpop.f32.mrf.mxu0
  %v188 = vadd.f32 %v55, %v187
  %v189 = vpop.f32.mrf.mxu0
  %190 = vmatprep.mubr.f32.mxu0 0.0
  %191 = vmatmul.mubr.f32.gmra.mxu0 %v61
  %v192 = vpop.f32.mrf.mxu0
  %v193 = vadd.f32 %v55, %v192
  %v194 = vpop.f32.mrf.mxu0
  %195 = vmatprep.mubr.f32.mxu0 0.0
  %196 = vmatmul.mubr.f32.gmra.mxu0 %v64
  %v197 = vpop.f32.mrf.mxu0
  %v198 = vadd.f32 %v55, %v197
  %v199 = vpop.f32.mrf.mxu0
  %200 = vmatprep.mubr.f32.mxu0 0.0
  %201 = vmatmul.mubr.f32.gmra.mxu0 %v67
  %v202 = vpop.f32.mrf.mxu0
  %v203 = vadd.f32 %v55, %v202
  %v204 = vpop.f32.mrf.mxu0
  %205 = vmatprep.mubr.f32.mxu0 0.0
  %206 = vmatmul.mubr.f32.gmra.mxu0 %v70
  %v207 = vpop.f32.mrf.mxu0
  %v208 = vadd.f32 %v55, %v207
  %v209 = vpop.f32.mrf.mxu0
  %210 = vmatprep.mubr.f32.mxu0 0.0
  %211 = vmatmul.mubr.f32.gmra.mxu0 %v73
  %v212 = vpop.f32.mrf.mxu0
  %v213 = vadd.f32 %v55, %v212
  %v214 = vpop.f32.mrf.mxu0
  %215 = vmatprep.mubr.f32.mxu0 0.0
  %216 = vmatmul.mubr.f32.gmra.mxu0 %v76
  %v217 = vpop.f32.mrf.mxu0
  %v218 = vadd.f32 %v55, %v217
  %v219 = vpop.f32.mrf.mxu0
  %220 = vmatprep.mubr.f32.mxu0 0.0
  %221 = vmatmul.mubr.f32.gmra.mxu0 %v79
  %v222 = vpop.f32.mrf.mxu0
  %v223 = vadd.f32 %v55, %v222
  %v224 = vpop.f32.mrf.mxu0
  %225 = vmatprep.mubr.f32.mxu0 0.0
  %226 = vmatmul.mubr.f32.gmra.mxu0 %v82
  %v227 = vpop.f32.mrf.mxu0
  %v228 = vadd.f32 %v55, %v227
  %v229 = vpop.f32.mrf.mxu0
  %230 = vmatprep.mubr.f32.mxu0 0.0
  %231 = vmatmul.mubr.f32.gmra.mxu0 %v85
  %v232 = vpop.f32.mrf.mxu0
  %v233 = vadd.f32 %v55, %v232
  %v234 = vpop.f32.mrf.mxu0
  %235 = vmatprep.mubr.f32.mxu0 0.0
  %236 = vmatmul.mubr.f32.gmra.mxu0 %v88
  %v237 = vpop.f32.mrf.mxu0
  %v238 = vadd.f32 %v55, %v237
  %v239 = vpop.f32.mrf.mxu0
  %240 = vmatprep.mubr.f32.mxu0 0.0
  %241 = vmatmul.mubr.f32.gmra.mxu0 %v91
  %v242 = vpop.f32.mrf.mxu0
  %v243 = vadd.f32 %v55, %v242
  %v244 = vpop.f32.mrf.mxu0
  %245 = vmatprep.mubr.f32.mxu0 0.0
  %246 = vmatmul.mubr.f32.gmra.mxu0 %v94
  %v247 = vpop.f32.mrf.mxu0
  %v248 = vadd.f32 %v55, %v247
  %v249 = vpop.f32.mrf.mxu0
  %250 = vmatprep.mubr.f32.mxu0 0.0
  %251 = vmatmul.mubr.f32.gmra.mxu0 %v97
  %v252 = vpop.f32.mrf.mxu0
  %v253 = vadd.f32 %v55, %v252
  %v254 = vpop.f32.mrf.mxu0
  %255 = vmatprep.mubr.f32.mxu0 0.0
  %256 = vmatmul.mubr.f32.gmra.mxu0 %v100
  %v257 = vpop.f32.mrf.mxu0
  %v258 = vadd.f32 %v55, %v257
  %v259 = vpop.f32.mrf.mxu0
  %260 = vmatprep.mubr.f32.mxu0 0.0
  %261 = vmatmul.mubr.f32.gmra.mxu0 %v103
  %v262 = vpop.f32.mrf.mxu0
  %v263 = vadd.f32 %v55, %v262
  %v264 = vpop.f32.mrf.mxu0
  %265 = vmatprep.mubr.f32.mxu0 0.0
  %266 = vmatmul.mubr.f32.gmra.mxu0 %v106
  %v267 = vpop.f32.mrf.mxu0
  %v268 = vadd.f32 %v55, %v267
  %v269 = vpop.f32.mrf.mxu0
  %270 = vmatprep.mubr.f32.mxu0 0.0
  %271 = vmatmul.mubr.f32.gmra.mxu0 %v109
  %v272 = vpop.f32.mrf.mxu0
  %v273 = vadd.f32 %v55, %v272
  %v274 = vpop.f32.mrf.mxu0
  %275 = vmatprep.mubr.f32.mxu0 0.0
  %276 = vmatmul.mubr.f32.gmra.mxu0 %v112
  %v277 = vpop.f32.mrf.mxu0
  %v278 = vadd.f32 %v55, %v277
  %v279 = vpop.f32.mrf.mxu0
  %280 = vmatprep.mubr.f32.mxu0 0.0
  %281 = vmatmul.mubr.f32.gmra.mxu0 %v115
  %v282 = vpop.f32.mrf.mxu0
  %v283 = vadd.f32 %v55, %v282
  %v284 = vpop.f32.mrf.mxu0
  %285 = vdwg.mxu0
  %v286 = vmax.f32 %v188, 0.0
  %v287 = vmax.f32 %v193, 0.0
  %v288 = vmax.f32 %v198, 0.0
  %v289 = vmax.f32 %v203, 0.0
  %v290 = vmax.f32 %v208, 0.0
  %v291 = vmax.f32 %v213, 0.0
  %v292 = vmax.f32 %v218, 0.0
  %v293 = vmax.f32 %v223, 0.0
  %v294 = vmax.f32 %v228, 0.0
  %v295 = vmax.f32 %v233, 0.0
  %v296 = vmax.f32 %v238, 0.0
  %v297 = vmax.f32 %v243, 0.0
  %v298 = vmax.f32 %v248, 0.0
  %v299 = vmax.f32 %v253, 0.0
  %v300 = vmax.f32 %v258, 0.0
  %v301 = vmax.f32 %v263, 0.0
  %v302 = vmax.f32 %v268, 0.0
  %v303 = vmax.f32 %v273, 0.0
  %v304 = vmax.f32 %v278, 0.0
  %v305 = vmax.f32 %v283, 0.0
  %vm306 = vcmask 48128
  %307 = vst.msk [vmem:[#allocation2] sm:$0xff] %vm306, %v286
  %308 = vst.msk [vmem:[#allocation2 + $0x8] sm:$0xff] %vm306, %v287
  %309 = vst.msk [vmem:[#allocation2 + $0x10] sm:$0xff] %vm306, %v288
  %310 = vst.msk [vmem:[#allocation2 + $0x18] sm:$0xff] %vm306, %v289
  %311 = vst.msk [vmem:[#allocation2 + $0x20] sm:$0xff] %vm306, %v290
  %312 = vst.msk [vmem:[#allocation2 + $0x28] sm:$0xff] %vm306, %v291
  %313 = vst.msk [vmem:[#allocation2 + $0x30] sm:$0xff] %vm306, %v292
  %314 = vst.msk [vmem:[#allocation2 + $0x38] sm:$0xff] %vm306, %v293
  %315 = vst.msk [vmem:[#allocation2 + $0x40] sm:$0xff] %vm306, %v294
  %316 = vst.msk [vmem:[#allocation2 + $0x48] sm:$0xff] %vm306, %v295
  %317 = vst.msk [vmem:[#allocation2 + $0x50] sm:$0xff] %vm306, %v296
  %318 = vst.msk [vmem:[#allocation2 + $0x58] sm:$0xff] %vm306, %v297
  %319 = vst.msk [vmem:[#allocation2 + $0x60] sm:$0xff] %vm306, %v298
  %320 = vst.msk [vmem:[#allocation2 + $0x68] sm:$0xff] %vm306, %v299
  %321 = vst.msk [vmem:[#allocation2 + $0x70] sm:$0xff] %vm306, %v300
  %322 = vst.msk [vmem:[#allocation2 + $0x78] sm:$0xff] %vm306, %v301
  %323 = vst.msk [vmem:[#allocation2 + $0x80] sm:$0xff] %vm306, %v302
  %324 = vst.msk [vmem:[#allocation2 + $0x88] sm:$0xff] %vm306, %v303
  %325 = vst.msk [vmem:[#allocation2 + $0x90] sm:$0xff] %vm306, %v304
  %326 = vst.msk [vmem:[#allocation2 + $0x98] sm:$0xff] %vm306, %v305
  %v327 = vld [vmem:[%s0 + $0xa0] sm:$0xff]
  %v328 = vld [vmem:[%s0 + $0xa8] sm:$0xff]
  %v329 = vld [vmem:[%s0 + $0xb0] sm:$0xff]
  %v330 = vld [vmem:[%s0 + $0xb8] sm:$0xff]
  %v331 = vld [vmem:[%s0 + $0xc0] sm:$0xff]
  %v332 = vld [vmem:[%s0 + $0xc8] sm:$0xff]
  %v333 = vld [vmem:[%s0 + $0xd0] sm:$0xff]
  %v334 = vld [vmem:[%s0 + $0xd8] sm:$0xff]
  %v335 = vld [vmem:[%s0 + $0xe0] sm:$0xff]
  %v336 = vld [vmem:[%s0 + $0xe8] sm:$0xff]
  %v337 = vld [vmem:[%s0 + $0xf0] sm:$0xff]
  %v338 = vld [vmem:[%s0 + $0xf8] sm:$0xff]
  %v339 = vld [vmem:[%s0 + $0x100] sm:$0xff]
  %v340 = vld [vmem:[%s0 + $0x108] sm:$0xff]
  %v341 = vld [vmem:[%s0 + $0x110] sm:$0xff]
  %v342 = vld [vmem:[%s0 + $0x118] sm:$0xff]
  %v343 = vld [vmem:[%s0 + $0x120] sm:$0xff]
  %v344 = vld [vmem:[%s0 + $0x128] sm:$0xff]
  %v345 = vld [vmem:[%s0 + $0x130] sm:$0xff]
  %v346 = vld [vmem:[%s0 + $0x138] sm:$0xff]
  %v348 = vsel %vm56, %v327, 0
  %v351 = vsel %vm56, %v328, 0
  %v354 = vsel %vm56, %v329, 0
  %v357 = vsel %vm56, %v330, 0
  %v360 = vsel %vm56, %v331, 0
  %v363 = vsel %vm56, %v332, 0
  %v366 = vsel %vm56, %v333, 0
  %v369 = vsel %vm56, %v334, 0
  %v372 = vsel %vm56, %v335, 0
  %v375 = vsel %vm56, %v336, 0
  %v378 = vsel %vm56, %v337, 0
  %v381 = vsel %vm56, %v338, 0
  %v384 = vsel %vm56, %v339, 0
  %v387 = vsel %vm56, %v340, 0
  %v390 = vsel %vm56, %v341, 0
  %v393 = vsel %vm56, %v342, 0
  %v396 = vsel %vm56, %v343, 0
  %v399 = vsel %vm56, %v344, 0
  %v402 = vsel %vm56, %v345, 0
  %v405 = vsel %vm56, %v346, 0
  %407 = vmatprep.subr.mxu0 0.0
  %408 = vmatpush1.msra.mxu0 0.0
  %409 = vmatprep.subr.mxu0 0.0
  %410 = vmatpush1.msra.mxu0 0.0
  %411 = vmatprep.subr.mxu0 0.0
  %412 = vmatpush1.msra.mxu0 0.0
  %413 = vmatprep.subr.mxu0 0.0
  %414 = vmatpush1.msra.mxu0 0.0
  %415 = vmatprep.subr.mxu0 0.0
  %416 = vmatpush1.msra.mxu0 0.0
  %417 = vmatprep.subr.mxu0 0.0
  %418 = vmatpush1.msra.mxu0 0.0
  %419 = vmatprep.subr.mxu0 0.0
  %420 = vmatpush1.msra.mxu0 0.0
  %421 = vmatprep.subr.mxu0 0.0
  %422 = vmatpush1.msra.mxu0 0.0
  %423 = vmatprep.subr.mxu0 0.0
  %424 = vmatpush1.msra.mxu0 0.0
  %425 = vmatprep.subr.mxu0 0.0
  %426 = vmatpush1.msra.mxu0 0.0
  %427 = vmatprep.subr.mxu0 0.0
  %428 = vmatpush1.msra.mxu0 0.0
  %429 = vmatprep.subr.mxu0 0.0
  %430 = vmatpush1.msra.mxu0 %v119
  %431 = vmatprep.subr.mxu0 0.0
  %432 = vmatpush1.msra.mxu0 %v29
  %433 = vmatprep.subr.mxu0 0.0
  %434 = vmatpush1.msra.mxu0 %v28
  %435 = vmatprep.subr.mxu0 0.0
  %436 = vmatpush1.msra.mxu0 %v27
  %437 = vmatprep.subr.mxu0 0.0
  %438 = vmatpush1.msra.mxu0 %v26
  %439 = vmatprep.subr.mxu0 0.0
  %440 = vmatpush2.msra.mxu0 0.0
  %441 = vmatprep.subr.mxu0 0.0
  %442 = vmatpush2.msra.mxu0 0.0
  %443 = vmatprep.subr.mxu0 0.0
  %444 = vmatpush2.msra.mxu0 0.0
  %445 = vmatprep.subr.mxu0 0.0
  %446 = vmatpush2.msra.mxu0 0.0
  %447 = vmatprep.subr.mxu0 0.0
  %448 = vmatpush2.msra.mxu0 0.0
  %449 = vmatprep.subr.mxu0 0.0
  %450 = vmatpush2.msra.mxu0 0.0
  %451 = vmatprep.subr.mxu0 0.0
  %452 = vmatpush2.msra.mxu0 0.0
  %453 = vmatprep.subr.mxu0 0.0
  %454 = vmatpush2.msra.mxu0 0.0
  %455 = vmatprep.subr.mxu0 0.0
  %456 = vmatpush2.msra.mxu0 0.0
  %457 = vmatprep.subr.mxu0 0.0
  %458 = vmatpush2.msra.mxu0 0.0
  %459 = vmatprep.subr.mxu0 0.0
  %460 = vmatpush2.msra.mxu0 0.0
  %461 = vmatprep.subr.mxu0 0.0
  %462 = vmatpush2.msra.mxu0 0.0
  %463 = vmatprep.subr.mxu0 0.0
  %464 = vmatpush2.msra.mxu0 0.0
  %465 = vmatprep.subr.mxu0 0.0
  %466 = vmatpush2.msra.mxu0 0.0
  %467 = vmatprep.subr.mxu0 0.0
  %468 = vmatpush2.msra.mxu0 0.0
  %469 = vmatprep.subr.mxu0 0.0
  %470 = vmatpush2.msra.mxu0 0.0
  %471 = vmatprep.mubr.f32.mxu0 0.0
  %472 = vmatmul.mubr.f32.gmra.mxu0 %v348
  %v473 = vpop.f32.mrf.mxu0
  %v474 = vadd.f32 %v55, %v473
  %v475 = vpop.f32.mrf.mxu0
  %476 = vmatprep.mubr.f32.mxu0 0.0
  %477 = vmatmul.mubr.f32.gmra.mxu0 %v351
  %v478 = vpop.f32.mrf.mxu0
  %v479 = vadd.f32 %v55, %v478
  %v480 = vpop.f32.mrf.mxu0
  %481 = vmatprep.mubr.f32.mxu0 0.0
  %482 = vmatmul.mubr.f32.gmra.mxu0 %v354
  %v483 = vpop.f32.mrf.mxu0
  %v484 = vadd.f32 %v55, %v483
  %v485 = vpop.f32.mrf.mxu0
  %486 = vmatprep.mubr.f32.mxu0 0.0
  %487 = vmatmul.mubr.f32.gmra.mxu0 %v357
  %v488 = vpop.f32.mrf.mxu0
  %v489 = vadd.f32 %v55, %v488
  %v490 = vpop.f32.mrf.mxu0
  %491 = vmatprep.mubr.f32.mxu0 0.0
  %492 = vmatmul.mubr.f32.gmra.mxu0 %v360
  %v493 = vpop.f32.mrf.mxu0
  %v494 = vadd.f32 %v55, %v493
  %v495 = vpop.f32.mrf.mxu0
  %496 = vmatprep.mubr.f32.mxu0 0.0
  %497 = vmatmul.mubr.f32.gmra.mxu0 %v363
  %v498 = vpop.f32.mrf.mxu0
  %v499 = vadd.f32 %v55, %v498
  %v500 = vpop.f32.mrf.mxu0
  %501 = vmatprep.mubr.f32.mxu0 0.0
  %502 = vmatmul.mubr.f32.gmra.mxu0 %v366
  %v503 = vpop.f32.mrf.mxu0
  %v504 = vadd.f32 %v55, %v503
  %v505 = vpop.f32.mrf.mxu0
  %506 = vmatprep.mubr.f32.mxu0 0.0
  %507 = vmatmul.mubr.f32.gmra.mxu0 %v369
  %v508 = vpop.f32.mrf.mxu0
  %v509 = vadd.f32 %v55, %v508
  %v510 = vpop.f32.mrf.mxu0
  %511 = vmatprep.mubr.f32.mxu0 0.0
  %512 = vmatmul.mubr.f32.gmra.mxu0 %v372
  %v513 = vpop.f32.mrf.mxu0
  %v514 = vadd.f32 %v55, %v513
  %v515 = vpop.f32.mrf.mxu0
  %516 = vmatprep.mubr.f32.mxu0 0.0
  %517 = vmatmul.mubr.f32.gmra.mxu0 %v375
  %v518 = vpop.f32.mrf.mxu0
  %v519 = vadd.f32 %v55, %v518
  %v520 = vpop.f32.mrf.mxu0
  %521 = vmatprep.mubr.f32.mxu0 0.0
  %522 = vmatmul.mubr.f32.gmra.mxu0 %v378
  %v523 = vpop.f32.mrf.mxu0
  %v524 = vadd.f32 %v55, %v523
  %v525 = vpop.f32.mrf.mxu0
  %526 = vmatprep.mubr.f32.mxu0 0.0
  %527 = vmatmul.mubr.f32.gmra.mxu0 %v381
  %v528 = vpop.f32.mrf.mxu0
  %v529 = vadd.f32 %v55, %v528
  %v530 = vpop.f32.mrf.mxu0
  %531 = vmatprep.mubr.f32.mxu0 0.0
  %532 = vmatmul.mubr.f32.gmra.mxu0 %v384
  %v533 = vpop.f32.mrf.mxu0
  %v534 = vadd.f32 %v55, %v533
  %v535 = vpop.f32.mrf.mxu0
  %536 = vmatprep.mubr.f32.mxu0 0.0
  %537 = vmatmul.mubr.f32.gmra.mxu0 %v387
  %v538 = vpop.f32.mrf.mxu0
  %v539 = vadd.f32 %v55, %v538
  %v540 = vpop.f32.mrf.mxu0
  %541 = vmatprep.mubr.f32.mxu0 0.0
  %542 = vmatmul.mubr.f32.gmra.mxu0 %v390
  %v543 = vpop.f32.mrf.mxu0
  %v544 = vadd.f32 %v55, %v543
  %v545 = vpop.f32.mrf.mxu0
  %546 = vmatprep.mubr.f32.mxu0 0.0
  %547 = vmatmul.mubr.f32.gmra.mxu0 %v393
  %v548 = vpop.f32.mrf.mxu0
  %v549 = vadd.f32 %v55, %v548
  %v550 = vpop.f32.mrf.mxu0
  %551 = vmatprep.mubr.f32.mxu0 0.0
  %552 = vmatmul.mubr.f32.gmra.mxu0 %v396
  %v553 = vpop.f32.mrf.mxu0
  %v554 = vadd.f32 %v55, %v553
  %v555 = vpop.f32.mrf.mxu0
  %556 = vmatprep.mubr.f32.mxu0 0.0
  %557 = vmatmul.mubr.f32.gmra.mxu0 %v399
  %v558 = vpop.f32.mrf.mxu0
  %v559 = vadd.f32 %v55, %v558
  %v560 = vpop.f32.mrf.mxu0
  %561 = vmatprep.mubr.f32.mxu0 0.0
  %562 = vmatmul.mubr.f32.gmra.mxu0 %v402
  %v563 = vpop.f32.mrf.mxu0
  %v564 = vadd.f32 %v55, %v563
  %v565 = vpop.f32.mrf.mxu0
  %566 = vmatprep.mubr.f32.mxu0 0.0
  %567 = vmatmul.mubr.f32.gmra.mxu0 %v405
  %v568 = vpop.f32.mrf.mxu0
  %v569 = vadd.f32 %v55, %v568
  %v570 = vpop.f32.mrf.mxu0
  %571 = vdwg.mxu0
  %v572 = vmax.f32 %v474, 0.0
  %v573 = vmax.f32 %v479, 0.0
  %v574 = vmax.f32 %v484, 0.0
  %v575 = vmax.f32 %v489, 0.0
  %v576 = vmax.f32 %v494, 0.0
  %v577 = vmax.f32 %v499, 0.0
  %v578 = vmax.f32 %v504, 0.0
  %v579 = vmax.f32 %v509, 0.0
  %v580 = vmax.f32 %v514, 0.0
  %v581 = vmax.f32 %v519, 0.0
  %v582 = vmax.f32 %v524, 0.0
  %v583 = vmax.f32 %v529, 0.0
  %v584 = vmax.f32 %v534, 0.0
  %v585 = vmax.f32 %v539, 0.0
  %v586 = vmax.f32 %v544, 0.0
  %v587 = vmax.f32 %v549, 0.0
  %v588 = vmax.f32 %v554, 0.0
  %v589 = vmax.f32 %v559, 0.0
  %v590 = vmax.f32 %v564, 0.0
  %v591 = vmax.f32 %v569, 0.0
  %592 = vst.msk [vmem:[#allocation2 + $0xa0] sm:$0xff] %vm306, %v572
  %593 = vst.msk [vmem:[#allocation2 + $0xa8] sm:$0xff] %vm306, %v573
  %594 = vst.msk [vmem:[#allocation2 + $0xb0] sm:$0xff] %vm306, %v574
  %595 = vst.msk [vmem:[#allocation2 + $0xb8] sm:$0xff] %vm306, %v575
  %596 = vst.msk [vmem:[#allocation2 + $0xc0] sm:$0xff] %vm306, %v576
  %597 = vst.msk [vmem:[#allocation2 + $0xc8] sm:$0xff] %vm306, %v577
  %598 = vst.msk [vmem:[#allocation2 + $0xd0] sm:$0xff] %vm306, %v578
  %599 = vst.msk [vmem:[#allocation2 + $0xd8] sm:$0xff] %vm306, %v579
  %600 = vst.msk [vmem:[#allocation2 + $0xe0] sm:$0xff] %vm306, %v580
  %601 = vst.msk [vmem:[#allocation2 + $0xe8] sm:$0xff] %vm306, %v581
  %602 = vst.msk [vmem:[#allocation2 + $0xf0] sm:$0xff] %vm306, %v582
  %603 = vst.msk [vmem:[#allocation2 + $0xf8] sm:$0xff] %vm306, %v583
  %604 = vst.msk [vmem:[#allocation2 + $0x100] sm:$0xff] %vm306, %v584
  %605 = vst.msk [vmem:[#allocation2 + $0x108] sm:$0xff] %vm306, %v585
  %606 = vst.msk [vmem:[#allocation2 + $0x110] sm:$0xff] %vm306, %v586
  %607 = vst.msk [vmem:[#allocation2 + $0x118] sm:$0xff] %vm306, %v587
  %608 = vst.msk [vmem:[#allocation2 + $0x120] sm:$0xff] %vm306, %v588
  %609 = vst.msk [vmem:[#allocation2 + $0x128] sm:$0xff] %vm306, %v589
  %610 = vst.msk [vmem:[#allocation2 + $0x130] sm:$0xff] %vm306, %v590
  %611 = vst.msk [vmem:[#allocation2 + $0x138] sm:$0xff] %vm306, %v591
  %v612 = vld [vmem:[%s0 + $0x140] sm:$0xff]
  %v613 = vld [vmem:[%s0 + $0x148] sm:$0xff]
  %v614 = vld [vmem:[%s0 + $0x150] sm:$0xff]
  %v615 = vld [vmem:[%s0 + $0x158] sm:$0xff]
  %v616 = vld [vmem:[%s0 + $0x160] sm:$0xff]
  %v617 = vld [vmem:[%s0 + $0x168] sm:$0xff]
  %v618 = vld [vmem:[%s0 + $0x170] sm:$0xff]
  %v619 = vld [vmem:[%s0 + $0x178] sm:$0xff]
  %v620 = vld [vmem:[%s0 + $0x180] sm:$0xff]
  %v621 = vld [vmem:[%s0 + $0x188] sm:$0xff]
  %v622 = vld [vmem:[%s0 + $0x190] sm:$0xff]
  %v623 = vld [vmem:[%s0 + $0x198] sm:$0xff]
  %v624 = vld [vmem:[%s0 + $0x1a0] sm:$0xff]
  %v625 = vld [vmem:[%s0 + $0x1a8] sm:$0xff]
  %v626 = vld [vmem:[%s0 + $0x1b0] sm:$0xff]
  %v627 = vld [vmem:[%s0 + $0x1b8] sm:$0xff]
  %v628 = vld [vmem:[%s0 + $0x1c0] sm:$0x3]
  %v630 = vsel %vm56, %v612, 0
  %v633 = vsel %vm56, %v613, 0
  %v636 = vsel %vm56, %v614, 0
  %v639 = vsel %vm56, %v615, 0
  %v642 = vsel %vm56, %v616, 0
  %v645 = vsel %vm56, %v617, 0
  %v648 = vsel %vm56, %v618, 0
  %v651 = vsel %vm56, %v619, 0
  %v654 = vsel %vm56, %v620, 0
  %v657 = vsel %vm56, %v621, 0
  %v660 = vsel %vm56, %v622, 0
  %v663 = vsel %vm56, %v623, 0
  %v666 = vsel %vm56, %v624, 0
  %v669 = vsel %vm56, %v625, 0
  %v672 = vsel %vm56, %v626, 0
  %v675 = vsel %vm56, %v627, 0
  %v678 = vsel %vm56, %v628, 0
  %680 = vmatprep.subr.mxu0 0.0
  %681 = vmatpush1.msra.mxu0 0.0
  %682 = vmatprep.subr.mxu0 0.0
  %683 = vmatpush1.msra.mxu0 0.0
  %684 = vmatprep.subr.mxu0 0.0
  %685 = vmatpush1.msra.mxu0 0.0
  %686 = vmatprep.subr.mxu0 0.0
  %687 = vmatpush1.msra.mxu0 0.0
  %688 = vmatprep.subr.mxu0 0.0
  %689 = vmatpush1.msra.mxu0 0.0
  %690 = vmatprep.subr.mxu0 0.0
  %691 = vmatpush1.msra.mxu0 0.0
  %692 = vmatprep.subr.mxu0 0.0
  %693 = vmatpush1.msra.mxu0 0.0
  %694 = vmatprep.subr.mxu0 0.0
  %695 = vmatpush1.msra.mxu0 0.0
  %696 = vmatprep.subr.mxu0 0.0
  %697 = vmatpush1.msra.mxu0 0.0
  %698 = vmatprep.subr.mxu0 0.0
  %699 = vmatpush1.msra.mxu0 0.0
  %700 = vmatprep.subr.mxu0 0.0
  %701 = vmatpush1.msra.mxu0 0.0
  %702 = vmatprep.subr.mxu0 0.0
  %703 = vmatpush1.msra.mxu0 %v119
  %704 = vmatprep.subr.mxu0 0.0
  %705 = vmatpush1.msra.mxu0 %v29
  %706 = vmatprep.subr.mxu0 0.0
  %707 = vmatpush1.msra.mxu0 %v28
  %708 = vmatprep.subr.mxu0 0.0
  %709 = vmatpush1.msra.mxu0 %v27
  %710 = vmatprep.subr.mxu0 0.0
  %711 = vmatpush1.msra.mxu0 %v26
  %712 = vmatprep.subr.mxu0 0.0
  %713 = vmatpush2.msra.mxu0 0.0
  %714 = vmatprep.subr.mxu0 0.0
  %715 = vmatpush2.msra.mxu0 0.0
  %716 = vmatprep.subr.mxu0 0.0
  %717 = vmatpush2.msra.mxu0 0.0
  %718 = vmatprep.subr.mxu0 0.0
  %719 = vmatpush2.msra.mxu0 0.0
  %720 = vmatprep.subr.mxu0 0.0
  %721 = vmatpush2.msra.mxu0 0.0
  %722 = vmatprep.subr.mxu0 0.0
  %723 = vmatpush2.msra.mxu0 0.0
  %724 = vmatprep.subr.mxu0 0.0
  %725 = vmatpush2.msra.mxu0 0.0
  %726 = vmatprep.subr.mxu0 0.0
  %727 = vmatpush2.msra.mxu0 0.0
  %728 = vmatprep.subr.mxu0 0.0
  %729 = vmatpush2.msra.mxu0 0.0
  %730 = vmatprep.subr.mxu0 0.0
  %731 = vmatpush2.msra.mxu0 0.0
  %732 = vmatprep.subr.mxu0 0.0
  %733 = vmatpush2.msra.mxu0 0.0
  %734 = vmatprep.subr.mxu0 0.0
  %735 = vmatpush2.msra.mxu0 0.0
  %736 = vmatprep.subr.mxu0 0.0
  %737 = vmatpush2.msra.mxu0 0.0
  %738 = vmatprep.subr.mxu0 0.0
  %739 = vmatpush2.msra.mxu0 0.0
  %740 = vmatprep.subr.mxu0 0.0
  %741 = vmatpush2.msra.mxu0 0.0
  %742 = vmatprep.subr.mxu0 0.0
  %743 = vmatpush2.msra.mxu0 0.0
  %744 = vmatprep.mubr.f32.mxu0 0.0
  %745 = vmatmul.mubr.f32.gmra.mxu0 %v630
  %v746 = vpop.f32.mrf.mxu0
  %v747 = vadd.f32 %v55, %v746
  %v748 = vpop.f32.mrf.mxu0
  %749 = vmatprep.mubr.f32.mxu0 0.0
  %750 = vmatmul.mubr.f32.gmra.mxu0 %v633
  %v751 = vpop.f32.mrf.mxu0
  %v752 = vadd.f32 %v55, %v751
  %v753 = vpop.f32.mrf.mxu0
  %754 = vmatprep.mubr.f32.mxu0 0.0
  %755 = vmatmul.mubr.f32.gmra.mxu0 %v636
  %v756 = vpop.f32.mrf.mxu0
  %v757 = vadd.f32 %v55, %v756
  %v758 = vpop.f32.mrf.mxu0
  %759 = vmatprep.mubr.f32.mxu0 0.0
  %760 = vmatmul.mubr.f32.gmra.mxu0 %v639
  %v761 = vpop.f32.mrf.mxu0
  %v762 = vadd.f32 %v55, %v761
  %v763 = vpop.f32.mrf.mxu0
  %764 = vmatprep.mubr.f32.mxu0 0.0
  %765 = vmatmul.mubr.f32.gmra.mxu0 %v642
  %v766 = vpop.f32.mrf.mxu0
  %v767 = vadd.f32 %v55, %v766
  %v768 = vpop.f32.mrf.mxu0
  %769 = vmatprep.mubr.f32.mxu0 0.0
  %770 = vmatmul.mubr.f32.gmra.mxu0 %v645
  %v771 = vpop.f32.mrf.mxu0
  %v772 = vadd.f32 %v55, %v771
  %v773 = vpop.f32.mrf.mxu0
  %774 = vmatprep.mubr.f32.mxu0 0.0
  %775 = vmatmul.mubr.f32.gmra.mxu0 %v648
  %v776 = vpop.f32.mrf.mxu0
  %v777 = vadd.f32 %v55, %v776
  %v778 = vpop.f32.mrf.mxu0
  %779 = vmatprep.mubr.f32.mxu0 0.0
  %780 = vmatmul.mubr.f32.gmra.mxu0 %v651
  %v781 = vpop.f32.mrf.mxu0
  %v782 = vadd.f32 %v55, %v781
  %v783 = vpop.f32.mrf.mxu0
  %784 = vmatprep.mubr.f32.mxu0 0.0
  %785 = vmatmul.mubr.f32.gmra.mxu0 %v654
  %v786 = vpop.f32.mrf.mxu0
  %v787 = vadd.f32 %v55, %v786
  %v788 = vpop.f32.mrf.mxu0
  %789 = vmatprep.mubr.f32.mxu0 0.0
  %790 = vmatmul.mubr.f32.gmra.mxu0 %v657
  %v791 = vpop.f32.mrf.mxu0
  %v792 = vadd.f32 %v55, %v791
  %v793 = vpop.f32.mrf.mxu0
  %794 = vmatprep.mubr.f32.mxu0 0.0
  %795 = vmatmul.mubr.f32.gmra.mxu0 %v660
  %v796 = vpop.f32.mrf.mxu0
  %v797 = vadd.f32 %v55, %v796
  %v798 = vpop.f32.mrf.mxu0
  %799 = vmatprep.mubr.f32.mxu0 0.0
  %800 = vmatmul.mubr.f32.gmra.mxu0 %v663
  %v801 = vpop.f32.mrf.mxu0
  %v802 = vadd.f32 %v55, %v801
  %v803 = vpop.f32.mrf.mxu0
  %804 = vmatprep.mubr.f32.mxu0 0.0
  %805 = vmatmul.mubr.f32.gmra.mxu0 %v666
  %v806 = vpop.f32.mrf.mxu0
  %v807 = vadd.f32 %v55, %v806
  %v808 = vpop.f32.mrf.mxu0
  %809 = vmatprep.mubr.f32.mxu0 0.0
  %810 = vmatmul.mubr.f32.gmra.mxu0 %v669
  %v811 = vpop.f32.mrf.mxu0
  %v812 = vadd.f32 %v55, %v811
  %v813 = vpop.f32.mrf.mxu0
  %814 = vmatprep.mubr.f32.mxu0 0.0
  %815 = vmatmul.mubr.f32.gmra.mxu0 %v672
  %v816 = vpop.f32.mrf.mxu0
  %v817 = vadd.f32 %v55, %v816
  %v818 = vpop.f32.mrf.mxu0
  %819 = vmatprep.mubr.f32.mxu0 0.0
  %820 = vmatmul.mubr.f32.gmra.mxu0 %v675
  %v821 = vpop.f32.mrf.mxu0
  %v822 = vadd.f32 %v55, %v821
  %v823 = vpop.f32.mrf.mxu0
  %824 = vmatprep.mubr.f32.mxu0 0.0
  %825 = vmatmul.mubr.f32.gmra.mxu0 %v678
  %v826 = vpop.f32.mrf.mxu0
  %v827 = vadd.f32 %v55, %v826
  %v828 = vpop.f32.mrf.mxu0
  %829 = vdwg.mxu0
  %v830 = vmax.f32 %v747, 0.0
  %v831 = vmax.f32 %v752, 0.0
  %v832 = vmax.f32 %v757, 0.0
  %v833 = vmax.f32 %v762, 0.0
  %v834 = vmax.f32 %v767, 0.0
  %v835 = vmax.f32 %v772, 0.0
  %v836 = vmax.f32 %v777, 0.0
  %v837 = vmax.f32 %v782, 0.0
  %v838 = vmax.f32 %v787, 0.0
  %v839 = vmax.f32 %v792, 0.0
  %v840 = vmax.f32 %v797, 0.0
  %v841 = vmax.f32 %v802, 0.0
  %v842 = vmax.f32 %v807, 0.0
  %v843 = vmax.f32 %v812, 0.0
  %v844 = vmax.f32 %v817, 0.0
  %v845 = vmax.f32 %v822, 0.0
  %v846 = vmax.f32 %v827, 0.0
  %847 = vst.msk [vmem:[#allocation2 + $0x140] sm:$0xff] %vm306, %v830
  %848 = vst.msk [vmem:[#allocation2 + $0x148] sm:$0xff] %vm306, %v831
  %849 = vst.msk [vmem:[#allocation2 + $0x150] sm:$0xff] %vm306, %v832
  %850 = vst.msk [vmem:[#allocation2 + $0x158] sm:$0xff] %vm306, %v833
  %851 = vst.msk [vmem:[#allocation2 + $0x160] sm:$0xff] %vm306, %v834
  %852 = vst.msk [vmem:[#allocation2 + $0x168] sm:$0xff] %vm306, %v835
  %853 = vst.msk [vmem:[#allocation2 + $0x170] sm:$0xff] %vm306, %v836
  %854 = vst.msk [vmem:[#allocation2 + $0x178] sm:$0xff] %vm306, %v837
  %855 = vst.msk [vmem:[#allocation2 + $0x180] sm:$0xff] %vm306, %v838
  %856 = vst.msk [vmem:[#allocation2 + $0x188] sm:$0xff] %vm306, %v839
  %857 = vst.msk [vmem:[#allocation2 + $0x190] sm:$0xff] %vm306, %v840
  %858 = vst.msk [vmem:[#allocation2 + $0x198] sm:$0xff] %vm306, %v841
  %859 = vst.msk [vmem:[#allocation2 + $0x1a0] sm:$0xff] %vm306, %v842
  %860 = vst.msk [vmem:[#allocation2 + $0x1a8] sm:$0xff] %vm306, %v843
  %861 = vst.msk [vmem:[#allocation2 + $0x1b0] sm:$0xff] %vm306, %v844
  %862 = vst.msk [vmem:[#allocation2 + $0x1b8] sm:$0xff] %vm306, %v845
  %vm863 = vcmask 41984
  %864 = vst.msk [vmem:[#allocation2 + $0x1c0] sm:$0x3] %vm863, %v846
  %v865 = vld [vmem:[#allocation2] ss:$2 sm:$0x3f]
  %s866 = scalar_lea.vmem [#allocation2], 1
  %v867 = vld [vmem:[%s866] ss:$2 sm:$0x3f]
  %v868 = vmax.f32 %v865, %v867
  %s869 = scalar_lea.vmem [#allocation2], 15
  %v870 = vld [vmem:[%s869] ss:$2 sm:$0x3f]
  %v871 = vmax.f32 %v868, %v870
  %s872 = scalar_lea.vmem [#allocation2], 16
  %v873 = vld [vmem:[%s872] ss:$2 sm:$0x3f]
  %v874 = vmax.f32 %v871, %v873
  %vm875 = vcmask 46080
  %876 = vst.msk [vmem:[#allocation3] sm:$0x3f] %vm875, %v874
  %s877 = scalar_lea.vmem [#allocation2], 30
  %v878 = vld [vmem:[%s877] ss:$2 sm:$0x3f]
  %s879 = scalar_lea.vmem [#allocation2], 31
  %v880 = vld [vmem:[%s879] ss:$2 sm:$0x3f]
  %v881 = vmax.f32 %v878, %v880
  %s882 = scalar_lea.vmem [#allocation2], 45
  %v883 = vld [vmem:[%s882] ss:$2 sm:$0x3f]
  %v884 = vmax.f32 %v881, %v883
  %s885 = scalar_lea.vmem [#allocation2], 46
  %v886 = vld [vmem:[%s885] ss:$2 sm:$0x3f]
  %v887 = vmax.f32 %v884, %v886
  %888 = vst.msk [vmem:[#allocation3 + $0x6] sm:$0x3f] %vm875, %v887
  %s889 = scalar_lea.vmem [#allocation2], 60
  %v890 = vld [vmem:[%s889] ss:$2 sm:$0x3f]
  %s891 = scalar_lea.vmem [#allocation2], 61
  %v892 = vld [vmem:[%s891] ss:$2 sm:$0x3f]
  %v893 = vmax.f32 %v890, %v892
  %s894 = scalar_lea.vmem [#allocation2], 75
  %v895 = vld [vmem:[%s894] ss:$2 sm:$0x3f]
  %v896 = vmax.f32 %v893, %v895
  %s897 = scalar_lea.vmem [#allocation2], 76
  %v898 = vld [vmem:[%s897] ss:$2 sm:$0x3f]
  %v899 = vmax.f32 %v896, %v898
  %900 = vst.msk [vmem:[#allocation3 + $0xc] sm:$0x3f] %vm875, %v899
  %s901 = scalar_lea.vmem [#allocation2], 90
  %v902 = vld [vmem:[%s901] ss:$2 sm:$0x3f]
  %s903 = scalar_lea.vmem [#allocation2], 91
  %v904 = vld [vmem:[%s903] ss:$2 sm:$0x3f]
  %v905 = vmax.f32 %v902, %v904
  %s906 = scalar_lea.vmem [#allocation2], 105
  %v907 = vld [vmem:[%s906] ss:$2 sm:$0x3f]
  %v908 = vmax.f32 %v905, %v907
  %s909 = scalar_lea.vmem [#allocation2], 106
  %v910 = vld [vmem:[%s909] ss:$2 sm:$0x3f]
  %v911 = vmax.f32 %v908, %v910
  %912 = vst.msk [vmem:[#allocation3 + $0x12] sm:$0x3f] %vm875, %v911
  %s913 = scalar_lea.vmem [#allocation2], 120
  %v914 = vld [vmem:[%s913] ss:$2 sm:$0x3f]
  %s915 = scalar_lea.vmem [#allocation2], 121
  %v916 = vld [vmem:[%s915] ss:$2 sm:$0x3f]
  %v917 = vmax.f32 %v914, %v916
  %s918 = scalar_lea.vmem [#allocation2], 135
  %v919 = vld [vmem:[%s918] ss:$2 sm:$0x3f]
  %v920 = vmax.f32 %v917, %v919
  %s921 = scalar_lea.vmem [#allocation2], 136
  %v922 = vld [vmem:[%s921] ss:$2 sm:$0x3f]
  %v923 = vmax.f32 %v920, %v922
  %924 = vst.msk [vmem:[#allocation3 + $0x18] sm:$0x3f] %vm875, %v923
  %s925 = scalar_lea.vmem [#allocation2], 150
  %v926 = vld [vmem:[%s925] ss:$2 sm:$0x3f]
  %s927 = scalar_lea.vmem [#allocation2], 151
  %v928 = vld [vmem:[%s927] ss:$2 sm:$0x3f]
  %v929 = vmax.f32 %v926, %v928
  %s930 = scalar_lea.vmem [#allocation2], 165
  %v931 = vld [vmem:[%s930] ss:$2 sm:$0x3f]
  %v932 = vmax.f32 %v929, %v931
  %s933 = scalar_lea.vmem [#allocation2], 166
  %v934 = vld [vmem:[%s933] ss:$2 sm:$0x3f]
  %v935 = vmax.f32 %v932, %v934
  %936 = vst.msk [vmem:[#allocation3 + $0x1e] sm:$0x3f] %vm875, %v935
  %s937 = scalar_lea.vmem [#allocation2], 225
  %v938 = vld [vmem:[%s937] ss:$2 sm:$0x3f]
  %s939 = scalar_lea.vmem [#allocation2], 226
  %v940 = vld [vmem:[%s939] ss:$2 sm:$0x3f]
  %v941 = vmax.f32 %v938, %v940
  %s942 = scalar_lea.vmem [#allocation2], 240
  %v943 = vld [vmem:[%s942] ss:$2 sm:$0x3f]
  %v944 = vmax.f32 %v941, %v943
  %s945 = scalar_lea.vmem [#allocation2], 241
  %v946 = vld [vmem:[%s945] ss:$2 sm:$0x3f]
  %v947 = vmax.f32 %v944, %v946
  %948 = vst.msk [vmem:[#allocation3 + $0x24] sm:$0x3f] %vm875, %v947
  %s949 = scalar_lea.vmem [#allocation2], 255
  %v950 = vld [vmem:[%s949] ss:$2 sm:$0x3f]
  %s951 = scalar_lea.vmem [#allocation2], 256
  %v952 = vld [vmem:[%s951] ss:$2 sm:$0x3f]
  %v953 = vmax.f32 %v950, %v952
  %s954 = scalar_lea.vmem [#allocation2], 270
  %v955 = vld [vmem:[%s954] ss:$2 sm:$0x3f]
  %v956 = vmax.f32 %v953, %v955
  %s957 = scalar_lea.vmem [#allocation2], 271
  %v958 = vld [vmem:[%s957] ss:$2 sm:$0x3f]
  %v959 = vmax.f32 %v956, %v958
  %960 = vst.msk [vmem:[#allocation3 + $0x2a] sm:$0x3f] %vm875, %v959
  %s961 = scalar_lea.vmem [#allocation2], 285
  %v962 = vld [vmem:[%s961] ss:$2 sm:$0x3f]
  %s963 = scalar_lea.vmem [#allocation2], 286
  %v964 = vld [vmem:[%s963] ss:$2 sm:$0x3f]
  %v965 = vmax.f32 %v962, %v964
  %s966 = scalar_lea.vmem [#allocation2], 300
  %v967 = vld [vmem:[%s966] ss:$2 sm:$0x3f]
  %v968 = vmax.f32 %v965, %v967
  %s969 = scalar_lea.vmem [#allocation2], 301
  %v970 = vld [vmem:[%s969] ss:$2 sm:$0x3f]
  %v971 = vmax.f32 %v968, %v970
  %972 = vst.msk [vmem:[#allocation3 + $0x30] sm:$0x3f] %vm875, %v971
  %s973 = scalar_lea.vmem [#allocation2], 315
  %v974 = vld [vmem:[%s973] ss:$2 sm:$0x3f]
  %s975 = scalar_lea.vmem [#allocation2], 316
  %v976 = vld [vmem:[%s975] ss:$2 sm:$0x3f]
  %v977 = vmax.f32 %v974, %v976
  %s978 = scalar_lea.vmem [#allocation2], 330
  %v979 = vld [vmem:[%s978] ss:$2 sm:$0x3f]
  %v980 = vmax.f32 %v977, %v979
  %s981 = scalar_lea.vmem [#allocation2], 331
  %v982 = vld [vmem:[%s981] ss:$2 sm:$0x3f]
  %v983 = vmax.f32 %v980, %v982
  %984 = vst.msk [vmem:[#allocation3 + $0x36] sm:$0x3f] %vm875, %v983
  %s985 = scalar_lea.vmem [#allocation2], 345
  %v986 = vld [vmem:[%s985] ss:$2 sm:$0x3f]
  %s987 = scalar_lea.vmem [#allocation2], 346
  %v988 = vld [vmem:[%s987] ss:$2 sm:$0x3f]
  %v989 = vmax.f32 %v986, %v988
  %s990 = scalar_lea.vmem [#allocation2], 360
  %v991 = vld [vmem:[%s990] ss:$2 sm:$0x3f]
  %v992 = vmax.f32 %v989, %v991
  %s993 = scalar_lea.vmem [#allocation2], 361
  %v994 = vld [vmem:[%s993] ss:$2 sm:$0x3f]
  %v995 = vmax.f32 %v992, %v994
  %996 = vst.msk [vmem:[#allocation3 + $0x3c] sm:$0x3f] %vm875, %v995
  %s997 = scalar_lea.vmem [#allocation2], 375
  %v998 = vld [vmem:[%s997] ss:$2 sm:$0x3f]
  %s999 = scalar_lea.vmem [#allocation2], 376
  %v1000 = vld [vmem:[%s999] ss:$2 sm:$0x3f]
  %v1001 = vmax.f32 %v998, %v1000
  %s1002 = scalar_lea.vmem [#allocation2], 390
  %v1003 = vld [vmem:[%s1002] ss:$2 sm:$0x3f]
  %v1004 = vmax.f32 %v1001, %v1003
  %s1005 = scalar_lea.vmem [#allocation2], 391
  %v1006 = vld [vmem:[%s1005] ss:$2 sm:$0x3f]
  %v1007 = vmax.f32 %v1004, %v1006
  %1008 = vst.msk [vmem:[#allocation3 + $0x42] sm:$0x3f] %vm875, %v1007
  %1009 = vst.msk [vmem:[#allocation3 + $0x48] sm:$0xff] %vm306, 0.0
  %1010 = vst.msk [vmem:[#allocation3 + $0x50] sm:$0x3f] %vm875, 0.0
  %v1011 = vld [vmem:[%s6 + $0x1] sm:$0x1]
  %v1012 = vld [vmem:[#allocation3] sm:$0xff]
  %v1013 = vld [vmem:[#allocation3 + $0x8] sm:$0xff]
  %v1014 = vld [vmem:[#allocation3 + $0x10] sm:$0xff]
  %v1015 = vld [vmem:[#allocation3 + $0x18] sm:$0xff]
  %v1016 = vld [vmem:[#allocation3 + $0x20] sm:$0xff]
  %v1017 = vld [vmem:[#allocation3 + $0x28] sm:$0xff]
  %v1018 = vld [vmem:[#allocation3 + $0x30] sm:$0xff]
  %v1019 = vld [vmem:[#allocation3 + $0x38] sm:$0xff]
  %v1020 = vld [vmem:[#allocation3 + $0x40] sm:$0xff]
  %v1021 = vld [vmem:[%s3] sm:$0x3f]
  %v1022 = vld [vmem:[#allocation3 + $0x1] sm:$0xff]
  %v1023 = vld [vmem:[#allocation3 + $0x9] sm:$0xff]
  %v1024 = vld [vmem:[#allocation3 + $0x11] sm:$0xff]
  %v1025 = vld [vmem:[#allocation3 + $0x19] sm:$0xff]
  %v1026 = vld [vmem:[#allocation3 + $0x21] sm:$0xff]
  %v1027 = vld [vmem:[#allocation3 + $0x29] sm:$0xff]
  %v1028 = vld [vmem:[#allocation3 + $0x31] sm:$0xff]
  %v1029 = vld [vmem:[#allocation3 + $0x39] sm:$0xff]
  %v1030 = vld [vmem:[#allocation3 + $0x41] sm:$0xff]
  %v1031 = vld [vmem:[%s3 + $0x6] sm:$0x3f]
  %v1033 = vsel %vm306, %v1022, 0
  %v1036 = vsel %vm306, %v1023, 0
  %v1039 = vsel %vm306, %v1024, 0
  %v1042 = vsel %vm306, %v1025, 0
  %v1045 = vsel %vm306, %v1026, 0
  %v1048 = vsel %vm306, %v1027, 0
  %v1051 = vsel %vm306, %v1028, 0
  %v1054 = vsel %vm306, %v1029, 0
  %v1057 = vsel %vm306, %v1030, 0
  %vm1059 = vcmask 1045504
  %v1061 = vsel %vm1059, %v1031, 0
  %1063 = vmatprep.subr.mxu0 0.0
  %1064 = vmatpush1.msra.mxu0 0.0
  %1065 = vmatprep.subr.mxu0 0.0
  %1066 = vmatpush1.msra.mxu0 0.0
  %1067 = vmatprep.subr.mxu0 0.0
  %1068 = vmatpush1.msra.mxu0 0.0
  %1069 = vmatprep.subr.mxu0 0.0
  %1070 = vmatpush1.msra.mxu0 0.0
  %1071 = vmatprep.subr.mxu0 0.0
  %1072 = vmatpush1.msra.mxu0 0.0
  %1073 = vmatprep.subr.mxu0 0.0
  %1074 = vmatpush1.msra.mxu0 0.0
  %1075 = vmatprep.subr.mxu0 0.0
  %1076 = vmatpush1.msra.mxu0 0.0
  %1077 = vmatprep.subr.mxu0 0.0
  %1078 = vmatpush1.msra.mxu0 0.0
  %1079 = vmatprep.subr.mxu0 0.0
  %1080 = vmatpush1.msra.mxu0 0.0
  %1081 = vmatprep.subr.mxu0 0.0
  %1082 = vmatpush1.msra.mxu0 0.0
  %1083 = vmatprep.subr.mxu0 0.0
  %1084 = vmatpush1.msra.mxu0 0.0
  %1085 = vmatprep.subr.mxu0 0.0
  %1086 = vmatpush1.msra.mxu0 0.0
  %1087 = vmatprep.subr.mxu0 0.0
  %1088 = vmatpush1.msra.mxu0 0.0
  %1089 = vmatprep.subr.mxu0 0.0
  %1090 = vmatpush1.msra.mxu0 0.0
  %1091 = vmatprep.subr.mxu0 0.0
  %1092 = vmatpush1.msra.mxu0 0.0
  %1093 = vmatprep.subr.mxu0 0.0
  %1094 = vmatpush1.msra.mxu0 %v1061
  %1095 = vmatprep.subr.mxu0 0.0
  %1096 = vmatpush2.msra.mxu0 0.0
  %1097 = vmatprep.subr.mxu0 0.0
  %1098 = vmatpush2.msra.mxu0 0.0
  %1099 = vmatprep.subr.mxu0 0.0
  %1100 = vmatpush2.msra.mxu0 0.0
  %1101 = vmatprep.subr.mxu0 0.0
  %1102 = vmatpush2.msra.mxu0 0.0
  %1103 = vmatprep.subr.mxu0 0.0
  %1104 = vmatpush2.msra.mxu0 0.0
  %1105 = vmatprep.subr.mxu0 0.0
  %1106 = vmatpush2.msra.mxu0 0.0
  %1107 = vmatprep.subr.mxu0 0.0
  %1108 = vmatpush2.msra.mxu0 0.0
  %1109 = vmatprep.subr.mxu0 0.0
  %1110 = vmatpush2.msra.mxu0 0.0
  %1111 = vmatprep.subr.mxu0 0.0
  %1112 = vmatpush2.msra.mxu0 0.0
  %1113 = vmatprep.subr.mxu0 0.0
  %1114 = vmatpush2.msra.mxu0 0.0
  %1115 = vmatprep.subr.mxu0 0.0
  %1116 = vmatpush2.msra.mxu0 0.0
  %1117 = vmatprep.subr.mxu0 0.0
  %1118 = vmatpush2.msra.mxu0 0.0
  %1119 = vmatprep.subr.mxu0 0.0
  %1120 = vmatpush2.msra.mxu0 0.0
  %1121 = vmatprep.subr.mxu0 0.0
  %1122 = vmatpush2.msra.mxu0 0.0
  %1123 = vmatprep.subr.mxu0 0.0
  %1124 = vmatpush2.msra.mxu0 0.0
  %1125 = vmatprep.subr.mxu0 0.0
  %1126 = vmatpush2.msra.mxu0 0.0
  %1127 = vmatprep.mubr.f32.mxu0 0.0
  %1128 = vmatmul.mubr.f32.gmra.mxu0 %v1033
  %v1129 = vpop.f32.mrf.mxu0
  %v1130 = vadd.f32 0.0, %v1129
  %v1131 = vpop.f32.mrf.mxu0
  %1132 = vmatprep.mubr.f32.mxu0 0.0
  %1133 = vmatmul.mubr.f32.gmra.mxu0 %v1036
  %v1134 = vpop.f32.mrf.mxu0
  %v1135 = vadd.f32 0.0, %v1134
  %v1136 = vpop.f32.mrf.mxu0
  %1137 = vmatprep.mubr.f32.mxu0 0.0
  %1138 = vmatmul.mubr.f32.gmra.mxu0 %v1039
  %v1139 = vpop.f32.mrf.mxu0
  %v1140 = vadd.f32 0.0, %v1139
  %v1141 = vpop.f32.mrf.mxu0
  %1142 = vmatprep.mubr.f32.mxu0 0.0
  %1143 = vmatmul.mubr.f32.gmra.mxu0 %v1042
  %v1144 = vpop.f32.mrf.mxu0
  %v1145 = vadd.f32 0.0, %v1144
  %v1146 = vpop.f32.mrf.mxu0
  %1147 = vmatprep.mubr.f32.mxu0 0.0
  %1148 = vmatmul.mubr.f32.gmra.mxu0 %v1045
  %v1149 = vpop.f32.mrf.mxu0
  %v1150 = vadd.f32 0.0, %v1149
  %v1151 = vpop.f32.mrf.mxu0
  %1152 = vmatprep.mubr.f32.mxu0 0.0
  %1153 = vmatmul.mubr.f32.gmra.mxu0 %v1048
  %v1154 = vpop.f32.mrf.mxu0
  %v1155 = vadd.f32 0.0, %v1154
  %v1156 = vpop.f32.mrf.mxu0
  %1157 = vmatprep.mubr.f32.mxu0 0.0
  %1158 = vmatmul.mubr.f32.gmra.mxu0 %v1051
  %v1159 = vpop.f32.mrf.mxu0
  %v1160 = vadd.f32 0.0, %v1159
  %v1161 = vpop.f32.mrf.mxu0
  %1162 = vmatprep.mubr.f32.mxu0 0.0
  %1163 = vmatmul.mubr.f32.gmra.mxu0 %v1054
  %v1164 = vpop.f32.mrf.mxu0
  %v1165 = vadd.f32 0.0, %v1164
  %v1166 = vpop.f32.mrf.mxu0
  %1167 = vmatprep.mubr.f32.mxu0 0.0
  %1168 = vmatmul.mubr.f32.gmra.mxu0 %v1057
  %v1169 = vpop.f32.mrf.mxu0
  %v1170 = vadd.f32 0.0, %v1169
  %v1171 = vpop.f32.mrf.mxu0
  %1172 = vdwg.mxu0
  %v1174 = vsel %vm306, %v1012, 0
  %v1177 = vsel %vm306, %v1013, 0
  %v1180 = vsel %vm306, %v1014, 0
  %v1183 = vsel %vm306, %v1015, 0
  %v1186 = vsel %vm306, %v1016, 0
  %v1189 = vsel %vm306, %v1017, 0
  %v1192 = vsel %vm306, %v1018, 0
  %v1195 = vsel %vm306, %v1019, 0
  %v1198 = vsel %vm306, %v1020, 0
  %v1201 = vsel %vm1059, %v1021, 0
  %1203 = vmatprep.subr.mxu0 0.0
  %1204 = vmatpush1.msra.mxu0 0.0
  %1205 = vmatprep.subr.mxu0 0.0
  %1206 = vmatpush1.msra.mxu0 0.0
  %1207 = vmatprep.subr.mxu0 0.0
  %1208 = vmatpush1.msra.mxu0 0.0
  %1209 = vmatprep.subr.mxu0 0.0
  %1210 = vmatpush1.msra.mxu0 0.0
  %1211 = vmatprep.subr.mxu0 0.0
  %1212 = vmatpush1.msra.mxu0 0.0
  %1213 = vmatprep.subr.mxu0 0.0
  %1214 = vmatpush1.msra.mxu0 0.0
  %1215 = vmatprep.subr.mxu0 0.0
  %1216 = vmatpush1.msra.mxu0 0.0
  %1217 = vmatprep.subr.mxu0 0.0
  %1218 = vmatpush1.msra.mxu0 0.0
  %1219 = vmatprep.subr.mxu0 0.0
  %1220 = vmatpush1.msra.mxu0 0.0
  %1221 = vmatprep.subr.mxu0 0.0
  %1222 = vmatpush1.msra.mxu0 0.0
  %1223 = vmatprep.subr.mxu0 0.0
  %1224 = vmatpush1.msra.mxu0 0.0
  %1225 = vmatprep.subr.mxu0 0.0
  %1226 = vmatpush1.msra.mxu0 0.0
  %1227 = vmatprep.subr.mxu0 0.0
  %1228 = vmatpush1.msra.mxu0 0.0
  %1229 = vmatprep.subr.mxu0 0.0
  %1230 = vmatpush1.msra.mxu0 0.0
  %1231 = vmatprep.subr.mxu0 0.0
  %1232 = vmatpush1.msra.mxu0 0.0
  %1233 = vmatprep.subr.mxu0 0.0
  %1234 = vmatpush1.msra.mxu0 %v1201
  %1235 = vmatprep.subr.mxu0 0.0
  %1236 = vmatpush2.msra.mxu0 0.0
  %1237 = vmatprep.subr.mxu0 0.0
  %1238 = vmatpush2.msra.mxu0 0.0
  %1239 = vmatprep.subr.mxu0 0.0
  %1240 = vmatpush2.msra.mxu0 0.0
  %1241 = vmatprep.subr.mxu0 0.0
  %1242 = vmatpush2.msra.mxu0 0.0
  %1243 = vmatprep.subr.mxu0 0.0
  %1244 = vmatpush2.msra.mxu0 0.0
  %1245 = vmatprep.subr.mxu0 0.0
  %1246 = vmatpush2.msra.mxu0 0.0
  %1247 = vmatprep.subr.mxu0 0.0
  %1248 = vmatpush2.msra.mxu0 0.0
  %1249 = vmatprep.subr.mxu0 0.0
  %1250 = vmatpush2.msra.mxu0 0.0
  %1251 = vmatprep.subr.mxu0 0.0
  %1252 = vmatpush2.msra.mxu0 0.0
  %1253 = vmatprep.subr.mxu0 0.0
  %1254 = vmatpush2.msra.mxu0 0.0
  %1255 = vmatprep.subr.mxu0 0.0
  %1256 = vmatpush2.msra.mxu0 0.0
  %1257 = vmatprep.subr.mxu0 0.0
  %1258 = vmatpush2.msra.mxu0 0.0
  %1259 = vmatprep.subr.mxu0 0.0
  %1260 = vmatpush2.msra.mxu0 0.0
  %1261 = vmatprep.subr.mxu0 0.0
  %1262 = vmatpush2.msra.mxu0 0.0
  %1263 = vmatprep.subr.mxu0 0.0
  %1264 = vmatpush2.msra.mxu0 0.0
  %1265 = vmatprep.subr.mxu0 0.0
  %1266 = vmatpush2.msra.mxu0 0.0
  %1267 = vmatprep.mubr.f32.mxu0 0.0
  %1268 = vmatmul.mubr.f32.gmra.mxu0 %v1174
  %v1269 = vpop.f32.mrf.mxu0
  %v1270 = vadd.f32 %v1130, %v1269
  %v1271 = vpop.f32.mrf.mxu0
  %1272 = vmatprep.mubr.f32.mxu0 0.0
  %1273 = vmatmul.mubr.f32.gmra.mxu0 %v1177
  %v1274 = vpop.f32.mrf.mxu0
  %v1275 = vadd.f32 %v1135, %v1274
  %v1276 = vpop.f32.mrf.mxu0
  %1277 = vmatprep.mubr.f32.mxu0 0.0
  %1278 = vmatmul.mubr.f32.gmra.mxu0 %v1180
  %v1279 = vpop.f32.mrf.mxu0
  %v1280 = vadd.f32 %v1140, %v1279
  %v1281 = vpop.f32.mrf.mxu0
  %1282 = vmatprep.mubr.f32.mxu0 0.0
  %1283 = vmatmul.mubr.f32.gmra.mxu0 %v1183
  %v1284 = vpop.f32.mrf.mxu0
  %v1285 = vadd.f32 %v1145, %v1284
  %v1286 = vpop.f32.mrf.mxu0
  %1287 = vmatprep.mubr.f32.mxu0 0.0
  %1288 = vmatmul.mubr.f32.gmra.mxu0 %v1186
  %v1289 = vpop.f32.mrf.mxu0
  %v1290 = vadd.f32 %v1150, %v1289
  %v1291 = vpop.f32.mrf.mxu0
  %1292 = vmatprep.mubr.f32.mxu0 0.0
  %1293 = vmatmul.mubr.f32.gmra.mxu0 %v1189
  %v1294 = vpop.f32.mrf.mxu0
  %v1295 = vadd.f32 %v1155, %v1294
  %v1296 = vpop.f32.mrf.mxu0
  %1297 = vmatprep.mubr.f32.mxu0 0.0
  %1298 = vmatmul.mubr.f32.gmra.mxu0 %v1192
  %v1299 = vpop.f32.mrf.mxu0
  %v1300 = vadd.f32 %v1160, %v1299
  %v1301 = vpop.f32.mrf.mxu0
  %1302 = vmatprep.mubr.f32.mxu0 0.0
  %1303 = vmatmul.mubr.f32.gmra.mxu0 %v1195
  %v1304 = vpop.f32.mrf.mxu0
  %v1305 = vadd.f32 %v1165, %v1304
  %v1306 = vpop.f32.mrf.mxu0
  %1307 = vmatprep.mubr.f32.mxu0 0.0
  %1308 = vmatmul.mubr.f32.gmra.mxu0 %v1198
  %v1309 = vpop.f32.mrf.mxu0
  %v1310 = vadd.f32 %v1170, %v1309
  %v1311 = vpop.f32.mrf.mxu0
  %1312 = vdwg.mxu0
  %v1313 = vld [vmem:[#allocation3 + $0x2] sm:$0xff]
  %v1314 = vld [vmem:[#allocation3 + $0xa] sm:$0xff]
  %v1315 = vld [vmem:[#allocation3 + $0x12] sm:$0xff]
  %v1316 = vld [vmem:[#allocation3 + $0x1a] sm:$0xff]
  %v1317 = vld [vmem:[#allocation3 + $0x22] sm:$0xff]
  %v1318 = vld [vmem:[#allocation3 + $0x2a] sm:$0xff]
  %v1319 = vld [vmem:[#allocation3 + $0x32] sm:$0xff]
  %v1320 = vld [vmem:[#allocation3 + $0x3a] sm:$0xff]
  %v1321 = vld [vmem:[#allocation3 + $0x42] sm:$0xff]
  %v1322 = vld [vmem:[%s3 + $0xc] sm:$0x3f]
  %v1324 = vsel %vm306, %v1313, 0
  %v1327 = vsel %vm306, %v1314, 0
  %v1330 = vsel %vm306, %v1315, 0
  %v1333 = vsel %vm306, %v1316, 0
  %v1336 = vsel %vm306, %v1317, 0
  %v1339 = vsel %vm306, %v1318, 0
  %v1342 = vsel %vm306, %v1319, 0
  %v1345 = vsel %vm306, %v1320, 0
  %v1348 = vsel %vm306, %v1321, 0
  %v1351 = vsel %vm1059, %v1322, 0
  %1353 = vmatprep.subr.mxu0 0.0
  %1354 = vmatpush1.msra.mxu0 0.0
  %1355 = vmatprep.subr.mxu0 0.0
  %1356 = vmatpush1.msra.mxu0 0.0
  %1357 = vmatprep.subr.mxu0 0.0
  %1358 = vmatpush1.msra.mxu0 0.0
  %1359 = vmatprep.subr.mxu0 0.0
  %1360 = vmatpush1.msra.mxu0 0.0
  %1361 = vmatprep.subr.mxu0 0.0
  %1362 = vmatpush1.msra.mxu0 0.0
  %1363 = vmatprep.subr.mxu0 0.0
  %1364 = vmatpush1.msra.mxu0 0.0
  %1365 = vmatprep.subr.mxu0 0.0
  %1366 = vmatpush1.msra.mxu0 0.0
  %1367 = vmatprep.subr.mxu0 0.0
  %1368 = vmatpush1.msra.mxu0 0.0
  %1369 = vmatprep.subr.mxu0 0.0
  %1370 = vmatpush1.msra.mxu0 0.0
  %1371 = vmatprep.subr.mxu0 0.0
  %1372 = vmatpush1.msra.mxu0 0.0
  %1373 = vmatprep.subr.mxu0 0.0
  %1374 = vmatpush1.msra.mxu0 0.0
  %1375 = vmatprep.subr.mxu0 0.0
  %1376 = vmatpush1.msra.mxu0 0.0
  %1377 = vmatprep.subr.mxu0 0.0
  %1378 = vmatpush1.msra.mxu0 0.0
  %1379 = vmatprep.subr.mxu0 0.0
  %1380 = vmatpush1.msra.mxu0 0.0
  %1381 = vmatprep.subr.mxu0 0.0
  %1382 = vmatpush1.msra.mxu0 0.0
  %1383 = vmatprep.subr.mxu0 0.0
  %1384 = vmatpush1.msra.mxu0 %v1351
  %1385 = vmatprep.subr.mxu0 0.0
  %1386 = vmatpush2.msra.mxu0 0.0
  %1387 = vmatprep.subr.mxu0 0.0
  %1388 = vmatpush2.msra.mxu0 0.0
  %1389 = vmatprep.subr.mxu0 0.0
  %1390 = vmatpush2.msra.mxu0 0.0
  %1391 = vmatprep.subr.mxu0 0.0
  %1392 = vmatpush2.msra.mxu0 0.0
  %1393 = vmatprep.subr.mxu0 0.0
  %1394 = vmatpush2.msra.mxu0 0.0
  %1395 = vmatprep.subr.mxu0 0.0
  %1396 = vmatpush2.msra.mxu0 0.0
  %1397 = vmatprep.subr.mxu0 0.0
  %1398 = vmatpush2.msra.mxu0 0.0
  %1399 = vmatprep.subr.mxu0 0.0
  %1400 = vmatpush2.msra.mxu0 0.0
  %1401 = vmatprep.subr.mxu0 0.0
  %1402 = vmatpush2.msra.mxu0 0.0
  %1403 = vmatprep.subr.mxu0 0.0
  %1404 = vmatpush2.msra.mxu0 0.0
  %1405 = vmatprep.subr.mxu0 0.0
  %1406 = vmatpush2.msra.mxu0 0.0
  %1407 = vmatprep.subr.mxu0 0.0
  %1408 = vmatpush2.msra.mxu0 0.0
  %1409 = vmatprep.subr.mxu0 0.0
  %1410 = vmatpush2.msra.mxu0 0.0
  %1411 = vmatprep.subr.mxu0 0.0
  %1412 = vmatpush2.msra.mxu0 0.0
  %1413 = vmatprep.subr.mxu0 0.0
  %1414 = vmatpush2.msra.mxu0 0.0
  %1415 = vmatprep.subr.mxu0 0.0
  %1416 = vmatpush2.msra.mxu0 0.0
  %1417 = vmatprep.mubr.f32.mxu0 0.0
  %1418 = vmatmul.mubr.f32.gmra.mxu0 %v1324
  %v1419 = vpop.f32.mrf.mxu0
  %v1420 = vadd.f32 0.0, %v1419
  %v1421 = vpop.f32.mrf.mxu0
  %1422 = vmatprep.mubr.f32.mxu0 0.0
  %1423 = vmatmul.mubr.f32.gmra.mxu0 %v1327
  %v1424 = vpop.f32.mrf.mxu0
  %v1425 = vadd.f32 0.0, %v1424
  %v1426 = vpop.f32.mrf.mxu0
  %1427 = vmatprep.mubr.f32.mxu0 0.0
  %1428 = vmatmul.mubr.f32.gmra.mxu0 %v1330
  %v1429 = vpop.f32.mrf.mxu0
  %v1430 = vadd.f32 0.0, %v1429
  %v1431 = vpop.f32.mrf.mxu0
  %1432 = vmatprep.mubr.f32.mxu0 0.0
  %1433 = vmatmul.mubr.f32.gmra.mxu0 %v1333
  %v1434 = vpop.f32.mrf.mxu0
  %v1435 = vadd.f32 0.0, %v1434
  %v1436 = vpop.f32.mrf.mxu0
  %1437 = vmatprep.mubr.f32.mxu0 0.0
  %1438 = vmatmul.mubr.f32.gmra.mxu0 %v1336
  %v1439 = vpop.f32.mrf.mxu0
  %v1440 = vadd.f32 0.0, %v1439
  %v1441 = vpop.f32.mrf.mxu0
  %1442 = vmatprep.mubr.f32.mxu0 0.0
  %1443 = vmatmul.mubr.f32.gmra.mxu0 %v1339
  %v1444 = vpop.f32.mrf.mxu0
  %v1445 = vadd.f32 0.0, %v1444
  %v1446 = vpop.f32.mrf.mxu0
  %1447 = vmatprep.mubr.f32.mxu0 0.0
  %1448 = vmatmul.mubr.f32.gmra.mxu0 %v1342
  %v1449 = vpop.f32.mrf.mxu0
  %v1450 = vadd.f32 0.0, %v1449
  %v1451 = vpop.f32.mrf.mxu0
  %1452 = vmatprep.mubr.f32.mxu0 0.0
  %1453 = vmatmul.mubr.f32.gmra.mxu0 %v1345
  %v1454 = vpop.f32.mrf.mxu0
  %v1455 = vadd.f32 0.0, %v1454
  %v1456 = vpop.f32.mrf.mxu0
  %1457 = vmatprep.mubr.f32.mxu0 0.0
  %1458 = vmatmul.mubr.f32.gmra.mxu0 %v1348
  %v1459 = vpop.f32.mrf.mxu0
  %v1460 = vadd.f32 0.0, %v1459
  %v1461 = vpop.f32.mrf.mxu0
  %1462 = vdwg.mxu0
  %v1463 = vadd.f32 %v1270, %v1420
  %v1464 = vadd.f32 %v1275, %v1425
  %v1465 = vadd.f32 %v1280, %v1430
  %v1466 = vadd.f32 %v1285, %v1435
  %v1467 = vadd.f32 %v1290, %v1440
  %v1468 = vadd.f32 %v1295, %v1445
  %v1469 = vadd.f32 %v1300, %v1450
  %v1470 = vadd.f32 %v1305, %v1455
  %v1471 = vadd.f32 %v1310, %v1460
  %v1472 = vld [vmem:[#allocation3 + $0x6] sm:$0xff]
  %v1473 = vld [vmem:[#allocation3 + $0xe] sm:$0xff]
  %v1474 = vld [vmem:[#allocation3 + $0x16] sm:$0xff]
  %v1475 = vld [vmem:[#allocation3 + $0x1e] sm:$0xff]
  %v1476 = vld [vmem:[#allocation3 + $0x26] sm:$0xff]
  %v1477 = vld [vmem:[#allocation3 + $0x2e] sm:$0xff]
  %v1478 = vld [vmem:[#allocation3 + $0x36] sm:$0xff]
  %v1479 = vld [vmem:[#allocation3 + $0x3e] sm:$0xff]
  %v1480 = vld [vmem:[#allocation3 + $0x46] sm:$0xff]
  %v1481 = vld [vmem:[%s3 + $0x12] sm:$0x3f]
  %v1483 = vsel %vm306, %v1472, 0
  %v1486 = vsel %vm306, %v1473, 0
  %v1489 = vsel %vm306, %v1474, 0
  %v1492 = vsel %vm306, %v1475, 0
  %v1495 = vsel %vm306, %v1476, 0
  %v1498 = vsel %vm306, %v1477, 0
  %v1501 = vsel %vm306, %v1478, 0
  %v1504 = vsel %vm306, %v1479, 0
  %v1507 = vsel %vm306, %v1480, 0
  %v1510 = vsel %vm1059, %v1481, 0
  %1512 = vmatprep.subr.mxu0 0.0
  %1513 = vmatpush1.msra.mxu0 0.0
  %1514 = vmatprep.subr.mxu0 0.0
  %1515 = vmatpush1.msra.mxu0 0.0
  %1516 = vmatprep.subr.mxu0 0.0
  %1517 = vmatpush1.msra.mxu0 0.0
  %1518 = vmatprep.subr.mxu0 0.0
  %1519 = vmatpush1.msra.mxu0 0.0
  %1520 = vmatprep.subr.mxu0 0.0
  %1521 = vmatpush1.msra.mxu0 0.0
  %1522 = vmatprep.subr.mxu0 0.0
  %1523 = vmatpush1.msra.mxu0 0.0
  %1524 = vmatprep.subr.mxu0 0.0
  %1525 = vmatpush1.msra.mxu0 0.0
  %1526 = vmatprep.subr.mxu0 0.0
  %1527 = vmatpush1.msra.mxu0 0.0
  %1528 = vmatprep.subr.mxu0 0.0
  %1529 = vmatpush1.msra.mxu0 0.0
  %1530 = vmatprep.subr.mxu0 0.0
  %1531 = vmatpush1.msra.mxu0 0.0
  %1532 = vmatprep.subr.mxu0 0.0
  %1533 = vmatpush1.msra.mxu0 0.0
  %1534 = vmatprep.subr.mxu0 0.0
  %1535 = vmatpush1.msra.mxu0 0.0
  %1536 = vmatprep.subr.mxu0 0.0
  %1537 = vmatpush1.msra.mxu0 0.0
  %1538 = vmatprep.subr.mxu0 0.0
  %1539 = vmatpush1.msra.mxu0 0.0
  %1540 = vmatprep.subr.mxu0 0.0
  %1541 = vmatpush1.msra.mxu0 0.0
  %1542 = vmatprep.subr.mxu0 0.0
  %1543 = vmatpush1.msra.mxu0 %v1510
  %1544 = vmatprep.subr.mxu0 0.0
  %1545 = vmatpush2.msra.mxu0 0.0
  %1546 = vmatprep.subr.mxu0 0.0
  %1547 = vmatpush2.msra.mxu0 0.0
  %1548 = vmatprep.subr.mxu0 0.0
  %1549 = vmatpush2.msra.mxu0 0.0
  %1550 = vmatprep.subr.mxu0 0.0
  %1551 = vmatpush2.msra.mxu0 0.0
  %1552 = vmatprep.subr.mxu0 0.0
  %1553 = vmatpush2.msra.mxu0 0.0
  %1554 = vmatprep.subr.mxu0 0.0
  %1555 = vmatpush2.msra.mxu0 0.0
  %1556 = vmatprep.subr.mxu0 0.0
  %1557 = vmatpush2.msra.mxu0 0.0
  %1558 = vmatprep.subr.mxu0 0.0
  %1559 = vmatpush2.msra.mxu0 0.0
  %1560 = vmatprep.subr.mxu0 0.0
  %1561 = vmatpush2.msra.mxu0 0.0
  %1562 = vmatprep.subr.mxu0 0.0
  %1563 = vmatpush2.msra.mxu0 0.0
  %1564 = vmatprep.subr.mxu0 0.0
  %1565 = vmatpush2.msra.mxu0 0.0
  %1566 = vmatprep.subr.mxu0 0.0
  %1567 = vmatpush2.msra.mxu0 0.0
  %1568 = vmatprep.subr.mxu0 0.0
  %1569 = vmatpush2.msra.mxu0 0.0
  %1570 = vmatprep.subr.mxu0 0.0
  %1571 = vmatpush2.msra.mxu0 0.0
  %1572 = vmatprep.subr.mxu0 0.0
  %1573 = vmatpush2.msra.mxu0 0.0
  %1574 = vmatprep.subr.mxu0 0.0
  %1575 = vmatpush2.msra.mxu0 0.0
  %1576 = vmatprep.mubr.f32.mxu0 0.0
  %1577 = vmatmul.mubr.f32.gmra.mxu0 %v1483
  %v1578 = vpop.f32.mrf.mxu0
  %v1579 = vadd.f32 0.0, %v1578
  %v1580 = vpop.f32.mrf.mxu0
  %1581 = vmatprep.mubr.f32.mxu0 0.0
  %1582 = vmatmul.mubr.f32.gmra.mxu0 %v1486
  %v1583 = vpop.f32.mrf.mxu0
  %v1584 = vadd.f32 0.0, %v1583
  %v1585 = vpop.f32.mrf.mxu0
  %1586 = vmatprep.mubr.f32.mxu0 0.0
  %1587 = vmatmul.mubr.f32.gmra.mxu0 %v1489
  %v1588 = vpop.f32.mrf.mxu0
  %v1589 = vadd.f32 0.0, %v1588
  %v1590 = vpop.f32.mrf.mxu0
  %1591 = vmatprep.mubr.f32.mxu0 0.0
  %1592 = vmatmul.mubr.f32.gmra.mxu0 %v1492
  %v1593 = vpop.f32.mrf.mxu0
  %v1594 = vadd.f32 0.0, %v1593
  %v1595 = vpop.f32.mrf.mxu0
  %1596 = vmatprep.mubr.f32.mxu0 0.0
  %1597 = vmatmul.mubr.f32.gmra.mxu0 %v1495
  %v1598 = vpop.f32.mrf.mxu0
  %v1599 = vadd.f32 0.0, %v1598
  %v1600 = vpop.f32.mrf.mxu0
  %1601 = vmatprep.mubr.f32.mxu0 0.0
  %1602 = vmatmul.mubr.f32.gmra.mxu0 %v1498
  %v1603 = vpop.f32.mrf.mxu0
  %v1604 = vadd.f32 0.0, %v1603
  %v1605 = vpop.f32.mrf.mxu0
  %1606 = vmatprep.mubr.f32.mxu0 0.0
  %1607 = vmatmul.mubr.f32.gmra.mxu0 %v1501
  %v1608 = vpop.f32.mrf.mxu0
  %v1609 = vadd.f32 0.0, %v1608
  %v1610 = vpop.f32.mrf.mxu0
  %1611 = vmatprep.mubr.f32.mxu0 0.0
  %1612 = vmatmul.mubr.f32.gmra.mxu0 %v1504
  %v1613 = vpop.f32.mrf.mxu0
  %v1614 = vadd.f32 0.0, %v1613
  %v1615 = vpop.f32.mrf.mxu0
  %1616 = vmatprep.mubr.f32.mxu0 0.0
  %1617 = vmatmul.mubr.f32.gmra.mxu0 %v1507
  %v1618 = vpop.f32.mrf.mxu0
  %v1619 = vadd.f32 0.0, %v1618
  %v1620 = vpop.f32.mrf.mxu0
  %1621 = vdwg.mxu0
  %v1622 = vadd.f32 %v1463, %v1579
  %v1623 = vadd.f32 %v1464, %v1584
  %v1624 = vadd.f32 %v1465, %v1589
  %v1625 = vadd.f32 %v1466, %v1594
  %v1626 = vadd.f32 %v1467, %v1599
  %v1627 = vadd.f32 %v1468, %v1604
  %v1628 = vadd.f32 %v1469, %v1609
  %v1629 = vadd.f32 %v1470, %v1614
  %v1630 = vadd.f32 %v1471, %v1619
  %v1631 = vld [vmem:[#allocation3 + $0x7] sm:$0xff]
  %v1632 = vld [vmem:[#allocation3 + $0xf] sm:$0xff]
  %v1633 = vld [vmem:[#allocation3 + $0x17] sm:$0xff]
  %v1634 = vld [vmem:[#allocation3 + $0x1f] sm:$0xff]
  %v1635 = vld [vmem:[#allocation3 + $0x27] sm:$0xff]
  %v1636 = vld [vmem:[#allocation3 + $0x2f] sm:$0xff]
  %v1637 = vld [vmem:[#allocation3 + $0x37] sm:$0xff]
  %v1638 = vld [vmem:[#allocation3 + $0x3f] sm:$0xff]
  %v1639 = vld [vmem:[#allocation3 + $0x47] sm:$0xff]
  %v1640 = vld [vmem:[%s3 + $0x18] sm:$0x3f]
  %v1642 = vsel %vm306, %v1631, 0
  %v1645 = vsel %vm306, %v1632, 0
  %v1648 = vsel %vm306, %v1633, 0
  %v1651 = vsel %vm306, %v1634, 0
  %v1654 = vsel %vm306, %v1635, 0
  %v1657 = vsel %vm306, %v1636, 0
  %v1660 = vsel %vm306, %v1637, 0
  %v1663 = vsel %vm306, %v1638, 0
  %v1666 = vsel %vm306, %v1639, 0
  %v1669 = vsel %vm1059, %v1640, 0
  %1671 = vmatprep.subr.mxu0 0.0
  %1672 = vmatpush1.msra.mxu0 0.0
  %1673 = vmatprep.subr.mxu0 0.0
  %1674 = vmatpush1.msra.mxu0 0.0
  %1675 = vmatprep.subr.mxu0 0.0
  %1676 = vmatpush1.msra.mxu0 0.0
  %1677 = vmatprep.subr.mxu0 0.0
  %1678 = vmatpush1.msra.mxu0 0.0
  %1679 = vmatprep.subr.mxu0 0.0
  %1680 = vmatpush1.msra.mxu0 0.0
  %1681 = vmatprep.subr.mxu0 0.0
  %1682 = vmatpush1.msra.mxu0 0.0
  %1683 = vmatprep.subr.mxu0 0.0
  %1684 = vmatpush1.msra.mxu0 0.0
  %1685 = vmatprep.subr.mxu0 0.0
  %1686 = vmatpush1.msra.mxu0 0.0
  %1687 = vmatprep.subr.mxu0 0.0
  %1688 = vmatpush1.msra.mxu0 0.0
  %1689 = vmatprep.subr.mxu0 0.0
  %1690 = vmatpush1.msra.mxu0 0.0
  %1691 = vmatprep.subr.mxu0 0.0
  %1692 = vmatpush1.msra.mxu0 0.0
  %1693 = vmatprep.subr.mxu0 0.0
  %1694 = vmatpush1.msra.mxu0 0.0
  %1695 = vmatprep.subr.mxu0 0.0
  %1696 = vmatpush1.msra.mxu0 0.0
  %1697 = vmatprep.subr.mxu0 0.0
  %1698 = vmatpush1.msra.mxu0 0.0
  %1699 = vmatprep.subr.mxu0 0.0
  %1700 = vmatpush1.msra.mxu0 0.0
  %1701 = vmatprep.subr.mxu0 0.0
  %1702 = vmatpush1.msra.mxu0 %v1669
  %1703 = vmatprep.subr.mxu0 0.0
  %1704 = vmatpush2.msra.mxu0 0.0
  %1705 = vmatprep.subr.mxu0 0.0
  %1706 = vmatpush2.msra.mxu0 0.0
  %1707 = vmatprep.subr.mxu0 0.0
  %1708 = vmatpush2.msra.mxu0 0.0
  %1709 = vmatprep.subr.mxu0 0.0
  %1710 = vmatpush2.msra.mxu0 0.0
  %1711 = vmatprep.subr.mxu0 0.0
  %1712 = vmatpush2.msra.mxu0 0.0
  %1713 = vmatprep.subr.mxu0 0.0
  %1714 = vmatpush2.msra.mxu0 0.0
  %1715 = vmatprep.subr.mxu0 0.0
  %1716 = vmatpush2.msra.mxu0 0.0
  %1717 = vmatprep.subr.mxu0 0.0
  %1718 = vmatpush2.msra.mxu0 0.0
  %1719 = vmatprep.subr.mxu0 0.0
  %1720 = vmatpush2.msra.mxu0 0.0
  %1721 = vmatprep.subr.mxu0 0.0
  %1722 = vmatpush2.msra.mxu0 0.0
  %1723 = vmatprep.subr.mxu0 0.0
  %1724 = vmatpush2.msra.mxu0 0.0
  %1725 = vmatprep.subr.mxu0 0.0
  %1726 = vmatpush2.msra.mxu0 0.0
  %1727 = vmatprep.subr.mxu0 0.0
  %1728 = vmatpush2.msra.mxu0 0.0
  %1729 = vmatprep.subr.mxu0 0.0
  %1730 = vmatpush2.msra.mxu0 0.0
  %1731 = vmatprep.subr.mxu0 0.0
  %1732 = vmatpush2.msra.mxu0 0.0
  %1733 = vmatprep.subr.mxu0 0.0
  %1734 = vmatpush2.msra.mxu0 0.0
  %1735 = vmatprep.mubr.f32.mxu0 0.0
  %1736 = vmatmul.mubr.f32.gmra.mxu0 %v1642
  %v1737 = vpop.f32.mrf.mxu0
  %v1738 = vadd.f32 0.0, %v1737
  %v1739 = vpop.f32.mrf.mxu0
  %1740 = vmatprep.mubr.f32.mxu0 0.0
  %1741 = vmatmul.mubr.f32.gmra.mxu0 %v1645
  %v1742 = vpop.f32.mrf.mxu0
  %v1743 = vadd.f32 0.0, %v1742
  %v1744 = vpop.f32.mrf.mxu0
  %1745 = vmatprep.mubr.f32.mxu0 0.0
  %1746 = vmatmul.mubr.f32.gmra.mxu0 %v1648
  %v1747 = vpop.f32.mrf.mxu0
  %v1748 = vadd.f32 0.0, %v1747
  %v1749 = vpop.f32.mrf.mxu0
  %1750 = vmatprep.mubr.f32.mxu0 0.0
  %1751 = vmatmul.mubr.f32.gmra.mxu0 %v1651
  %v1752 = vpop.f32.mrf.mxu0
  %v1753 = vadd.f32 0.0, %v1752
  %v1754 = vpop.f32.mrf.mxu0
  %1755 = vmatprep.mubr.f32.mxu0 0.0
  %1756 = vmatmul.mubr.f32.gmra.mxu0 %v1654
  %v1757 = vpop.f32.mrf.mxu0
  %v1758 = vadd.f32 0.0, %v1757
  %v1759 = vpop.f32.mrf.mxu0
  %1760 = vmatprep.mubr.f32.mxu0 0.0
  %1761 = vmatmul.mubr.f32.gmra.mxu0 %v1657
  %v1762 = vpop.f32.mrf.mxu0
  %v1763 = vadd.f32 0.0, %v1762
  %v1764 = vpop.f32.mrf.mxu0
  %1765 = vmatprep.mubr.f32.mxu0 0.0
  %1766 = vmatmul.mubr.f32.gmra.mxu0 %v1660
  %v1767 = vpop.f32.mrf.mxu0
  %v1768 = vadd.f32 0.0, %v1767
  %v1769 = vpop.f32.mrf.mxu0
  %1770 = vmatprep.mubr.f32.mxu0 0.0
  %1771 = vmatmul.mubr.f32.gmra.mxu0 %v1663
  %v1772 = vpop.f32.mrf.mxu0
  %v1773 = vadd.f32 0.0, %v1772
  %v1774 = vpop.f32.mrf.mxu0
  %1775 = vmatprep.mubr.f32.mxu0 0.0
  %1776 = vmatmul.mubr.f32.gmra.mxu0 %v1666
  %v1777 = vpop.f32.mrf.mxu0
  %v1778 = vadd.f32 0.0, %v1777
  %v1779 = vpop.f32.mrf.mxu0
  %1780 = vdwg.mxu0
  %v1781 = vadd.f32 %v1622, %v1738
  %v1782 = vadd.f32 %v1623, %v1743
  %v1783 = vadd.f32 %v1624, %v1748
  %v1784 = vadd.f32 %v1625, %v1753
  %v1785 = vadd.f32 %v1626, %v1758
  %v1786 = vadd.f32 %v1627, %v1763
  %v1787 = vadd.f32 %v1628, %v1768
  %v1788 = vadd.f32 %v1629, %v1773
  %v1789 = vadd.f32 %v1630, %v1778
  %v1790 = vld [vmem:[#allocation3 + $0x8] sm:$0xff]
  %v1791 = vld [vmem:[#allocation3 + $0x10] sm:$0xff]
  %v1792 = vld [vmem:[#allocation3 + $0x18] sm:$0xff]
  %v1793 = vld [vmem:[#allocation3 + $0x20] sm:$0xff]
  %v1794 = vld [vmem:[#allocation3 + $0x28] sm:$0xff]
  %v1795 = vld [vmem:[#allocation3 + $0x30] sm:$0xff]
  %v1796 = vld [vmem:[#allocation3 + $0x38] sm:$0xff]
  %v1797 = vld [vmem:[#allocation3 + $0x40] sm:$0xff]
  %v1798 = vld [vmem:[#allocation3 + $0x48] sm:$0xff]
  %v1799 = vld [vmem:[%s3 + $0x1e] sm:$0x3f]
  %v1801 = vsel %vm306, %v1790, 0
  %v1804 = vsel %vm306, %v1791, 0
  %v1807 = vsel %vm306, %v1792, 0
  %v1810 = vsel %vm306, %v1793, 0
  %v1813 = vsel %vm306, %v1794, 0
  %v1816 = vsel %vm306, %v1795, 0
  %v1819 = vsel %vm306, %v1796, 0
  %v1822 = vsel %vm306, %v1797, 0
  %v1825 = vsel %vm306, %v1798, 0
  %v1828 = vsel %vm1059, %v1799, 0
  %1830 = vmatprep.subr.mxu0 0.0
  %1831 = vmatpush1.msra.mxu0 0.0
  %1832 = vmatprep.subr.mxu0 0.0
  %1833 = vmatpush1.msra.mxu0 0.0
  %1834 = vmatprep.subr.mxu0 0.0
  %1835 = vmatpush1.msra.mxu0 0.0
  %1836 = vmatprep.subr.mxu0 0.0
  %1837 = vmatpush1.msra.mxu0 0.0
  %1838 = vmatprep.subr.mxu0 0.0
  %1839 = vmatpush1.msra.mxu0 0.0
  %1840 = vmatprep.subr.mxu0 0.0
  %1841 = vmatpush1.msra.mxu0 0.0
  %1842 = vmatprep.subr.mxu0 0.0
  %1843 = vmatpush1.msra.mxu0 0.0
  %1844 = vmatprep.subr.mxu0 0.0
  %1845 = vmatpush1.msra.mxu0 0.0
  %1846 = vmatprep.subr.mxu0 0.0
  %1847 = vmatpush1.msra.mxu0 0.0
  %1848 = vmatprep.subr.mxu0 0.0
  %1849 = vmatpush1.msra.mxu0 0.0
  %1850 = vmatprep.subr.mxu0 0.0
  %1851 = vmatpush1.msra.mxu0 0.0
  %1852 = vmatprep.subr.mxu0 0.0
  %1853 = vmatpush1.msra.mxu0 0.0
  %1854 = vmatprep.subr.mxu0 0.0
  %1855 = vmatpush1.msra.mxu0 0.0
  %1856 = vmatprep.subr.mxu0 0.0
  %1857 = vmatpush1.msra.mxu0 0.0
  %1858 = vmatprep.subr.mxu0 0.0
  %1859 = vmatpush1.msra.mxu0 0.0
  %1860 = vmatprep.subr.mxu0 0.0
  %1861 = vmatpush1.msra.mxu0 %v1828
  %1862 = vmatprep.subr.mxu0 0.0
  %1863 = vmatpush2.msra.mxu0 0.0
  %1864 = vmatprep.subr.mxu0 0.0
  %1865 = vmatpush2.msra.mxu0 0.0
  %1866 = vmatprep.subr.mxu0 0.0
  %1867 = vmatpush2.msra.mxu0 0.0
  %1868 = vmatprep.subr.mxu0 0.0
  %1869 = vmatpush2.msra.mxu0 0.0
  %1870 = vmatprep.subr.mxu0 0.0
  %1871 = vmatpush2.msra.mxu0 0.0
  %1872 = vmatprep.subr.mxu0 0.0
  %1873 = vmatpush2.msra.mxu0 0.0
  %1874 = vmatprep.subr.mxu0 0.0
  %1875 = vmatpush2.msra.mxu0 0.0
  %1876 = vmatprep.subr.mxu0 0.0
  %1877 = vmatpush2.msra.mxu0 0.0
  %1878 = vmatprep.subr.mxu0 0.0
  %1879 = vmatpush2.msra.mxu0 0.0
  %1880 = vmatprep.subr.mxu0 0.0
  %1881 = vmatpush2.msra.mxu0 0.0
  %1882 = vmatprep.subr.mxu0 0.0
  %1883 = vmatpush2.msra.mxu0 0.0
  %1884 = vmatprep.subr.mxu0 0.0
  %1885 = vmatpush2.msra.mxu0 0.0
  %1886 = vmatprep.subr.mxu0 0.0
  %1887 = vmatpush2.msra.mxu0 0.0
  %1888 = vmatprep.subr.mxu0 0.0
  %1889 = vmatpush2.msra.mxu0 0.0
  %1890 = vmatprep.subr.mxu0 0.0
  %1891 = vmatpush2.msra.mxu0 0.0
  %1892 = vmatprep.subr.mxu0 0.0
  %1893 = vmatpush2.msra.mxu0 0.0
  %1894 = vmatprep.mubr.f32.mxu0 0.0
  %1895 = vmatmul.mubr.f32.gmra.mxu0 %v1801
  %v1896 = vpop.f32.mrf.mxu0
  %v1897 = vadd.f32 0.0, %v1896
  %v1898 = vpop.f32.mrf.mxu0
  %1899 = vmatprep.mubr.f32.mxu0 0.0
  %1900 = vmatmul.mubr.f32.gmra.mxu0 %v1804
  %v1901 = vpop.f32.mrf.mxu0
  %v1902 = vadd.f32 0.0, %v1901
  %v1903 = vpop.f32.mrf.mxu0
  %1904 = vmatprep.mubr.f32.mxu0 0.0
  %1905 = vmatmul.mubr.f32.gmra.mxu0 %v1807
  %v1906 = vpop.f32.mrf.mxu0
  %v1907 = vadd.f32 0.0, %v1906
  %v1908 = vpop.f32.mrf.mxu0
  %1909 = vmatprep.mubr.f32.mxu0 0.0
  %1910 = vmatmul.mubr.f32.gmra.mxu0 %v1810
  %v1911 = vpop.f32.mrf.mxu0
  %v1912 = vadd.f32 0.0, %v1911
  %v1913 = vpop.f32.mrf.mxu0
  %1914 = vmatprep.mubr.f32.mxu0 0.0
  %1915 = vmatmul.mubr.f32.gmra.mxu0 %v1813
  %v1916 = vpop.f32.mrf.mxu0
  %v1917 = vadd.f32 0.0, %v1916
  %v1918 = vpop.f32.mrf.mxu0
  %1919 = vmatprep.mubr.f32.mxu0 0.0
  %1920 = vmatmul.mubr.f32.gmra.mxu0 %v1816
  %v1921 = vpop.f32.mrf.mxu0
  %v1922 = vadd.f32 0.0, %v1921
  %v1923 = vpop.f32.mrf.mxu0
  %1924 = vmatprep.mubr.f32.mxu0 0.0
  %1925 = vmatmul.mubr.f32.gmra.mxu0 %v1819
  %v1926 = vpop.f32.mrf.mxu0
  %v1927 = vadd.f32 0.0, %v1926
  %v1928 = vpop.f32.mrf.mxu0
  %1929 = vmatprep.mubr.f32.mxu0 0.0
  %1930 = vmatmul.mubr.f32.gmra.mxu0 %v1822
  %v1931 = vpop.f32.mrf.mxu0
  %v1932 = vadd.f32 0.0, %v1931
  %v1933 = vpop.f32.mrf.mxu0
  %1934 = vmatprep.mubr.f32.mxu0 0.0
  %1935 = vmatmul.mubr.f32.gmra.mxu0 %v1825
  %v1936 = vpop.f32.mrf.mxu0
  %v1937 = vadd.f32 0.0, %v1936
  %v1938 = vpop.f32.mrf.mxu0
  %1939 = vdwg.mxu0
  %v1940 = vadd.f32 %v1781, %v1897
  %v1941 = vadd.f32 %v1782, %v1902
  %v1942 = vadd.f32 %v1783, %v1907
  %v1943 = vadd.f32 %v1784, %v1912
  %v1944 = vadd.f32 %v1785, %v1917
  %v1945 = vadd.f32 %v1786, %v1922
  %v1946 = vadd.f32 %v1787, %v1927
  %v1947 = vadd.f32 %v1788, %v1932
  %v1948 = vadd.f32 %v1789, %v1937
  %v1949 = vld [vmem:[#allocation3 + $0xc] sm:$0xff]
  %v1950 = vld [vmem:[#allocation3 + $0x14] sm:$0xff]
  %v1951 = vld [vmem:[#allocation3 + $0x1c] sm:$0xff]
  %v1952 = vld [vmem:[#allocation3 + $0x24] sm:$0xff]
  %v1953 = vld [vmem:[#allocation3 + $0x2c] sm:$0xff]
  %v1954 = vld [vmem:[#allocation3 + $0x34] sm:$0xff]
  %v1955 = vld [vmem:[#allocation3 + $0x3c] sm:$0xff]
  %v1956 = vld [vmem:[#allocation3 + $0x44] sm:$0xff]
  %v1957 = vld [vmem:[#allocation3 + $0x4c] sm:$0xff]
  %v1958 = vld [vmem:[%s3 + $0x24] sm:$0x3f]
  %v1960 = vsel %vm306, %v1949, 0
  %v1963 = vsel %vm306, %v1950, 0
  %v1966 = vsel %vm306, %v1951, 0
  %v1969 = vsel %vm306, %v1952, 0
  %v1972 = vsel %vm306, %v1953, 0
  %v1975 = vsel %vm306, %v1954, 0
  %v1978 = vsel %vm306, %v1955, 0
  %v1981 = vsel %vm306, %v1956, 0
  %v1984 = vsel %vm306, %v1957, 0
  %v1987 = vsel %vm1059, %v1958, 0
  %1989 = vmatprep.subr.mxu0 0.0
  %1990 = vmatpush1.msra.mxu0 0.0
  %1991 = vmatprep.subr.mxu0 0.0
  %1992 = vmatpush1.msra.mxu0 0.0
  %1993 = vmatprep.subr.mxu0 0.0
  %1994 = vmatpush1.msra.mxu0 0.0
  %1995 = vmatprep.subr.mxu0 0.0
  %1996 = vmatpush1.msra.mxu0 0.0
  %1997 = vmatprep.subr.mxu0 0.0
  %1998 = vmatpush1.msra.mxu0 0.0
  %1999 = vmatprep.subr.mxu0 0.0
  %2000 = vmatpush1.msra.mxu0 0.0
  %2001 = vmatprep.subr.mxu0 0.0
  %2002 = vmatpush1.msra.mxu0 0.0
  %2003 = vmatprep.subr.mxu0 0.0
  %2004 = vmatpush1.msra.mxu0 0.0
  %2005 = vmatprep.subr.mxu0 0.0
  %2006 = vmatpush1.msra.mxu0 0.0
  %2007 = vmatprep.subr.mxu0 0.0
  %2008 = vmatpush1.msra.mxu0 0.0
  %2009 = vmatprep.subr.mxu0 0.0
  %2010 = vmatpush1.msra.mxu0 0.0
  %2011 = vmatprep.subr.mxu0 0.0
  %2012 = vmatpush1.msra.mxu0 0.0
  %2013 = vmatprep.subr.mxu0 0.0
  %2014 = vmatpush1.msra.mxu0 0.0
  %2015 = vmatprep.subr.mxu0 0.0
  %2016 = vmatpush1.msra.mxu0 0.0
  %2017 = vmatprep.subr.mxu0 0.0
  %2018 = vmatpush1.msra.mxu0 0.0
  %2019 = vmatprep.subr.mxu0 0.0
  %2020 = vmatpush1.msra.mxu0 %v1987
  %2021 = vmatprep.subr.mxu0 0.0
  %2022 = vmatpush2.msra.mxu0 0.0
  %2023 = vmatprep.subr.mxu0 0.0
  %2024 = vmatpush2.msra.mxu0 0.0
  %2025 = vmatprep.subr.mxu0 0.0
  %2026 = vmatpush2.msra.mxu0 0.0
  %2027 = vmatprep.subr.mxu0 0.0
  %2028 = vmatpush2.msra.mxu0 0.0
  %2029 = vmatprep.subr.mxu0 0.0
  %2030 = vmatpush2.msra.mxu0 0.0
  %2031 = vmatprep.subr.mxu0 0.0
  %2032 = vmatpush2.msra.mxu0 0.0
  %2033 = vmatprep.subr.mxu0 0.0
  %2034 = vmatpush2.msra.mxu0 0.0
  %2035 = vmatprep.subr.mxu0 0.0
  %2036 = vmatpush2.msra.mxu0 0.0
  %2037 = vmatprep.subr.mxu0 0.0
  %2038 = vmatpush2.msra.mxu0 0.0
  %2039 = vmatprep.subr.mxu0 0.0
  %2040 = vmatpush2.msra.mxu0 0.0
  %2041 = vmatprep.subr.mxu0 0.0
  %2042 = vmatpush2.msra.mxu0 0.0
  %2043 = vmatprep.subr.mxu0 0.0
  %2044 = vmatpush2.msra.mxu0 0.0
  %2045 = vmatprep.subr.mxu0 0.0
  %2046 = vmatpush2.msra.mxu0 0.0
  %2047 = vmatprep.subr.mxu0 0.0
  %2048 = vmatpush2.msra.mxu0 0.0
  %2049 = vmatprep.subr.mxu0 0.0
  %2050 = vmatpush2.msra.mxu0 0.0
  %2051 = vmatprep.subr.mxu0 0.0
  %2052 = vmatpush2.msra.mxu0 0.0
  %2053 = vmatprep.mubr.f32.mxu0 0.0
  %2054 = vmatmul.mubr.f32.gmra.mxu0 %v1960
  %v2055 = vpop.f32.mrf.mxu0
  %v2056 = vadd.f32 0.0, %v2055
  %v2057 = vpop.f32.mrf.mxu0
  %2058 = vmatprep.mubr.f32.mxu0 0.0
  %2059 = vmatmul.mubr.f32.gmra.mxu0 %v1963
  %v2060 = vpop.f32.mrf.mxu0
  %v2061 = vadd.f32 0.0, %v2060
  %v2062 = vpop.f32.mrf.mxu0
  %2063 = vmatprep.mubr.f32.mxu0 0.0
  %2064 = vmatmul.mubr.f32.gmra.mxu0 %v1966
  %v2065 = vpop.f32.mrf.mxu0
  %v2066 = vadd.f32 0.0, %v2065
  %v2067 = vpop.f32.mrf.mxu0
  %2068 = vmatprep.mubr.f32.mxu0 0.0
  %2069 = vmatmul.mubr.f32.gmra.mxu0 %v1969
  %v2070 = vpop.f32.mrf.mxu0
  %v2071 = vadd.f32 0.0, %v2070
  %v2072 = vpop.f32.mrf.mxu0
  %2073 = vmatprep.mubr.f32.mxu0 0.0
  %2074 = vmatmul.mubr.f32.gmra.mxu0 %v1972
  %v2075 = vpop.f32.mrf.mxu0
  %v2076 = vadd.f32 0.0, %v2075
  %v2077 = vpop.f32.mrf.mxu0
  %2078 = vmatprep.mubr.f32.mxu0 0.0
  %2079 = vmatmul.mubr.f32.gmra.mxu0 %v1975
  %v2080 = vpop.f32.mrf.mxu0
  %v2081 = vadd.f32 0.0, %v2080
  %v2082 = vpop.f32.mrf.mxu0
  %2083 = vmatprep.mubr.f32.mxu0 0.0
  %2084 = vmatmul.mubr.f32.gmra.mxu0 %v1978
  %v2085 = vpop.f32.mrf.mxu0
  %v2086 = vadd.f32 0.0, %v2085
  %v2087 = vpop.f32.mrf.mxu0
  %2088 = vmatprep.mubr.f32.mxu0 0.0
  %2089 = vmatmul.mubr.f32.gmra.mxu0 %v1981
  %v2090 = vpop.f32.mrf.mxu0
  %v2091 = vadd.f32 0.0, %v2090
  %v2092 = vpop.f32.mrf.mxu0
  %2093 = vmatprep.mubr.f32.mxu0 0.0
  %2094 = vmatmul.mubr.f32.gmra.mxu0 %v1984
  %v2095 = vpop.f32.mrf.mxu0
  %v2096 = vadd.f32 0.0, %v2095
  %v2097 = vpop.f32.mrf.mxu0
  %2098 = vdwg.mxu0
  %v2099 = vadd.f32 %v1940, %v2056
  %v2100 = vadd.f32 %v1941, %v2061
  %v2101 = vadd.f32 %v1942, %v2066
  %v2102 = vadd.f32 %v1943, %v2071
  %v2103 = vadd.f32 %v1944, %v2076
  %v2104 = vadd.f32 %v1945, %v2081
  %v2105 = vadd.f32 %v1946, %v2086
  %v2106 = vadd.f32 %v1947, %v2091
  %v2107 = vadd.f32 %v1948, %v2096
  %v2108 = vld [vmem:[#allocation3 + $0xd] sm:$0xff]
  %v2109 = vld [vmem:[#allocation3 + $0x15] sm:$0xff]
  %v2110 = vld [vmem:[#allocation3 + $0x1d] sm:$0xff]
  %v2111 = vld [vmem:[#allocation3 + $0x25] sm:$0xff]
  %v2112 = vld [vmem:[#allocation3 + $0x2d] sm:$0xff]
  %v2113 = vld [vmem:[#allocation3 + $0x35] sm:$0xff]
  %v2114 = vld [vmem:[#allocation3 + $0x3d] sm:$0xff]
  %v2115 = vld [vmem:[#allocation3 + $0x45] sm:$0xff]
  %v2116 = vld [vmem:[#allocation3 + $0x4d] sm:$0xff]
  %v2117 = vld [vmem:[%s3 + $0x2a] sm:$0x3f]
  %v2119 = vsel %vm306, %v2108, 0
  %v2122 = vsel %vm306, %v2109, 0
  %v2125 = vsel %vm306, %v2110, 0
  %v2128 = vsel %vm306, %v2111, 0
  %v2131 = vsel %vm306, %v2112, 0
  %v2134 = vsel %vm306, %v2113, 0
  %v2137 = vsel %vm306, %v2114, 0
  %v2140 = vsel %vm306, %v2115, 0
  %v2143 = vsel %vm306, %v2116, 0
  %v2146 = vsel %vm1059, %v2117, 0
  %2148 = vmatprep.subr.mxu0 0.0
  %2149 = vmatpush1.msra.mxu0 0.0
  %2150 = vmatprep.subr.mxu0 0.0
  %2151 = vmatpush1.msra.mxu0 0.0
  %2152 = vmatprep.subr.mxu0 0.0
  %2153 = vmatpush1.msra.mxu0 0.0
  %2154 = vmatprep.subr.mxu0 0.0
  %2155 = vmatpush1.msra.mxu0 0.0
  %2156 = vmatprep.subr.mxu0 0.0
  %2157 = vmatpush1.msra.mxu0 0.0
  %2158 = vmatprep.subr.mxu0 0.0
  %2159 = vmatpush1.msra.mxu0 0.0
  %2160 = vmatprep.subr.mxu0 0.0
  %2161 = vmatpush1.msra.mxu0 0.0
  %2162 = vmatprep.subr.mxu0 0.0
  %2163 = vmatpush1.msra.mxu0 0.0
  %2164 = vmatprep.subr.mxu0 0.0
  %2165 = vmatpush1.msra.mxu0 0.0
  %2166 = vmatprep.subr.mxu0 0.0
  %2167 = vmatpush1.msra.mxu0 0.0
  %2168 = vmatprep.subr.mxu0 0.0
  %2169 = vmatpush1.msra.mxu0 0.0
  %2170 = vmatprep.subr.mxu0 0.0
  %2171 = vmatpush1.msra.mxu0 0.0
  %2172 = vmatprep.subr.mxu0 0.0
  %2173 = vmatpush1.msra.mxu0 0.0
  %2174 = vmatprep.subr.mxu0 0.0
  %2175 = vmatpush1.msra.mxu0 0.0
  %2176 = vmatprep.subr.mxu0 0.0
  %2177 = vmatpush1.msra.mxu0 0.0
  %2178 = vmatprep.subr.mxu0 0.0
  %2179 = vmatpush1.msra.mxu0 %v2146
  %2180 = vmatprep.subr.mxu0 0.0
  %2181 = vmatpush2.msra.mxu0 0.0
  %2182 = vmatprep.subr.mxu0 0.0
  %2183 = vmatpush2.msra.mxu0 0.0
  %2184 = vmatprep.subr.mxu0 0.0
  %2185 = vmatpush2.msra.mxu0 0.0
  %2186 = vmatprep.subr.mxu0 0.0
  %2187 = vmatpush2.msra.mxu0 0.0
  %2188 = vmatprep.subr.mxu0 0.0
  %2189 = vmatpush2.msra.mxu0 0.0
  %2190 = vmatprep.subr.mxu0 0.0
  %2191 = vmatpush2.msra.mxu0 0.0
  %2192 = vmatprep.subr.mxu0 0.0
  %2193 = vmatpush2.msra.mxu0 0.0
  %2194 = vmatprep.subr.mxu0 0.0
  %2195 = vmatpush2.msra.mxu0 0.0
  %2196 = vmatprep.subr.mxu0 0.0
  %2197 = vmatpush2.msra.mxu0 0.0
  %2198 = vmatprep.subr.mxu0 0.0
  %2199 = vmatpush2.msra.mxu0 0.0
  %2200 = vmatprep.subr.mxu0 0.0
  %2201 = vmatpush2.msra.mxu0 0.0
  %2202 = vmatprep.subr.mxu0 0.0
  %2203 = vmatpush2.msra.mxu0 0.0
  %2204 = vmatprep.subr.mxu0 0.0
  %2205 = vmatpush2.msra.mxu0 0.0
  %2206 = vmatprep.subr.mxu0 0.0
  %2207 = vmatpush2.msra.mxu0 0.0
  %2208 = vmatprep.subr.mxu0 0.0
  %2209 = vmatpush2.msra.mxu0 0.0
  %2210 = vmatprep.subr.mxu0 0.0
  %2211 = vmatpush2.msra.mxu0 0.0
  %2212 = vmatprep.mubr.f32.mxu0 0.0
  %2213 = vmatmul.mubr.f32.gmra.mxu0 %v2119
  %v2214 = vpop.f32.mrf.mxu0
  %v2215 = vadd.f32 0.0, %v2214
  %v2216 = vpop.f32.mrf.mxu0
  %2217 = vmatprep.mubr.f32.mxu0 0.0
  %2218 = vmatmul.mubr.f32.gmra.mxu0 %v2122
  %v2219 = vpop.f32.mrf.mxu0
  %v2220 = vadd.f32 0.0, %v2219
  %v2221 = vpop.f32.mrf.mxu0
  %2222 = vmatprep.mubr.f32.mxu0 0.0
  %2223 = vmatmul.mubr.f32.gmra.mxu0 %v2125
  %v2224 = vpop.f32.mrf.mxu0
  %v2225 = vadd.f32 0.0, %v2224
  %v2226 = vpop.f32.mrf.mxu0
  %2227 = vmatprep.mubr.f32.mxu0 0.0
  %2228 = vmatmul.mubr.f32.gmra.mxu0 %v2128
  %v2229 = vpop.f32.mrf.mxu0
  %v2230 = vadd.f32 0.0, %v2229
  %v2231 = vpop.f32.mrf.mxu0
  %2232 = vmatprep.mubr.f32.mxu0 0.0
  %2233 = vmatmul.mubr.f32.gmra.mxu0 %v2131
  %v2234 = vpop.f32.mrf.mxu0
  %v2235 = vadd.f32 0.0, %v2234
  %v2236 = vpop.f32.mrf.mxu0
  %2237 = vmatprep.mubr.f32.mxu0 0.0
  %2238 = vmatmul.mubr.f32.gmra.mxu0 %v2134
  %v2239 = vpop.f32.mrf.mxu0
  %v2240 = vadd.f32 0.0, %v2239
  %v2241 = vpop.f32.mrf.mxu0
  %2242 = vmatprep.mubr.f32.mxu0 0.0
  %2243 = vmatmul.mubr.f32.gmra.mxu0 %v2137
  %v2244 = vpop.f32.mrf.mxu0
  %v2245 = vadd.f32 0.0, %v2244
  %v2246 = vpop.f32.mrf.mxu0
  %2247 = vmatprep.mubr.f32.mxu0 0.0
  %2248 = vmatmul.mubr.f32.gmra.mxu0 %v2140
  %v2249 = vpop.f32.mrf.mxu0
  %v2250 = vadd.f32 0.0, %v2249
  %v2251 = vpop.f32.mrf.mxu0
  %2252 = vmatprep.mubr.f32.mxu0 0.0
  %2253 = vmatmul.mubr.f32.gmra.mxu0 %v2143
  %v2254 = vpop.f32.mrf.mxu0
  %v2255 = vadd.f32 0.0, %v2254
  %v2256 = vpop.f32.mrf.mxu0
  %2257 = vdwg.mxu0
  %v2258 = vadd.f32 %v2099, %v2215
  %v2259 = vadd.f32 %v2100, %v2220
  %v2260 = vadd.f32 %v2101, %v2225
  %v2261 = vadd.f32 %v2102, %v2230
  %v2262 = vadd.f32 %v2103, %v2235
  %v2263 = vadd.f32 %v2104, %v2240
  %v2264 = vadd.f32 %v2105, %v2245
  %v2265 = vadd.f32 %v2106, %v2250
  %v2266 = vadd.f32 %v2107, %v2255
  %v2267 = vld [vmem:[#allocation3 + $0xe] sm:$0xff]
  %v2268 = vld [vmem:[#allocation3 + $0x16] sm:$0xff]
  %v2269 = vld [vmem:[#allocation3 + $0x1e] sm:$0xff]
  %v2270 = vld [vmem:[#allocation3 + $0x26] sm:$0xff]
  %v2271 = vld [vmem:[#allocation3 + $0x2e] sm:$0xff]
  %v2272 = vld [vmem:[#allocation3 + $0x36] sm:$0xff]
  %v2273 = vld [vmem:[#allocation3 + $0x3e] sm:$0xff]
  %v2274 = vld [vmem:[#allocation3 + $0x46] sm:$0xff]
  %v2275 = vld [vmem:[#allocation3 + $0x4e] sm:$0xff]
  %v2276 = vld [vmem:[%s3 + $0x30] sm:$0x3f]
  %v2278 = vsel %vm306, %v2267, 0
  %v2281 = vsel %vm306, %v2268, 0
  %v2284 = vsel %vm306, %v2269, 0
  %v2287 = vsel %vm306, %v2270, 0
  %v2290 = vsel %vm306, %v2271, 0
  %v2293 = vsel %vm306, %v2272, 0
  %v2296 = vsel %vm306, %v2273, 0
  %v2299 = vsel %vm306, %v2274, 0
  %v2302 = vsel %vm306, %v2275, 0
  %v2305 = vsel %vm1059, %v2276, 0
  %2307 = vmatprep.subr.mxu0 0.0
  %2308 = vmatpush1.msra.mxu0 0.0
  %2309 = vmatprep.subr.mxu0 0.0
  %2310 = vmatpush1.msra.mxu0 0.0
  %2311 = vmatprep.subr.mxu0 0.0
  %2312 = vmatpush1.msra.mxu0 0.0
  %2313 = vmatprep.subr.mxu0 0.0
  %2314 = vmatpush1.msra.mxu0 0.0
  %2315 = vmatprep.subr.mxu0 0.0
  %2316 = vmatpush1.msra.mxu0 0.0
  %2317 = vmatprep.subr.mxu0 0.0
  %2318 = vmatpush1.msra.mxu0 0.0
  %2319 = vmatprep.subr.mxu0 0.0
  %2320 = vmatpush1.msra.mxu0 0.0
  %2321 = vmatprep.subr.mxu0 0.0
  %2322 = vmatpush1.msra.mxu0 0.0
  %2323 = vmatprep.subr.mxu0 0.0
  %2324 = vmatpush1.msra.mxu0 0.0
  %2325 = vmatprep.subr.mxu0 0.0
  %2326 = vmatpush1.msra.mxu0 0.0
  %2327 = vmatprep.subr.mxu0 0.0
  %2328 = vmatpush1.msra.mxu0 0.0
  %2329 = vmatprep.subr.mxu0 0.0
  %2330 = vmatpush1.msra.mxu0 0.0
  %2331 = vmatprep.subr.mxu0 0.0
  %2332 = vmatpush1.msra.mxu0 0.0
  %2333 = vmatprep.subr.mxu0 0.0
  %2334 = vmatpush1.msra.mxu0 0.0
  %2335 = vmatprep.subr.mxu0 0.0
  %2336 = vmatpush1.msra.mxu0 0.0
  %2337 = vmatprep.subr.mxu0 0.0
  %2338 = vmatpush1.msra.mxu0 %v2305
  %2339 = vmatprep.subr.mxu0 0.0
  %2340 = vmatpush2.msra.mxu0 0.0
  %2341 = vmatprep.subr.mxu0 0.0
  %2342 = vmatpush2.msra.mxu0 0.0
  %2343 = vmatprep.subr.mxu0 0.0
  %2344 = vmatpush2.msra.mxu0 0.0
  %2345 = vmatprep.subr.mxu0 0.0
  %2346 = vmatpush2.msra.mxu0 0.0
  %2347 = vmatprep.subr.mxu0 0.0
  %2348 = vmatpush2.msra.mxu0 0.0
  %2349 = vmatprep.subr.mxu0 0.0
  %2350 = vmatpush2.msra.mxu0 0.0
  %2351 = vmatprep.subr.mxu0 0.0
  %2352 = vmatpush2.msra.mxu0 0.0
  %2353 = vmatprep.subr.mxu0 0.0
  %2354 = vmatpush2.msra.mxu0 0.0
  %2355 = vmatprep.subr.mxu0 0.0
  %2356 = vmatpush2.msra.mxu0 0.0
  %2357 = vmatprep.subr.mxu0 0.0
  %2358 = vmatpush2.msra.mxu0 0.0
  %2359 = vmatprep.subr.mxu0 0.0
  %2360 = vmatpush2.msra.mxu0 0.0
  %2361 = vmatprep.subr.mxu0 0.0
  %2362 = vmatpush2.msra.mxu0 0.0
  %2363 = vmatprep.subr.mxu0 0.0
  %2364 = vmatpush2.msra.mxu0 0.0
  %2365 = vmatprep.subr.mxu0 0.0
  %2366 = vmatpush2.msra.mxu0 0.0
  %2367 = vmatprep.subr.mxu0 0.0
  %2368 = vmatpush2.msra.mxu0 0.0
  %2369 = vmatprep.subr.mxu0 0.0
  %2370 = vmatpush2.msra.mxu0 0.0
  %2371 = vmatprep.mubr.f32.mxu0 0.0
  %2372 = vmatmul.mubr.f32.gmra.mxu0 %v2278
  %v2373 = vpop.f32.mrf.mxu0
  %v2374 = vadd.f32 0.0, %v2373
  %v2375 = vpop.f32.mrf.mxu0
  %2376 = vmatprep.mubr.f32.mxu0 0.0
  %2377 = vmatmul.mubr.f32.gmra.mxu0 %v2281
  %v2378 = vpop.f32.mrf.mxu0
  %v2379 = vadd.f32 0.0, %v2378
  %v2380 = vpop.f32.mrf.mxu0
  %2381 = vmatprep.mubr.f32.mxu0 0.0
  %2382 = vmatmul.mubr.f32.gmra.mxu0 %v2284
  %v2383 = vpop.f32.mrf.mxu0
  %v2384 = vadd.f32 0.0, %v2383
  %v2385 = vpop.f32.mrf.mxu0
  %2386 = vmatprep.mubr.f32.mxu0 0.0
  %2387 = vmatmul.mubr.f32.gmra.mxu0 %v2287
  %v2388 = vpop.f32.mrf.mxu0
  %v2389 = vadd.f32 0.0, %v2388
  %v2390 = vpop.f32.mrf.mxu0
  %2391 = vmatprep.mubr.f32.mxu0 0.0
  %2392 = vmatmul.mubr.f32.gmra.mxu0 %v2290
  %v2393 = vpop.f32.mrf.mxu0
  %v2394 = vadd.f32 0.0, %v2393
  %v2395 = vpop.f32.mrf.mxu0
  %2396 = vmatprep.mubr.f32.mxu0 0.0
  %2397 = vmatmul.mubr.f32.gmra.mxu0 %v2293
  %v2398 = vpop.f32.mrf.mxu0
  %v2399 = vadd.f32 0.0, %v2398
  %v2400 = vpop.f32.mrf.mxu0
  %2401 = vmatprep.mubr.f32.mxu0 0.0
  %2402 = vmatmul.mubr.f32.gmra.mxu0 %v2296
  %v2403 = vpop.f32.mrf.mxu0
  %v2404 = vadd.f32 0.0, %v2403
  %v2405 = vpop.f32.mrf.mxu0
  %2406 = vmatprep.mubr.f32.mxu0 0.0
  %2407 = vmatmul.mubr.f32.gmra.mxu0 %v2299
  %v2408 = vpop.f32.mrf.mxu0
  %v2409 = vadd.f32 0.0, %v2408
  %v2410 = vpop.f32.mrf.mxu0
  %2411 = vmatprep.mubr.f32.mxu0 0.0
  %2412 = vmatmul.mubr.f32.gmra.mxu0 %v2302
  %v2413 = vpop.f32.mrf.mxu0
  %v2414 = vadd.f32 0.0, %v2413
  %v2415 = vpop.f32.mrf.mxu0
  %2416 = vdwg.mxu0
  %v2417 = vadd.f32 %v2258, %v2374
  %v2418 = vadd.f32 %v2259, %v2379
  %v2419 = vadd.f32 %v2260, %v2384
  %v2420 = vadd.f32 %v2261, %v2389
  %v2421 = vadd.f32 %v2262, %v2394
  %v2422 = vadd.f32 %v2263, %v2399
  %v2423 = vadd.f32 %v2264, %v2404
  %v2424 = vadd.f32 %v2265, %v2409
  %v2425 = vadd.f32 %v2266, %v2414
  %v2426 = vlaneseq
  %v2427 = vshrl.u32 %v2426, 7
  %v2428 = vsub.s32 0, %v2427
  %v2429 = vrot.slane %v1011, %v2428
  %v2430 = vadd.f32 %v2417, %v2429
  %v2431 = vadd.f32 %v2418, %v2429
  %v2432 = vadd.f32 %v2419, %v2429
  %v2433 = vadd.f32 %v2420, %v2429
  %v2434 = vadd.f32 %v2421, %v2429
  %v2435 = vadd.f32 %v2422, %v2429
  %v2436 = vadd.f32 %v2423, %v2429
  %v2437 = vadd.f32 %v2424, %v2429
  %v2438 = vadd.f32 %v2425, %v2429
  %v2439 = vmax.f32 %v2430, 0.0
  %v2440 = vmax.f32 %v2431, 0.0
  %v2441 = vmax.f32 %v2432, 0.0
  %v2442 = vmax.f32 %v2433, 0.0
  %v2443 = vmax.f32 %v2434, 0.0
  %v2444 = vmax.f32 %v2435, 0.0
  %v2445 = vmax.f32 %v2436, 0.0
  %v2446 = vmax.f32 %v2437, 0.0
  %v2447 = vmax.f32 %v2438, 0.0
  %vm2448 = vcmask 130048
  %2449 = vst.msk [vmem:[#allocation4] sm:$0xff] %vm2448, %v2439
  %2450 = vst.msk [vmem:[#allocation4 + $0x8] sm:$0xff] %vm2448, %v2440
  %2451 = vst.msk [vmem:[#allocation4 + $0x10] sm:$0xff] %vm2448, %v2441
  %2452 = vst.msk [vmem:[#allocation4 + $0x18] sm:$0xff] %vm2448, %v2442
  %2453 = vst.msk [vmem:[#allocation4 + $0x20] sm:$0xff] %vm2448, %v2443
  %2454 = vst.msk [vmem:[#allocation4 + $0x28] sm:$0xff] %vm2448, %v2444
  %2455 = vst.msk [vmem:[#allocation4 + $0x30] sm:$0xff] %vm2448, %v2445
  %2456 = vst.msk [vmem:[#allocation4 + $0x38] sm:$0xff] %vm2448, %v2446
  %2457 = vst.msk [vmem:[#allocation4 + $0x40] sm:$0xff] %vm2448, %v2447
  %v2458 = vld [vmem:[#allocation4] sm:$0x3]
  %v2459 = vld [vmem:[#allocation4 + $0x6] sm:$0x3]
  %v2460 = vmax.f32 %v2458, %v2459
  %vm2461 = vcmask 123904
  %v2462 = vsel %vm2461, %v2460, -inf
  %v2463 = vrot.slane %v2462, 4
  %v2464 = vmax.f32 %v2462, %v2463
  %v2465 = vrot.slane %v2464, 2
  %v2466 = vmax.f32 %v2464, %v2465
  %v2467 = vrot.slane %v2466, 1
  %v2468 = vmax.f32 %v2466, %v2467
  %vm2469 = vcmask 122880
  %2470 = vst.msk [vmem:[#allocation5] sm:$0x1] %vm2469, %v2468
  %v2471 = vld [vmem:[#allocation4 + $0x2] sm:$0x3]
  %v2472 = vld [vmem:[#allocation4 + $0x8] sm:$0x3]
  %v2473 = vmax.f32 %v2471, %v2472
  %v2474 = vsel %vm2461, %v2473, -inf
  %v2475 = vrot.slane %v2474, 4
  %v2476 = vmax.f32 %v2474, %v2475
  %v2477 = vrot.slane %v2476, 2
  %v2478 = vmax.f32 %v2476, %v2477
  %v2479 = vrot.slane %v2478, 1
  %v2480 = vmax.f32 %v2478, %v2479
  %2482 = vrot.lane.b32.xlu0 %v2480, 16
  %v2483 = vpop.permute.xlu0 %2482
  %vm2485 = vcmask 254080
  %2486 = vst.msk [vmem:[#allocation5] sm:$0x1] %vm2485, %v2483
  %v2487 = vld [vmem:[#allocation4 + $0xc] sm:$0x3]
  %v2488 = vld [vmem:[#allocation4 + $0x12] sm:$0x3]
  %v2489 = vmax.f32 %v2487, %v2488
  %v2490 = vsel %vm2461, %v2489, -inf
  %v2491 = vrot.slane %v2490, 4
  %v2492 = vmax.f32 %v2490, %v2491
  %v2493 = vrot.slane %v2492, 2
  %v2494 = vmax.f32 %v2492, %v2493
  %v2495 = vrot.slane %v2494, 1
  %v2496 = vmax.f32 %v2494, %v2495
  %2498 = vrot.lane.b32.xlu0 %v2496, 32
  %v2499 = vpop.permute.xlu0 %2498
  %vm2501 = vcmask 385280
  %2502 = vst.msk [vmem:[#allocation5] sm:$0x1] %vm2501, %v2499
  %v2503 = vld [vmem:[#allocation4 + $0xe] sm:$0x3]
  %v2504 = vld [vmem:[#allocation4 + $0x14] sm:$0x3]
  %v2505 = vmax.f32 %v2503, %v2504
  %v2506 = vsel %vm2461, %v2505, -inf
  %v2507 = vrot.slane %v2506, 4
  %v2508 = vmax.f32 %v2506, %v2507
  %v2509 = vrot.slane %v2508, 2
  %v2510 = vmax.f32 %v2508, %v2509
  %v2511 = vrot.slane %v2510, 1
  %v2512 = vmax.f32 %v2510, %v2511
  %2514 = vrot.lane.b32.xlu0 %v2512, 48
  %v2515 = vpop.permute.xlu0 %2514
  %vm2517 = vcmask 516480
  %2518 = vst.msk [vmem:[#allocation5] sm:$0x1] %vm2517, %v2515
  %v2519 = vld [vmem:[#allocation4 + $0x24] sm:$0x3]
  %v2520 = vld [vmem:[#allocation4 + $0x2a] sm:$0x3]
  %v2521 = vmax.f32 %v2519, %v2520
  %v2522 = vsel %vm2461, %v2521, -inf
  %v2523 = vrot.slane %v2522, 4
  %v2524 = vmax.f32 %v2522, %v2523
  %v2525 = vrot.slane %v2524, 2
  %v2526 = vmax.f32 %v2524, %v2525
  %v2527 = vrot.slane %v2526, 1
  %v2528 = vmax.f32 %v2526, %v2527
  %2529 = vst.msk [vmem:[#allocation5 + $0x1] sm:$0x1] %vm2469, %v2528
  %v2530 = vld [vmem:[#allocation4 + $0x26] sm:$0x3]
  %v2531 = vld [vmem:[#allocation4 + $0x2c] sm:$0x3]
  %v2532 = vmax.f32 %v2530, %v2531
  %v2533 = vsel %vm2461, %v2532, -inf
  %v2534 = vrot.slane %v2533, 4
  %v2535 = vmax.f32 %v2533, %v2534
  %v2536 = vrot.slane %v2535, 2
  %v2537 = vmax.f32 %v2535, %v2536
  %v2538 = vrot.slane %v2537, 1
  %v2539 = vmax.f32 %v2537, %v2538
  %2541 = vrot.lane.b32.xlu0 %v2539, 16
  %v2542 = vpop.permute.xlu0 %2541
  %2544 = vst.msk [vmem:[#allocation5 + $0x1] sm:$0x1] %vm2485, %v2542
  %v2545 = vld [vmem:[#allocation4 + $0x30] sm:$0x3]
  %v2546 = vld [vmem:[#allocation4 + $0x36] sm:$0x3]
  %v2547 = vmax.f32 %v2545, %v2546
  %v2548 = vsel %vm2461, %v2547, -inf
  %v2549 = vrot.slane %v2548, 4
  %v2550 = vmax.f32 %v2548, %v2549
  %v2551 = vrot.slane %v2550, 2
  %v2552 = vmax.f32 %v2550, %v2551
  %v2553 = vrot.slane %v2552, 1
  %v2554 = vmax.f32 %v2552, %v2553
  %2556 = vrot.lane.b32.xlu0 %v2554, 32
  %v2557 = vpop.permute.xlu0 %2556
  %2559 = vst.msk [vmem:[#allocation5 + $0x1] sm:$0x1] %vm2501, %v2557
  %v2560 = vld [vmem:[#allocation4 + $0x32] sm:$0x3]
  %v2561 = vld [vmem:[#allocation4 + $0x38] sm:$0x3]
  %v2562 = vmax.f32 %v2560, %v2561
  %v2563 = vsel %vm2461, %v2562, -inf
  %v2564 = vrot.slane %v2563, 4
  %v2565 = vmax.f32 %v2563, %v2564
  %v2566 = vrot.slane %v2565, 2
  %v2567 = vmax.f32 %v2565, %v2566
  %v2568 = vrot.slane %v2567, 1
  %v2569 = vmax.f32 %v2567, %v2568
  %2571 = vrot.lane.b32.xlu0 %v2569, 48
  %v2572 = vpop.permute.xlu0 %2571
  %2574 = vst.msk [vmem:[#allocation5 + $0x1] sm:$0x1] %vm2517, %v2572
  %v2575 = vld [vmem:[%s1] sm:$0x3]
  %2577 = vrot.lane.b32.xlu0 %v2575, 64
  %v2578 = vpop.permute.xlu0 %2577
  %vm2580 = vcmask 525824
  %2581 = vst.msk [vmem:[#allocation5] sm:$0x3] %vm2580, %v2578
  %v2582 = vld [vmem:[%s6 + $0x2] sm:$0x1]
  %v2583 = vld [vmem:[%s6 + $0x3] sm:$0x1]
  %v2584 = vld [vmem:[%s6 + $0x4] sm:$0x1]
  %v2585 = vld [vmem:[%s6 + $0x5] sm:$0x1]
  %v2586 = vld [vmem:[#allocation5] sm:$0x3]
  %v2587 = vld [vmem:[%s4] sm:$0xff]
  %v2588 = vld [vmem:[%s4 + $0x8] sm:$0xff]
  %v2589 = vld [vmem:[%s4 + $0x10] sm:$0xff]
  %v2590 = vld [vmem:[%s4 + $0x18] sm:$0xff]
  %v2591 = vld [vmem:[%s4 + $0x20] sm:$0xff]
  %v2592 = vld [vmem:[%s4 + $0x28] sm:$0xff]
  %v2593 = vld [vmem:[%s4 + $0x30] sm:$0xff]
  %v2594 = vld [vmem:[%s4 + $0x38] sm:$0xff]
  %v2595 = vld [vmem:[%s4 + $0x40] sm:$0x1]
  %v2596 = vlaneseq
  %v2597 = vshrl.u32 %v2596, 7
  %v2598 = vsub.s32 0, %v2597
  %v2599 = vrot.slane %v2582, %v2598
  %vm2600 = vcmask 531456
  %v2602 = vsel %vm2600, %v2586, 0
  %vm2604 = vcmask 1040384
  %v2606 = vsel %vm2604, %v2595, 0
  %2608 = vmatprep.subr.mxu0 0.0
  %2609 = vmatpush1.msra.mxu0 0.0
  %2610 = vmatprep.subr.mxu0 0.0
  %2611 = vmatpush1.msra.mxu0 0.0
  %2612 = vmatprep.subr.mxu0 0.0
  %2613 = vmatpush1.msra.mxu0 0.0
  %2614 = vmatprep.subr.mxu0 0.0
  %2615 = vmatpush1.msra.mxu0 0.0
  %2616 = vmatprep.subr.mxu0 0.0
  %2617 = vmatpush1.msra.mxu0 0.0
  %2618 = vmatprep.subr.mxu0 0.0
  %2619 = vmatpush1.msra.mxu0 0.0
  %2620 = vmatprep.subr.mxu0 0.0
  %2621 = vmatpush1.msra.mxu0 0.0
  %2622 = vmatprep.subr.mxu0 0.0
  %2623 = vmatpush1.msra.mxu0 %v2606
  %2624 = vmatprep.subr.mxu0 0.0
  %2625 = vmatpush1.msra.mxu0 %v2594
  %2626 = vmatprep.subr.mxu0 0.0
  %2627 = vmatpush1.msra.mxu0 %v2593
  %2628 = vmatprep.subr.mxu0 0.0
  %2629 = vmatpush1.msra.mxu0 %v2592
  %2630 = vmatprep.subr.mxu0 0.0
  %2631 = vmatpush1.msra.mxu0 %v2591
  %2632 = vmatprep.subr.mxu0 0.0
  %2633 = vmatpush1.msra.mxu0 %v2590
  %2634 = vmatprep.subr.mxu0 0.0
  %2635 = vmatpush1.msra.mxu0 %v2589
  %2636 = vmatprep.subr.mxu0 0.0
  %2637 = vmatpush1.msra.mxu0 %v2588
  %2638 = vmatprep.subr.mxu0 0.0
  %2639 = vmatpush1.msra.mxu0 %v2587
  %2640 = vmatprep.subr.mxu0 0.0
  %2641 = vmatpush2.msra.mxu0 0.0
  %2642 = vmatprep.subr.mxu0 0.0
  %2643 = vmatpush2.msra.mxu0 0.0
  %2644 = vmatprep.subr.mxu0 0.0
  %2645 = vmatpush2.msra.mxu0 0.0
  %2646 = vmatprep.subr.mxu0 0.0
  %2647 = vmatpush2.msra.mxu0 0.0
  %2648 = vmatprep.subr.mxu0 0.0
  %2649 = vmatpush2.msra.mxu0 0.0
  %2650 = vmatprep.subr.mxu0 0.0
  %2651 = vmatpush2.msra.mxu0 0.0
  %2652 = vmatprep.subr.mxu0 0.0
  %2653 = vmatpush2.msra.mxu0 0.0
  %2654 = vmatprep.subr.mxu0 0.0
  %2655 = vmatpush2.msra.mxu0 0.0
  %2656 = vmatprep.subr.mxu0 0.0
  %2657 = vmatpush2.msra.mxu0 0.0
  %2658 = vmatprep.subr.mxu0 0.0
  %2659 = vmatpush2.msra.mxu0 0.0
  %2660 = vmatprep.subr.mxu0 0.0
  %2661 = vmatpush2.msra.mxu0 0.0
  %2662 = vmatprep.subr.mxu0 0.0
  %2663 = vmatpush2.msra.mxu0 0.0
  %2664 = vmatprep.subr.mxu0 0.0
  %2665 = vmatpush2.msra.mxu0 0.0
  %2666 = vmatprep.subr.mxu0 0.0
  %2667 = vmatpush2.msra.mxu0 0.0
  %2668 = vmatprep.subr.mxu0 0.0
  %2669 = vmatpush2.msra.mxu0 0.0
  %2670 = vmatprep.subr.mxu0 0.0
  %2671 = vmatpush2.msra.mxu0 0.0
  %2672 = vmatprep.mubr.f32.mxu0 0.0
  %2673 = vmatmul.mubr.f32.gmra.mxu0 %v2602
  %v2674 = vpop.f32.mrf.mxu0
  %v2675 = vadd.f32 %v2599, %v2674
  %v2676 = vpop.f32.mrf.mxu0
  %2677 = vdwg.mxu0
  %v2678 = vmax.f32 %v2675, 0.0
  %v2679 = vld [vmem:[%s5] sm:$0xff]
  %v2680 = vld [vmem:[%s5 + $0x8] sm:$0xff]
  %v2681 = vld [vmem:[%s5 + $0x10] sm:$0xff]
  %v2682 = vld [vmem:[%s5 + $0x18] sm:$0xff]
  %v2683 = vlaneseq
  %v2684 = vshrl.u32 %v2683, 7
  %v2685 = vsub.s32 0, %v2684
  %v2686 = vrot.slane %v2583, %v2685
  %vm2687 = vcmask 261120
  %v2689 = vsel %vm2687, %v2678, 0
  %2691 = vmatprep.subr.mxu0 0.0
  %2692 = vmatpush1.msra.mxu0 0.0
  %2693 = vmatprep.subr.mxu0 0.0
  %2694 = vmatpush1.msra.mxu0 0.0
  %2695 = vmatprep.subr.mxu0 0.0
  %2696 = vmatpush1.msra.mxu0 0.0
  %2697 = vmatprep.subr.mxu0 0.0
  %2698 = vmatpush1.msra.mxu0 0.0
  %2699 = vmatprep.subr.mxu0 0.0
  %2700 = vmatpush1.msra.mxu0 0.0
  %2701 = vmatprep.subr.mxu0 0.0
  %2702 = vmatpush1.msra.mxu0 0.0
  %2703 = vmatprep.subr.mxu0 0.0
  %2704 = vmatpush1.msra.mxu0 0.0
  %2705 = vmatprep.subr.mxu0 0.0
  %2706 = vmatpush1.msra.mxu0 0.0
  %2707 = vmatprep.subr.mxu0 0.0
  %2708 = vmatpush1.msra.mxu0 0.0
  %2709 = vmatprep.subr.mxu0 0.0
  %2710 = vmatpush1.msra.mxu0 0.0
  %2711 = vmatprep.subr.mxu0 0.0
  %2712 = vmatpush1.msra.mxu0 0.0
  %2713 = vmatprep.subr.mxu0 0.0
  %2714 = vmatpush1.msra.mxu0 0.0
  %2715 = vmatprep.subr.mxu0 0.0
  %2716 = vmatpush1.msra.mxu0 %v2682
  %2717 = vmatprep.subr.mxu0 0.0
  %2718 = vmatpush1.msra.mxu0 %v2681
  %2719 = vmatprep.subr.mxu0 0.0
  %2720 = vmatpush1.msra.mxu0 %v2680
  %2721 = vmatprep.subr.mxu0 0.0
  %2722 = vmatpush1.msra.mxu0 %v2679
  %2723 = vmatprep.subr.mxu0 0.0
  %2724 = vmatpush2.msra.mxu0 0.0
  %2725 = vmatprep.subr.mxu0 0.0
  %2726 = vmatpush2.msra.mxu0 0.0
  %2727 = vmatprep.subr.mxu0 0.0
  %2728 = vmatpush2.msra.mxu0 0.0
  %2729 = vmatprep.subr.mxu0 0.0
  %2730 = vmatpush2.msra.mxu0 0.0
  %2731 = vmatprep.subr.mxu0 0.0
  %2732 = vmatpush2.msra.mxu0 0.0
  %2733 = vmatprep.subr.mxu0 0.0
  %2734 = vmatpush2.msra.mxu0 0.0
  %2735 = vmatprep.subr.mxu0 0.0
  %2736 = vmatpush2.msra.mxu0 0.0
  %2737 = vmatprep.subr.mxu0 0.0
  %2738 = vmatpush2.msra.mxu0 0.0
  %2739 = vmatprep.subr.mxu0 0.0
  %2740 = vmatpush2.msra.mxu0 0.0
  %2741 = vmatprep.subr.mxu0 0.0
  %2742 = vmatpush2.msra.mxu0 0.0
  %2743 = vmatprep.subr.mxu0 0.0
  %2744 = vmatpush2.msra.mxu0 0.0
  %2745 = vmatprep.subr.mxu0 0.0
  %2746 = vmatpush2.msra.mxu0 0.0
  %2747 = vmatprep.subr.mxu0 0.0
  %2748 = vmatpush2.msra.mxu0 0.0
  %2749 = vmatprep.subr.mxu0 0.0
  %2750 = vmatpush2.msra.mxu0 0.0
  %2751 = vmatprep.subr.mxu0 0.0
  %2752 = vmatpush2.msra.mxu0 0.0
  %2753 = vmatprep.subr.mxu0 0.0
  %2754 = vmatpush2.msra.mxu0 0.0
  %2755 = vmatprep.mubr.f32.mxu0 0.0
  %2756 = vmatmul.mubr.f32.gmra.mxu0 %v2689
  %v2757 = vpop.f32.mrf.mxu0
  %v2758 = vadd.f32 %v2686, %v2757
  %v2759 = vpop.f32.mrf.mxu0
  %2760 = vdwg.mxu0
  %v2761 = vmax.f32 %v2758, 0.0
  %v2762 = vlaneseq
  %v2763 = vshrl.u32 %v2762, 7
  %v2764 = vsub.s32 0, %v2763
  %v2765 = vrot.slane %v2584, %v2764
  %v2766 = vmul.f32 %v2761, %v2765
  %v2767 = vsel %vm2461, %v2766, 0.0
  %2768 = vadd.xlane.f32.xlu0 %v2767
  %v2769 = vpop.xlane.xlu0 %2768
  %v2770 = vlaneseq
  %v2771 = vshrl.u32 %v2770, 7
  %v2772 = vsub.s32 0, %v2771
  %v2773 = vrot.slane %v2585, %v2772
  %v2774 = vadd.f32 %v2769, %v2773
  %v2775 = vand.u32 2147483647, %v2774
  %v2776 = vsub.f32 0.0, %v2775
  %v2777 = vmul.f32 %v2776, 1.442695
  %v2778 = vpow.pop %v2777
  %vm2779 = vcmp.ge.f32.partialorder %v2774, 0.0
  %v2780 = vadd.f32 %v2778, 1.0
  %v2781 = vrcp.pop %v2780
  %v2782 = vmul.f32 1.0, %v2781
  %v2783 = vmul.f32 %v2778, %v2781
  %v2784 = vsel %vm2779, %v2782, %v2783
  %vm2785 = vcmask 1024
  %2786 = vst.msk [vmem:[%s7] sm:$0x3] %vm2785, %v2784
  // Predicated region
  $region30: #{forward.1} parent=0 // pred_check
    _
  $region31: #{forward.1} parent=0 // pred_check_branch
    %2788 = sbr.rel (0) target = $region33
  $region32: #{forward.1} parent=0 // pred_region
    _
  $region33: #{forward.1} parent=0 // pred_fallthru
    _
  // Predicated region
  $region34: #{forward.1} parent=0 // pred_check
    _
  $region35: #{forward.1} parent=0 // pred_check_branch
    %2790 = sbr.rel (0) target = $region37
  $region36: #{forward.1} parent=0 // pred_region
    _
  $region37: #{forward.1} parent=0 // pred_fallthru
    _

</llo_original>
